<compile_context>
chip_gen: v6e
topology: v6e:2x2x1
jax: 0.10.0
libtpu: 0.0.40
codegen_flags: <defaults>
</compile_context>

<pallas_src>
import functools

import jax
import jax.numpy as jnp
from jax import lax
from jax.experimental import pallas as pl
from jax.experimental.pallas import tpu as pltpu

# ---------------- model hyperparameters (small, consistent with the module) ----------------
SEQ = 8
BATCH = 2
INPUT_DIM = 16
HIDDEN_DIM = 32
OUTPUT_DIM = 8
NUM_LAYERS = 2

_VMEM_SPEC = pl.BlockSpec(memory_space=pltpu.MemorySpace.VMEM)


def _sigmoid(x):
    return 1.0 / (1.0 + jnp.exp(-x))


def _lstm_cell(gates, c_prev, H):
    """PyTorch LSTM gate order [i, f, g, o] along the last (4H) axis."""
    i = _sigmoid(gates[:, 0:H])
    f = _sigmoid(gates[:, H:2 * H])
    g = jnp.tanh(gates[:, 2 * H:3 * H])
    o = _sigmoid(gates[:, 3 * H:4 * H])
    c = f * c_prev + i * g
    h = o * jnp.tanh(c)
    return h, c


# ---------------- single fused Pallas kernel ----------------
def _fused_lstm_kernel(*refs, seq, batch, hidden, num_layers):
    """Entire Discriminator forward in one kernel.

    refs layout:
      refs[0]                   : x2d      (S*B, D_in)
      per layer l (4 refs each) : wih_both (D_l, 8H)  [fwd gates | bwd gates], pre-transposed
                                  b_both   (1, 8H)    (b_ih + b_hh), fwd | bwd
                                  whh_fwd  (H, 4H)    pre-transposed
                                  whh_bwd  (H, 4H)    pre-transposed
      refs[1 + 4L]              : lin_w    (2H, D_out) pre-transposed
      refs[2 + 4L]              : lin_b    (1, D_out)
      refs[3 + 4L]              : out      (S*B, D_out)                     <- output
      refs[4 + 4L]              : act      (S*B, 2H) VMEM scratch (inter-layer activations)
    """
    # TODO(synk): nn.LSTM inter-layer dropout (p=0.5) is training-mode only; eval forward omits it.
    H = hidden
    x_ref = refs[0]
    lin_w_ref = refs[1 + 4 * num_layers]
    lin_b_ref = refs[2 + 4 * num_layers]
    out_ref = refs[3 + 4 * num_layers]
    act_ref = refs[4 + 4 * num_layers]

    x = x_ref[...]  # (S*B, D_in)
    for l in range(num_layers):
        wih_ref, b_ref, whh_f_ref, whh_b_ref = refs[1 + 4 * l: 5 + 4 * l]

        # Hoisted input projection: both directions, all 4 gates, all timesteps at once.
        xp = (jnp.dot(x, wih_ref[...], preferred_element_type=jnp.float32)
              + b_ref[...])                          # (S*B, 8H)
        whh_f = whh_f_ref[...]                       # (H, 4H), stays vreg/VMEM-resident
        whh_b = whh_b_ref[...]

        h_f = jnp.zeros((batch, H), jnp.float32)
        c_f = jnp.zeros((batch, H), jnp.float32)
        h_b = jnp.zeros((batch, H), jnp.float32)
        c_b = jnp.zeros((batch, H), jnp.float32)

        # Fully unrolled static time loop; fwd and bwd recurrences interleaved so the
        # scheduler has two independent matmul + tanh/sigmoid chains per step.
        for t in range(seq):
            tf = t
            tb = seq - 1 - t
            g_f = xp[tf * batch:(tf + 1) * batch, 0:4 * H] + jnp.dot(
                h_f, whh_f, preferred_element_type=jnp.float32)
            g_b = xp[tb * batch:(tb + 1) * batch, 4 * H:8 * H] + jnp.dot(
                h_b, whh_b, preferred_element_type=jnp.float32)
            h_f, c_f = _lstm_cell(g_f, c_f, H)
            h_b, c_b = _lstm_cell(g_b, c_b, H)
            # Static-offset stores into the VMEM-resident activation slab
            # (PyTorch bidirectional layout: [h_fwd ; h_bwd] along features).
            act_ref[tf * batch:(tf + 1) * batch, 0:H] = h_f
            act_ref[tb * batch:(tb + 1) * batch, H:2 * H] = h_b

        x = act_ref[...]                             # (S*B, 2H) -> input of next layer / head

    out_ref[...] = _sigmoid(
        jnp.dot(x, lin_w_ref[...], preferred_element_type=jnp.float32) + lin_b_ref[...])


# ---------------- one-time parameter transform (hoisted weight prep) ----------------
def prepare_params(params):
    layers = []
    for l in range(NUM_LAYERS):
        p = params["lstm"][l]
        wih_both = jnp.concatenate([p["fwd"]["w_ih"].T, p["bwd"]["w_ih"].T], axis=1)  # (D_l, 8H)
        b_both = jnp.concatenate(
            [p["fwd"]["b_ih"] + p["fwd"]["b_hh"],
             p["bwd"]["b_ih"] + p["bwd"]["b_hh"]])[None, :]                           # (1, 8H)
        layers.append({"wih": wih_both, "b": b_both,
                       "whh_f": p["fwd"]["w_hh"].T, "whh_b": p["bwd"]["w_hh"].T})
    return {"layers": layers,
            "lin_w": params["lin"]["w"].T,            # (2H, D_out)
            "lin_b": params["lin"]["b"][None, :]}     # (1, D_out)


# ---------------- wrapper: one pallas_call for the whole forward ----------------
@jax.jit
def discriminator_forward(x, prepped):
    """x: (S, B, D_in) time-major -> (S, B, D_out). Mirrors Discriminator.forward (eval mode)."""
    S, B, D = x.shape
    args = [x.reshape(S * B, D)]
    for lp in prepped["layers"]:
        args += [lp["wih"], lp["b"], lp["whh_f"], lp["whh_b"]]
    args += [prepped["lin_w"], prepped["lin_b"]]

    kernel = functools.partial(_fused_lstm_kernel, seq=S, batch=B,
                               hidden=HIDDEN_DIM, num_layers=NUM_LAYERS)
    out2d = pl.pallas_call(
        kernel,
        out_shape=jax.ShapeDtypeStruct((S * B, OUTPUT_DIM), jnp.float32),
        in_specs=[_VMEM_SPEC] * len(args),
        out_specs=_VMEM_SPEC,
        scratch_shapes=[pltpu.VMEM((S * B, 2 * HIDDEN_DIM), jnp.float32)],
    )(*args)
    return out2d.reshape(S, B, OUTPUT_DIM)


# ---------------- pure-JAX reference (PyTorch nn.LSTM semantics) ----------------
def _lstm_dir_ref(x, w_ih, w_hh, b_ih, b_hh, reverse):
    S, B, _ = x.shape
    H = w_hh.shape[1]
    xs = x[::-1] if reverse else x

    def step(carry, x_t):
        h, c = carry
        gates = x_t @ w_ih.T + b_ih + h @ w_hh.T + b_hh
        i = _sigmoid(gates[:, 0:H])
        f = _sigmoid(gates[:, H:2 * H])
        g = jnp.tanh(gates[:, 2 * H:3 * H])
        o = _sigmoid(gates[:, 3 * H:4 * H])
        c = f * c + i * g
        h = o * jnp.tanh(c)
        return (h, c), h

    init = (jnp.zeros((B, H), jnp.float32), jnp.zeros((B, H), jnp.float32))
    _, hs = lax.scan(step, init, xs)
    return hs[::-1] if reverse else hs


def discriminator_ref(x, params):
    a = x
    for l in range(NUM_LAYERS):
        p = params["lstm"][l]
        hf = _lstm_dir_ref(a, p["fwd"]["w_ih"], p["fwd"]["w_hh"],
                           p["fwd"]["b_ih"], p["fwd"]["b_hh"], False)
        hb = _lstm_dir_ref(a, p["bwd"]["w_ih"], p["bwd"]["w_hh"],
                           p["bwd"]["b_ih"], p["bwd"]["b_hh"], True)
        a = jnp.concatenate([hf, hb], axis=-1)
    S, B, H2 = a.shape
    out = _sigmoid(a.reshape(S * B, H2) @ params["lin"]["w"].T + params["lin"]["b"])
    return out.reshape(S, B, -1)


# ---------------- deterministic parameter init (PyTorch-style uniform) ----------------
def init_params(key):
    k = 1.0 / jnp.sqrt(HIDDEN_DIM)

    def uni(key, shape, bound):
        return jax.random.uniform(key, shape, jnp.float32, -bound, bound)

    params = {"lstm": []}
    for l in range(NUM_LAYERS):
        d_in = INPUT_DIM if l == 0 else 2 * HIDDEN_DIM
        layer = {}
        for d in ("fwd", "bwd"):
            key, k1, k2, k3, k4 = jax.random.split(key, 5)
            layer[d] = {
                "w_ih": uni(k1, (4 * HIDDEN_DIM, d_in), k),
                "w_hh": uni(k2, (4 * HIDDEN_DIM, HIDDEN_DIM), k),
                "b_ih": uni(k3, (4 * HIDDEN_DIM,), k),
                "b_hh": uni(k4, (4 * HIDDEN_DIM,), k),
            }
        params["lstm"].append(layer)
    key, k1, k2 = jax.random.split(key, 3)
    kl = 1.0 / jnp.sqrt(2 * HIDDEN_DIM)
    params["lin"] = {
        "w": uni(k1, (OUTPUT_DIM, 2 * HIDDEN_DIM), kl),
        "b": uni(k2, (OUTPUT_DIM,), kl),
    }
    return params


if __name__ == "__main__":
    key = jax.random.PRNGKey(0)
    key, k_in = jax.random.split(key)
    x = jax.random.normal(k_in, (SEQ, BATCH, INPUT_DIM), jnp.float32)
    params = init_params(key)
    prepped = prepare_params(params)

    out = discriminator_forward(x, prepped)
    out = jax.block_until_ready(out)

    ref = discriminator_ref(x, params)
    assert out.shape == (SEQ, BATCH, OUTPUT_DIM), out.shape
    assert jnp.allclose(out, ref, rtol=1e-4, atol=1e-4), "mismatch vs pure-JAX reference"

    print("KERNEL_OK")
</pallas_src>

<mosaic_0001>
module attributes {stable_mosaic.version = 11 : i64} {
  func.func @_fused_lstm_kernel(%arg0: memref<16x16xf32, #tpu.memory_space<vmem>>, %arg1: memref<16x256xf32, #tpu.memory_space<vmem>>, %arg2: memref<1x256xf32, #tpu.memory_space<vmem>>, %arg3: memref<32x128xf32, #tpu.memory_space<vmem>>, %arg4: memref<32x128xf32, #tpu.memory_space<vmem>>, %arg5: memref<64x256xf32, #tpu.memory_space<vmem>>, %arg6: memref<1x256xf32, #tpu.memory_space<vmem>>, %arg7: memref<32x128xf32, #tpu.memory_space<vmem>>, %arg8: memref<32x128xf32, #tpu.memory_space<vmem>>, %arg9: memref<64x8xf32, #tpu.memory_space<vmem>>, %arg10: memref<1x8xf32, #tpu.memory_space<vmem>>, %arg11: memref<16x8xf32, #tpu.memory_space<vmem>>, %arg12: memref<16x64xf32, #tpu.memory_space<vmem>>) attributes {dimension_semantics = [], scalar_prefetch = 0 : i64, scratch_operands = 1 : i64, tpu.core_type = #tpu.core_type<tc>} {
    %c0 = arith.constant 0 : index
    %c0_0 = arith.constant 0 : index
    %0 = vector.load %arg0[%c0, %c0_0] : memref<16x16xf32, #tpu.memory_space<vmem>>, vector<16x16xf32>
    %c0_1 = arith.constant 0 : index
    %c0_2 = arith.constant 0 : index
    %1 = vector.load %arg1[%c0_1, %c0_2] : memref<16x256xf32, #tpu.memory_space<vmem>>, vector<16x256xf32>
    %cst = arith.constant dense<0.000000e+00> : vector<16x256xf32>
    %2 = tpu.matmul %0, %1, %cst {dimension_numbers = #tpu.dot_dimension_numbers<[1], [0], [0], [1], [0, 0, 1, 1], [], []>} : vector<16x16xf32>, vector<16x256xf32>, vector<16x256xf32> -> vector<16x256xf32>
    %c0_3 = arith.constant 0 : index
    %c0_4 = arith.constant 0 : index
    %3 = vector.load %arg2[%c0_3, %c0_4] : memref<1x256xf32, #tpu.memory_space<vmem>>, vector<1x256xf32>
    %4 = vector.broadcast %3 : vector<1x256xf32> to vector<16x256xf32>
    %5 = arith.addf %2, %4 : vector<16x256xf32>
    %c0_5 = arith.constant 0 : index
    %c0_6 = arith.constant 0 : index
    %6 = vector.load %arg3[%c0_5, %c0_6] : memref<32x128xf32, #tpu.memory_space<vmem>>, vector<32x128xf32>
    %c0_7 = arith.constant 0 : index
    %c0_8 = arith.constant 0 : index
    %7 = vector.load %arg4[%c0_7, %c0_8] : memref<32x128xf32, #tpu.memory_space<vmem>>, vector<32x128xf32>
    %cst_9 = arith.constant 0.000000e+00 : f32
    %8 = vector.broadcast %cst_9 : f32 to vector<2x32xf32>
    %cst_10 = arith.constant 0.000000e+00 : f32
    %9 = vector.broadcast %cst_10 : f32 to vector<2x32xf32>
    %cst_11 = arith.constant 0.000000e+00 : f32
    %10 = vector.broadcast %cst_11 : f32 to vector<2x32xf32>
    %cst_12 = arith.constant 0.000000e+00 : f32
    %11 = vector.broadcast %cst_12 : f32 to vector<2x32xf32>
    %12 = vector.extract_strided_slice %5 {offsets = [0, 0], sizes = [2, 128], strides = [1, 1]} : vector<16x256xf32> to vector<2x128xf32>
    %cst_13 = arith.constant dense<0.000000e+00> : vector<2x128xf32>
    %13 = tpu.matmul %8, %6, %cst_13 {dimension_numbers = #tpu.dot_dimension_numbers<[1], [0], [0], [1], [0, 0, 1, 1], [], []>} : vector<2x32xf32>, vector<32x128xf32>, vector<2x128xf32> -> vector<2x128xf32>
    %14 = arith.addf %12, %13 : vector<2x128xf32>
    %15 = vector.extract_strided_slice %5 {offsets = [14, 128], sizes = [2, 128], strides = [1, 1]} : vector<16x256xf32> to vector<2x128xf32>
    %cst_14 = arith.constant dense<0.000000e+00> : vector<2x128xf32>
    %16 = tpu.matmul %10, %7, %cst_14 {dimension_numbers = #tpu.dot_dimension_numbers<[1], [0], [0], [1], [0, 0, 1, 1], [], []>} : vector<2x32xf32>, vector<32x128xf32>, vector<2x128xf32> -> vector<2x128xf32>
    %17 = arith.addf %15, %16 : vector<2x128xf32>
    %18 = vector.extract_strided_slice %14 {offsets = [0, 0], sizes = [2, 32], strides = [1, 1]} : vector<2x128xf32> to vector<2x32xf32>
    %cst_15 = arith.constant 0.000000e+00 : f32
    %19 = vector.broadcast %cst_15 : f32 to vector<2x32xf32>
    %20 = arith.subf %19, %18 : vector<2x32xf32>
    %21 = math.exp %20 : vector<2x32xf32>
    %cst_16 = arith.constant 1.000000e+00 : f32
    %22 = vector.broadcast %cst_16 : f32 to vector<2x32xf32>
    %23 = arith.addf %22, %21 : vector<2x32xf32>
    %cst_17 = arith.constant 1.000000e+00 : f32
    %24 = vector.broadcast %cst_17 : f32 to vector<2x32xf32>
    %25 = arith.divf %24, %23 : vector<2x32xf32>
    %26 = vector.extract_strided_slice %14 {offsets = [0, 32], sizes = [2, 32], strides = [1, 1]} : vector<2x128xf32> to vector<2x32xf32>
    %cst_18 = arith.constant 0.000000e+00 : f32
    %27 = vector.broadcast %cst_18 : f32 to vector<2x32xf32>
    %28 = arith.subf %27, %26 : vector<2x32xf32>
    %29 = math.exp %28 : vector<2x32xf32>
    %cst_19 = arith.constant 1.000000e+00 : f32
    %30 = vector.broadcast %cst_19 : f32 to vector<2x32xf32>
    %31 = arith.addf %30, %29 : vector<2x32xf32>
    %cst_20 = arith.constant 1.000000e+00 : f32
    %32 = vector.broadcast %cst_20 : f32 to vector<2x32xf32>
    %33 = arith.divf %32, %31 : vector<2x32xf32>
    %34 = vector.extract_strided_slice %14 {offsets = [0, 64], sizes = [2, 32], strides = [1, 1]} : vector<2x128xf32> to vector<2x32xf32>
    %35 = math.tanh %34 : vector<2x32xf32>
    %36 = vector.extract_strided_slice %14 {offsets = [0, 96], sizes = [2, 32], strides = [1, 1]} : vector<2x128xf32> to vector<2x32xf32>
    %cst_21 = arith.constant 0.000000e+00 : f32
    %37 = vector.broadcast %cst_21 : f32 to vector<2x32xf32>
    %38 = arith.subf %37, %36 : vector<2x32xf32>
    %39 = math.exp %38 : vector<2x32xf32>
    %cst_22 = arith.constant 1.000000e+00 : f32
    %40 = vector.broadcast %cst_22 : f32 to vector<2x32xf32>
    %41 = arith.addf %40, %39 : vector<2x32xf32>
    %cst_23 = arith.constant 1.000000e+00 : f32
    %42 = vector.broadcast %cst_23 : f32 to vector<2x32xf32>
    %43 = arith.divf %42, %41 : vector<2x32xf32>
    %44 = arith.mulf %33, %9 : vector<2x32xf32>
    %45 = arith.mulf %25, %35 : vector<2x32xf32>
    %46 = arith.addf %44, %45 : vector<2x32xf32>
    %47 = math.tanh %46 : vector<2x32xf32>
    %48 = arith.mulf %43, %47 : vector<2x32xf32>
    %49 = vector.extract_strided_slice %17 {offsets = [0, 0], sizes = [2, 32], strides = [1, 1]} : vector<2x128xf32> to vector<2x32xf32>
    %cst_24 = arith.constant 0.000000e+00 : f32
    %50 = vector.broadcast %cst_24 : f32 to vector<2x32xf32>
    %51 = arith.subf %50, %49 : vector<2x32xf32>
    %52 = math.exp %51 : vector<2x32xf32>
    %cst_25 = arith.constant 1.000000e+00 : f32
    %53 = vector.broadcast %cst_25 : f32 to vector<2x32xf32>
    %54 = arith.addf %53, %52 : vector<2x32xf32>
    %cst_26 = arith.constant 1.000000e+00 : f32
    %55 = vector.broadcast %cst_26 : f32 to vector<2x32xf32>
    %56 = arith.divf %55, %54 : vector<2x32xf32>
    %57 = vector.extract_strided_slice %17 {offsets = [0, 32], sizes = [2, 32], strides = [1, 1]} : vector<2x128xf32> to vector<2x32xf32>
    %cst_27 = arith.constant 0.000000e+00 : f32
    %58 = vector.broadcast %cst_27 : f32 to vector<2x32xf32>
    %59 = arith.subf %58, %57 : vector<2x32xf32>
    %60 = math.exp %59 : vector<2x32xf32>
    %cst_28 = arith.constant 1.000000e+00 : f32
    %61 = vector.broadcast %cst_28 : f32 to vector<2x32xf32>
    %62 = arith.addf %61, %60 : vector<2x32xf32>
    %cst_29 = arith.constant 1.000000e+00 : f32
    %63 = vector.broadcast %cst_29 : f32 to vector<2x32xf32>
    %64 = arith.divf %63, %62 : vector<2x32xf32>
    %65 = vector.extract_strided_slice %17 {offsets = [0, 64], sizes = [2, 32], strides = [1, 1]} : vector<2x128xf32> to vector<2x32xf32>
    %66 = math.tanh %65 : vector<2x32xf32>
    %67 = vector.extract_strided_slice %17 {offsets = [0, 96], sizes = [2, 32], strides = [1, 1]} : vector<2x128xf32> to vector<2x32xf32>
    %cst_30 = arith.constant 0.000000e+00 : f32
    %68 = vector.broadcast %cst_30 : f32 to vector<2x32xf32>
    %69 = arith.subf %68, %67 : vector<2x32xf32>
    %70 = math.exp %69 : vector<2x32xf32>
    %cst_31 = arith.constant 1.000000e+00 : f32
    %71 = vector.broadcast %cst_31 : f32 to vector<2x32xf32>
    %72 = arith.addf %71, %70 : vector<2x32xf32>
    %cst_32 = arith.constant 1.000000e+00 : f32
    %73 = vector.broadcast %cst_32 : f32 to vector<2x32xf32>
    %74 = arith.divf %73, %72 : vector<2x32xf32>
    %75 = arith.mulf %64, %11 : vector<2x32xf32>
    %76 = arith.mulf %56, %66 : vector<2x32xf32>
    %77 = arith.addf %75, %76 : vector<2x32xf32>
    %78 = math.tanh %77 : vector<2x32xf32>
    %79 = arith.mulf %74, %78 : vector<2x32xf32>
    %c0_33 = arith.constant 0 : index
    %c0_34 = arith.constant 0 : index
    %80 = vector.load %arg12[%c0_33, %c0_34] : memref<16x64xf32, #tpu.memory_space<vmem>>, vector<2x32xf32>
    tpu.vector_store %arg12[%c0_33, %c0_34], %48 {strides = array<i32>} : memref<16x64xf32, #tpu.memory_space<vmem>>, vector<2x32xf32>,
    %c14 = arith.constant 14 : index
    %c32 = arith.constant 32 : index
    %81 = vector.load %arg12[%c14, %c32] : memref<16x64xf32, #tpu.memory_space<vmem>>, vector<2x32xf32>
    tpu.vector_store %arg12[%c14, %c32], %79 {strides = array<i32>} : memref<16x64xf32, #tpu.memory_space<vmem>>, vector<2x32xf32>,
    %82 = vector.extract_strided_slice %5 {offsets = [2, 0], sizes = [2, 128], strides = [1, 1]} : vector<16x256xf32> to vector<2x128xf32>
    %cst_35 = arith.constant dense<0.000000e+00> : vector<2x128xf32>
    %83 = tpu.matmul %48, %6, %cst_35 {dimension_numbers = #tpu.dot_dimension_numbers<[1], [0], [0], [1], [0, 0, 1, 1], [], []>} : vector<2x32xf32>, vector<32x128xf32>, vector<2x128xf32> -> vector<2x128xf32>
    %84 = arith.addf %82, %83 : vector<2x128xf32>
    %85 = vector.extract_strided_slice %5 {offsets = [12, 128], sizes = [2, 128], strides = [1, 1]} : vector<16x256xf32> to vector<2x128xf32>
    %cst_36 = arith.constant dense<0.000000e+00> : vector<2x128xf32>
    %86 = tpu.matmul %79, %7, %cst_36 {dimension_numbers = #tpu.dot_dimension_numbers<[1], [0], [0], [1], [0, 0, 1, 1], [], []>} : vector<2x32xf32>, vector<32x128xf32>, vector<2x128xf32> -> vector<2x128xf32>
    %87 = arith.addf %85, %86 : vector<2x128xf32>
    %88 = vector.extract_strided_slice %84 {offsets = [0, 0], sizes = [2, 32], strides = [1, 1]} : vector<2x128xf32> to vector<2x32xf32>
    %cst_37 = arith.constant 0.000000e+00 : f32
    %89 = vector.broadcast %cst_37 : f32 to vector<2x32xf32>
    %90 = arith.subf %89, %88 : vector<2x32xf32>
    %91 = math.exp %90 : vector<2x32xf32>
    %cst_38 = arith.constant 1.000000e+00 : f32
    %92 = vector.broadcast %cst_38 : f32 to vector<2x32xf32>
    %93 = arith.addf %92, %91 : vector<2x32xf32>
    %cst_39 = arith.constant 1.000000e+00 : f32
    %94 = vector.broadcast %cst_39 : f32 to vector<2x32xf32>
    %95 = arith.divf %94, %93 : vector<2x32xf32>
    %96 = vector.extract_strided_slice %84 {offsets = [0, 32], sizes = [2, 32], strides = [1, 1]} : vector<2x128xf32> to vector<2x32xf32>
    %cst_40 = arith.constant 0.000000e+00 : f32
    %97 = vector.broadcast %cst_40 : f32 to vector<2x32xf32>
    %98 = arith.subf %97, %96 : vector<2x32xf32>
    %99 = math.exp %98 : vector<2x32xf32>
    %cst_41 = arith.constant 1.000000e+00 : f32
    %100 = vector.broadcast %cst_41 : f32 to vector<2x32xf32>
    %101 = arith.addf %100, %99 : vector<2x32xf32>
    %cst_42 = arith.constant 1.000000e+00 : f32
    %102 = vector.broadcast %cst_42 : f32 to vector<2x32xf32>
    %103 = arith.divf %102, %101 : vector<2x32xf32>
    %104 = vector.extract_strided_slice %84 {offsets = [0, 64], sizes = [2, 32], strides = [1, 1]} : vector<2x128xf32> to vector<2x32xf32>
    %105 = math.tanh %104 : vector<2x32xf32>
    %106 = vector.extract_strided_slice %84 {offsets = [0, 96], sizes = [2, 32], strides = [1, 1]} : vector<2x128xf32> to vector<2x32xf32>
    %cst_43 = arith.constant 0.000000e+00 : f32
    %107 = vector.broadcast %cst_43 : f32 to vector<2x32xf32>
    %108 = arith.subf %107, %106 : vector<2x32xf32>
    %109 = math.exp %108 : vector<2x32xf32>
    %cst_44 = arith.constant 1.000000e+00 : f32
    %110 = vector.broadcast %cst_44 : f32 to vector<2x32xf32>
    %111 = arith.addf %110, %109 : vector<2x32xf32>
    %cst_45 = arith.constant 1.000000e+00 : f32
    %112 = vector.broadcast %cst_45 : f32 to vector<2x32xf32>
    %113 = arith.divf %112, %111 : vector<2x32xf32>
    %114 = arith.mulf %103, %46 : vector<2x32xf32>
    %115 = arith.mulf %95, %105 : vector<2x32xf32>
    %116 = arith.addf %114, %115 : vector<2x32xf32>
    %117 = math.tanh %116 : vector<2x32xf32>
    %118 = arith.mulf %113, %117 : vector<2x32xf32>
    %119 = vector.extract_strided_slice %87 {offsets = [0, 0], sizes = [2, 32], strides = [1, 1]} : vector<2x128xf32> to vector<2x32xf32>
    %cst_46 = arith.constant 0.000000e+00 : f32
    %120 = vector.broadcast %cst_46 : f32 to vector<2x32xf32>
    %121 = arith.subf %120, %119 : vector<2x32xf32>
    %122 = math.exp %121 : vector<2x32xf32>
    %cst_47 = arith.constant 1.000000e+00 : f32
    %123 = vector.broadcast %cst_47 : f32 to vector<2x32xf32>
    %124 = arith.addf %123, %122 : vector<2x32xf32>
    %cst_48 = arith.constant 1.000000e+00 : f32
    %125 = vector.broadcast %cst_48 : f32 to vector<2x32xf32>
    %126 = arith.divf %125, %124 : vector<2x32xf32>
    %127 = vector.extract_strided_slice %87 {offsets = [0, 32], sizes = [2, 32], strides = [1, 1]} : vector<2x128xf32> to vector<2x32xf32>
    %cst_49 = arith.constant 0.000000e+00 : f32
    %128 = vector.broadcast %cst_49 : f32 to vector<2x32xf32>
    %129 = arith.subf %128, %127 : vector<2x32xf32>
    %130 = math.exp %129 : vector<2x32xf32>
    %cst_50 = arith.constant 1.000000e+00 : f32
    %131 = vector.broadcast %cst_50 : f32 to vector<2x32xf32>
    %132 = arith.addf %131, %130 : vector<2x32xf32>
    %cst_51 = arith.constant 1.000000e+00 : f32
    %133 = vector.broadcast %cst_51 : f32 to vector<2x32xf32>
    %134 = arith.divf %133, %132 : vector<2x32xf32>
    %135 = vector.extract_strided_slice %87 {offsets = [0, 64], sizes = [2, 32], strides = [1, 1]} : vector<2x128xf32> to vector<2x32xf32>
    %136 = math.tanh %135 : vector<2x32xf32>
    %137 = vector.extract_strided_slice %87 {offsets = [0, 96], sizes = [2, 32], strides = [1, 1]} : vector<2x128xf32> to vector<2x32xf32>
    %cst_52 = arith.constant 0.000000e+00 : f32
    %138 = vector.broadcast %cst_52 : f32 to vector<2x32xf32>
    %139 = arith.subf %138, %137 : vector<2x32xf32>
    %140 = math.exp %139 : vector<2x32xf32>
    %cst_53 = arith.constant 1.000000e+00 : f32
    %141 = vector.broadcast %cst_53 : f32 to vector<2x32xf32>
    %142 = arith.addf %141, %140 : vector<2x32xf32>
    %cst_54 = arith.constant 1.000000e+00 : f32
    %143 = vector.broadcast %cst_54 : f32 to vector<2x32xf32>
    %144 = arith.divf %143, %142 : vector<2x32xf32>
    %145 = arith.mulf %134, %77 : vector<2x32xf32>
    %146 = arith.mulf %126, %136 : vector<2x32xf32>
    %147 = arith.addf %145, %146 : vector<2x32xf32>
    %148 = math.tanh %147 : vector<2x32xf32>
    %149 = arith.mulf %144, %148 : vector<2x32xf32>
    %c2 = arith.constant 2 : index
    %c0_55 = arith.constant 0 : index
    %150 = vector.load %arg12[%c2, %c0_55] : memref<16x64xf32, #tpu.memory_space<vmem>>, vector<2x32xf32>
    tpu.vector_store %arg12[%c2, %c0_55], %118 {strides = array<i32>} : memref<16x64xf32, #tpu.memory_space<vmem>>, vector<2x32xf32>,
    %c12 = arith.constant 12 : index
    %c32_56 = arith.constant 32 : index
    %151 = vector.load %arg12[%c12, %c32_56] : memref<16x64xf32, #tpu.memory_space<vmem>>, vector<2x32xf32>
    tpu.vector_store %arg12[%c12, %c32_56], %149 {strides = array<i32>} : memref<16x64xf32, #tpu.memory_space<vmem>>, vector<2x32xf32>,
    %152 = vector.extract_strided_slice %5 {offsets = [4, 0], sizes = [2, 128], strides = [1, 1]} : vector<16x256xf32> to vector<2x128xf32>
    %cst_57 = arith.constant dense<0.000000e+00> : vector<2x128xf32>
    %153 = tpu.matmul %118, %6, %cst_57 {dimension_numbers = #tpu.dot_dimension_numbers<[1], [0], [0], [1], [0, 0, 1, 1], [], []>} : vector<2x32xf32>, vector<32x128xf32>, vector<2x128xf32> -> vector<2x128xf32>
    %154 = arith.addf %152, %153 : vector<2x128xf32>
    %155 = vector.extract_strided_slice %5 {offsets = [10, 128], sizes = [2, 128], strides = [1, 1]} : vector<16x256xf32> to vector<2x128xf32>
    %cst_58 = arith.constant dense<0.000000e+00> : vector<2x128xf32>
    %156 = tpu.matmul %149, %7, %cst_58 {dimension_numbers = #tpu.dot_dimension_numbers<[1], [0], [0], [1], [0, 0, 1, 1], [], []>} : vector<2x32xf32>, vector<32x128xf32>, vector<2x128xf32> -> vector<2x128xf32>
    %157 = arith.addf %155, %156 : vector<2x128xf32>
    %158 = vector.extract_strided_slice %154 {offsets = [0, 0], sizes = [2, 32], strides = [1, 1]} : vector<2x128xf32> to vector<2x32xf32>
    %cst_59 = arith.constant 0.000000e+00 : f32
    %159 = vector.broadcast %cst_59 : f32 to vector<2x32xf32>
    %160 = arith.subf %159, %158 : vector<2x32xf32>
    %161 = math.exp %160 : vector<2x32xf32>
    %cst_60 = arith.constant 1.000000e+00 : f32
    %162 = vector.broadcast %cst_60 : f32 to vector<2x32xf32>
    %163 = arith.addf %162, %161 : vector<2x32xf32>
    %cst_61 = arith.constant 1.000000e+00 : f32
    %164 = vector.broadcast %cst_61 : f32 to vector<2x32xf32>
    %165 = arith.divf %164, %163 : vector<2x32xf32>
    %166 = vector.extract_strided_slice %154 {offsets = [0, 32], sizes = [2, 32], strides = [1, 1]} : vector<2x128xf32> to vector<2x32xf32>
    %cst_62 = arith.constant 0.000000e+00 : f32
    %167 = vector.broadcast %cst_62 : f32 to vector<2x32xf32>
    %168 = arith.subf %167, %166 : vector<2x32xf32>
    %169 = math.exp %168 : vector<2x32xf32>
    %cst_63 = arith.constant 1.000000e+00 : f32
    %170 = vector.broadcast %cst_63 : f32 to vector<2x32xf32>
    %171 = arith.addf %170, %169 : vector<2x32xf32>
    %cst_64 = arith.constant 1.000000e+00 : f32
    %172 = vector.broadcast %cst_64 : f32 to vector<2x32xf32>
    %173 = arith.divf %172, %171 : vector<2x32xf32>
    %174 = vector.extract_strided_slice %154 {offsets = [0, 64], sizes = [2, 32], strides = [1, 1]} : vector<2x128xf32> to vector<2x32xf32>
    %175 = math.tanh %174 : vector<2x32xf32>
    %176 = vector.extract_strided_slice %154 {offsets = [0, 96], sizes = [2, 32], strides = [1, 1]} : vector<2x128xf32> to vector<2x32xf32>
    %cst_65 = arith.constant 0.000000e+00 : f32
    %177 = vector.broadcast %cst_65 : f32 to vector<2x32xf32>
    %178 = arith.subf %177, %176 : vector<2x32xf32>
    %179 = math.exp %178 : vector<2x32xf32>
    %cst_66 = arith.constant 1.000000e+00 : f32
    %180 = vector.broadcast %cst_66 : f32 to vector<2x32xf32>
    %181 = arith.addf %180, %179 : vector<2x32xf32>
    %cst_67 = arith.constant 1.000000e+00 : f32
    %182 = vector.broadcast %cst_67 : f32 to vector<2x32xf32>
    %183 = arith.divf %182, %181 : vector<2x32xf32>
    %184 = arith.mulf %173, %116 : vector<2x32xf32>
    %185 = arith.mulf %165, %175 : vector<2x32xf32>
    %186 = arith.addf %184, %185 : vector<2x32xf32>
    %187 = math.tanh %186 : vector<2x32xf32>
    %188 = arith.mulf %183, %187 : vector<2x32xf32>
    %189 = vector.extract_strided_slice %157 {offsets = [0, 0], sizes = [2, 32], strides = [1, 1]} : vector<2x128xf32> to vector<2x32xf32>
    %cst_68 = arith.constant 0.000000e+00 : f32
    %190 = vector.broadcast %cst_68 : f32 to vector<2x32xf32>
    %191 = arith.subf %190, %189 : vector<2x32xf32>
    %192 = math.exp %191 : vector<2x32xf32>
    %cst_69 = arith.constant 1.000000e+00 : f32
    %193 = vector.broadcast %cst_69 : f32 to vector<2x32xf32>
    %194 = arith.addf %193, %192 : vector<2x32xf32>
    %cst_70 = arith.constant 1.000000e+00 : f32
    %195 = vector.broadcast %cst_70 : f32 to vector<2x32xf32>
    %196 = arith.divf %195, %194 : vector<2x32xf32>
    %197 = vector.extract_strided_slice %157 {offsets = [0, 32], sizes = [2, 32], strides = [1, 1]} : vector<2x128xf32> to vector<2x32xf32>
    %cst_71 = arith.constant 0.000000e+00 : f32
    %198 = vector.broadcast %cst_71 : f32 to vector<2x32xf32>
    %199 = arith.subf %198, %197 : vector<2x32xf32>
    %200 = math.exp %199 : vector<2x32xf32>
    %cst_72 = arith.constant 1.000000e+00 : f32
    %201 = vector.broadcast %cst_72 : f32 to vector<2x32xf32>
    %202 = arith.addf %201, %200 : vector<2x32xf32>
    %cst_73 = arith.constant 1.000000e+00 : f32
    %203 = vector.broadcast %cst_73 : f32 to vector<2x32xf32>
    %204 = arith.divf %203, %202 : vector<2x32xf32>
    %205 = vector.extract_strided_slice %157 {offsets = [0, 64], sizes = [2, 32], strides = [1, 1]} : vector<2x128xf32> to vector<2x32xf32>
    %206 = math.tanh %205 : vector<2x32xf32>
    %207 = vector.extract_strided_slice %157 {offsets = [0, 96], sizes = [2, 32], strides = [1, 1]} : vector<2x128xf32> to vector<2x32xf32>
    %cst_74 = arith.constant 0.000000e+00 : f32
    %208 = vector.broadcast %cst_74 : f32 to vector<2x32xf32>
    %209 = arith.subf %208, %207 : vector<2x32xf32>
    %210 = math.exp %209 : vector<2x32xf32>
    %cst_75 = arith.constant 1.000000e+00 : f32
    %211 = vector.broadcast %cst_75 : f32 to vector<2x32xf32>
    %212 = arith.addf %211, %210 : vector<2x32xf32>
    %cst_76 = arith.constant 1.000000e+00 : f32
    %213 = vector.broadcast %cst_76 : f32 to vector<2x32xf32>
    %214 = arith.divf %213, %212 : vector<2x32xf32>
    %215 = arith.mulf %204, %147 : vector<2x32xf32>
    %216 = arith.mulf %196, %206 : vector<2x32xf32>
    %217 = arith.addf %215, %216 : vector<2x32xf32>
    %218 = math.tanh %217 : vector<2x32xf32>
    %219 = arith.mulf %214, %218 : vector<2x32xf32>
    %c4 = arith.constant 4 : index
    %c0_77 = arith.constant 0 : index
    %220 = vector.load %arg12[%c4, %c0_77] : memref<16x64xf32, #tpu.memory_space<vmem>>, vector<2x32xf32>
    tpu.vector_store %arg12[%c4, %c0_77], %188 {strides = array<i32>} : memref<16x64xf32, #tpu.memory_space<vmem>>, vector<2x32xf32>,
    %c10 = arith.constant 10 : index
    %c32_78 = arith.constant 32 : index
    %221 = vector.load %arg12[%c10, %c32_78] : memref<16x64xf32, #tpu.memory_space<vmem>>, vector<2x32xf32>
    tpu.vector_store %arg12[%c10, %c32_78], %219 {strides = array<i32>} : memref<16x64xf32, #tpu.memory_space<vmem>>, vector<2x32xf32>,
    %222 = vector.extract_strided_slice %5 {offsets = [6, 0], sizes = [2, 128], strides = [1, 1]} : vector<16x256xf32> to vector<2x128xf32>
    %cst_79 = arith.constant dense<0.000000e+00> : vector<2x128xf32>
    %223 = tpu.matmul %188, %6, %cst_79 {dimension_numbers = #tpu.dot_dimension_numbers<[1], [0], [0], [1], [0, 0, 1, 1], [], []>} : vector<2x32xf32>, vector<32x128xf32>, vector<2x128xf32> -> vector<2x128xf32>
    %224 = arith.addf %222, %223 : vector<2x128xf32>
    %225 = vector.extract_strided_slice %5 {offsets = [8, 128], sizes = [2, 128], strides = [1, 1]} : vector<16x256xf32> to vector<2x128xf32>
    %cst_80 = arith.constant dense<0.000000e+00> : vector<2x128xf32>
    %226 = tpu.matmul %219, %7, %cst_80 {dimension_numbers = #tpu.dot_dimension_numbers<[1], [0], [0], [1], [0, 0, 1, 1], [], []>} : vector<2x32xf32>, vector<32x128xf32>, vector<2x128xf32> -> vector<2x128xf32>
    %227 = arith.addf %225, %226 : vector<2x128xf32>
    %228 = vector.extract_strided_slice %224 {offsets = [0, 0], sizes = [2, 32], strides = [1, 1]} : vector<2x128xf32> to vector<2x32xf32>
    %cst_81 = arith.constant 0.000000e+00 : f32
    %229 = vector.broadcast %cst_81 : f32 to vector<2x32xf32>
    %230 = arith.subf %229, %228 : vector<2x32xf32>
    %231 = math.exp %230 : vector<2x32xf32>
    %cst_82 = arith.constant 1.000000e+00 : f32
    %232 = vector.broadcast %cst_82 : f32 to vector<2x32xf32>
    %233 = arith.addf %232, %231 : vector<2x32xf32>
    %cst_83 = arith.constant 1.000000e+00 : f32
    %234 = vector.broadcast %cst_83 : f32 to vector<2x32xf32>
    %235 = arith.divf %234, %233 : vector<2x32xf32>
    %236 = vector.extract_strided_slice %224 {offsets = [0, 32], sizes = [2, 32], strides = [1, 1]} : vector<2x128xf32> to vector<2x32xf32>
    %cst_84 = arith.constant 0.000000e+00 : f32
    %237 = vector.broadcast %cst_84 : f32 to vector<2x32xf32>
    %238 = arith.subf %237, %236 : vector<2x32xf32>
    %239 = math.exp %238 : vector<2x32xf32>
    %cst_85 = arith.constant 1.000000e+00 : f32
    %240 = vector.broadcast %cst_85 : f32 to vector<2x32xf32>
    %241 = arith.addf %240, %239 : vector<2x32xf32>
    %cst_86 = arith.constant 1.000000e+00 : f32
    %242 = vector.broadcast %cst_86 : f32 to vector<2x32xf32>
    %243 = arith.divf %242, %241 : vector<2x32xf32>
    %244 = vector.extract_strided_slice %224 {offsets = [0, 64], sizes = [2, 32], strides = [1, 1]} : vector<2x128xf32> to vector<2x32xf32>
    %245 = math.tanh %244 : vector<2x32xf32>
    %246 = vector.extract_strided_slice %224 {offsets = [0, 96], sizes = [2, 32], strides = [1, 1]} : vector<2x128xf32> to vector<2x32xf32>
    %cst_87 = arith.constant 0.000000e+00 : f32
    %247 = vector.broadcast %cst_87 : f32 to vector<2x32xf32>
    %248 = arith.subf %247, %246 : vector<2x32xf32>
    %249 = math.exp %248 : vector<2x32xf32>
    %cst_88 = arith.constant 1.000000e+00 : f32
    %250 = vector.broadcast %cst_88 : f32 to vector<2x32xf32>
    %251 = arith.addf %250, %249 : vector<2x32xf32>
    %cst_89 = arith.constant 1.000000e+00 : f32
    %252 = vector.broadcast %cst_89 : f32 to vector<2x32xf32>
    %253 = arith.divf %252, %251 : vector<2x32xf32>
    %254 = arith.mulf %243, %186 : vector<2x32xf32>
    %255 = arith.mulf %235, %245 : vector<2x32xf32>
    %256 = arith.addf %254, %255 : vector<2x32xf32>
    %257 = math.tanh %256 : vector<2x32xf32>
    %258 = arith.mulf %253, %257 : vector<2x32xf32>
    %259 = vector.extract_strided_slice %227 {offsets = [0, 0], sizes = [2, 32], strides = [1, 1]} : vector<2x128xf32> to vector<2x32xf32>
    %cst_90 = arith.constant 0.000000e+00 : f32
    %260 = vector.broadcast %cst_90 : f32 to vector<2x32xf32>
    %261 = arith.subf %260, %259 : vector<2x32xf32>
    %262 = math.exp %261 : vector<2x32xf32>
    %cst_91 = arith.constant 1.000000e+00 : f32
    %263 = vector.broadcast %cst_91 : f32 to vector<2x32xf32>
    %264 = arith.addf %263, %262 : vector<2x32xf32>
    %cst_92 = arith.constant 1.000000e+00 : f32
    %265 = vector.broadcast %cst_92 : f32 to vector<2x32xf32>
    %266 = arith.divf %265, %264 : vector<2x32xf32>
    %267 = vector.extract_strided_slice %227 {offsets = [0, 32], sizes = [2, 32], strides = [1, 1]} : vector<2x128xf32> to vector<2x32xf32>
    %cst_93 = arith.constant 0.000000e+00 : f32
    %268 = vector.broadcast %cst_93 : f32 to vector<2x32xf32>
    %269 = arith.subf %268, %267 : vector<2x32xf32>
    %270 = math.exp %269 : vector<2x32xf32>
    %cst_94 = arith.constant 1.000000e+00 : f32
    %271 = vector.broadcast %cst_94 : f32 to vector<2x32xf32>
    %272 = arith.addf %271, %270 : vector<2x32xf32>
    %cst_95 = arith.constant 1.000000e+00 : f32
    %273 = vector.broadcast %cst_95 : f32 to vector<2x32xf32>
    %274 = arith.divf %273, %272 : vector<2x32xf32>
    %275 = vector.extract_strided_slice %227 {offsets = [0, 64], sizes = [2, 32], strides = [1, 1]} : vector<2x128xf32> to vector<2x32xf32>
    %276 = math.tanh %275 : vector<2x32xf32>
    %277 = vector.extract_strided_slice %227 {offsets = [0, 96], sizes = [2, 32], strides = [1, 1]} : vector<2x128xf32> to vector<2x32xf32>
    %cst_96 = arith.constant 0.000000e+00 : f32
    %278 = vector.broadcast %cst_96 : f32 to vector<2x32xf32>
    %279 = arith.subf %278, %277 : vector<2x32xf32>
    %280 = math.exp %279 : vector<2x32xf32>
    %cst_97 = arith.constant 1.000000e+00 : f32
    %281 = vector.broadcast %cst_97 : f32 to vector<2x32xf32>
    %282 = arith.addf %281, %280 : vector<2x32xf32>
    %cst_98 = arith.constant 1.000000e+00 : f32
    %283 = vector.broadcast %cst_98 : f32 to vector<2x32xf32>
    %284 = arith.divf %283, %282 : vector<2x32xf32>
    %285 = arith.mulf %274, %217 : vector<2x32xf32>
    %286 = arith.mulf %266, %276 : vector<2x32xf32>
    %287 = arith.addf %285, %286 : vector<2x32xf32>
    %288 = math.tanh %287 : vector<2x32xf32>
    %289 = arith.mulf %284, %288 : vector<2x32xf32>
    %c6 = arith.constant 6 : index
    %c0_99 = arith.constant 0 : index
    %290 = vector.load %arg12[%c6, %c0_99] : memref<16x64xf32, #tpu.memory_space<vmem>>, vector<2x32xf32>
    tpu.vector_store %arg12[%c6, %c0_99], %258 {strides = array<i32>} : memref<16x64xf32, #tpu.memory_space<vmem>>, vector<2x32xf32>,
    %c8 = arith.constant 8 : index
    %c32_100 = arith.constant 32 : index
    %291 = vector.load %arg12[%c8, %c32_100] : memref<16x64xf32, #tpu.memory_space<vmem>>, vector<2x32xf32>
    tpu.vector_store %arg12[%c8, %c32_100], %289 {strides = array<i32>} : memref<16x64xf32, #tpu.memory_space<vmem>>, vector<2x32xf32>,
    %292 = vector.extract_strided_slice %5 {offsets = [8, 0], sizes = [2, 128], strides = [1, 1]} : vector<16x256xf32> to vector<2x128xf32>
    %cst_101 = arith.constant dense<0.000000e+00> : vector<2x128xf32>
    %293 = tpu.matmul %258, %6, %cst_101 {dimension_numbers = #tpu.dot_dimension_numbers<[1], [0], [0], [1], [0, 0, 1, 1], [], []>} : vector<2x32xf32>, vector<32x128xf32>, vector<2x128xf32> -> vector<2x128xf32>
    %294 = arith.addf %292, %293 : vector<2x128xf32>
    %295 = vector.extract_strided_slice %5 {offsets = [6, 128], sizes = [2, 128], strides = [1, 1]} : vector<16x256xf32> to vector<2x128xf32>
    %cst_102 = arith.constant dense<0.000000e+00> : vector<2x128xf32>
    %296 = tpu.matmul %289, %7, %cst_102 {dimension_numbers = #tpu.dot_dimension_numbers<[1], [0], [0], [1], [0, 0, 1, 1], [], []>} : vector<2x32xf32>, vector<32x128xf32>, vector<2x128xf32> -> vector<2x128xf32>
    %297 = arith.addf %295, %296 : vector<2x128xf32>
    %298 = vector.extract_strided_slice %294 {offsets = [0, 0], sizes = [2, 32], strides = [1, 1]} : vector<2x128xf32> to vector<2x32xf32>
    %cst_103 = arith.constant 0.000000e+00 : f32
    %299 = vector.broadcast %cst_103 : f32 to vector<2x32xf32>
    %300 = arith.subf %299, %298 : vector<2x32xf32>
    %301 = math.exp %300 : vector<2x32xf32>
    %cst_104 = arith.constant 1.000000e+00 : f32
    %302 = vector.broadcast %cst_104 : f32 to vector<2x32xf32>
    %303 = arith.addf %302, %301 : vector<2x32xf32>
    %cst_105 = arith.constant 1.000000e+00 : f32
    %304 = vector.broadcast %cst_105 : f32 to vector<2x32xf32>
    %305 = arith.divf %304, %303 : vector<2x32xf32>
    %306 = vector.extract_strided_slice %294 {offsets = [0, 32], sizes = [2, 32], strides = [1, 1]} : vector<2x128xf32> to vector<2x32xf32>
    %cst_106 = arith.constant 0.000000e+00 : f32
    %307 = vector.broadcast %cst_106 : f32 to vector<2x32xf32>
    %308 = arith.subf %307, %306 : vector<2x32xf32>
    %309 = math.exp %308 : vector<2x32xf32>
    %cst_107 = arith.constant 1.000000e+00 : f32
    %310 = vector.broadcast %cst_107 : f32 to vector<2x32xf32>
    %311 = arith.addf %310, %309 : vector<2x32xf32>
    %cst_108 = arith.constant 1.000000e+00 : f32
    %312 = vector.broadcast %cst_108 : f32 to vector<2x32xf32>
    %313 = arith.divf %312, %311 : vector<2x32xf32>
    %314 = vector.extract_strided_slice %294 {offsets = [0, 64], sizes = [2, 32], strides = [1, 1]} : vector<2x128xf32> to vector<2x32xf32>
    %315 = math.tanh %314 : vector<2x32xf32>
    %316 = vector.extract_strided_slice %294 {offsets = [0, 96], sizes = [2, 32], strides = [1, 1]} : vector<2x128xf32> to vector<2x32xf32>
    %cst_109 = arith.constant 0.000000e+00 : f32
    %317 = vector.broadcast %cst_109 : f32 to vector<2x32xf32>
    %318 = arith.subf %317, %316 : vector<2x32xf32>
    %319 = math.exp %318 : vector<2x32xf32>
    %cst_110 = arith.constant 1.000000e+00 : f32
    %320 = vector.broadcast %cst_110 : f32 to vector<2x32xf32>
    %321 = arith.addf %320, %319 : vector<2x32xf32>
    %cst_111 = arith.constant 1.000000e+00 : f32
    %322 = vector.broadcast %cst_111 : f32 to vector<2x32xf32>
    %323 = arith.divf %322, %321 : vector<2x32xf32>
    %324 = arith.mulf %313, %256 : vector<2x32xf32>
    %325 = arith.mulf %305, %315 : vector<2x32xf32>
    %326 = arith.addf %324, %325 : vector<2x32xf32>
    %327 = math.tanh %326 : vector<2x32xf32>
    %328 = arith.mulf %323, %327 : vector<2x32xf32>
    %329 = vector.extract_strided_slice %297 {offsets = [0, 0], sizes = [2, 32], strides = [1, 1]} : vector<2x128xf32> to vector<2x32xf32>
    %cst_112 = arith.constant 0.000000e+00 : f32
    %330 = vector.broadcast %cst_112 : f32 to vector<2x32xf32>
    %331 = arith.subf %330, %329 : vector<2x32xf32>
    %332 = math.exp %331 : vector<2x32xf32>
    %cst_113 = arith.constant 1.000000e+00 : f32
    %333 = vector.broadcast %cst_113 : f32 to vector<2x32xf32>
    %334 = arith.addf %333, %332 : vector<2x32xf32>
    %cst_114 = arith.constant 1.000000e+00 : f32
    %335 = vector.broadcast %cst_114 : f32 to vector<2x32xf32>
    %336 = arith.divf %335, %334 : vector<2x32xf32>
    %337 = vector.extract_strided_slice %297 {offsets = [0, 32], sizes = [2, 32], strides = [1, 1]} : vector<2x128xf32> to vector<2x32xf32>
    %cst_115 = arith.constant 0.000000e+00 : f32
    %338 = vector.broadcast %cst_115 : f32 to vector<2x32xf32>
    %339 = arith.subf %338, %337 : vector<2x32xf32>
    %340 = math.exp %339 : vector<2x32xf32>
    %cst_116 = arith.constant 1.000000e+00 : f32
    %341 = vector.broadcast %cst_116 : f32 to vector<2x32xf32>
    %342 = arith.addf %341, %340 : vector<2x32xf32>
    %cst_117 = arith.constant 1.000000e+00 : f32
    %343 = vector.broadcast %cst_117 : f32 to vector<2x32xf32>
    %344 = arith.divf %343, %342 : vector<2x32xf32>
    %345 = vector.extract_strided_slice %297 {offsets = [0, 64], sizes = [2, 32], strides = [1, 1]} : vector<2x128xf32> to vector<2x32xf32>
    %346 = math.tanh %345 : vector<2x32xf32>
    %347 = vector.extract_strided_slice %297 {offsets = [0, 96], sizes = [2, 32], strides = [1, 1]} : vector<2x128xf32> to vector<2x32xf32>
    %cst_118 = arith.constant 0.000000e+00 : f32
    %348 = vector.broadcast %cst_118 : f32 to vector<2x32xf32>
    %349 = arith.subf %348, %347 : vector<2x32xf32>
    %350 = math.exp %349 : vector<2x32xf32>
    %cst_119 = arith.constant 1.000000e+00 : f32
    %351 = vector.broadcast %cst_119 : f32 to vector<2x32xf32>
    %352 = arith.addf %351, %350 : vector<2x32xf32>
    %cst_120 = arith.constant 1.000000e+00 : f32
    %353 = vector.broadcast %cst_120 : f32 to vector<2x32xf32>
    %354 = arith.divf %353, %352 : vector<2x32xf32>
    %355 = arith.mulf %344, %287 : vector<2x32xf32>
    %356 = arith.mulf %336, %346 : vector<2x32xf32>
    %357 = arith.addf %355, %356 : vector<2x32xf32>
    %358 = math.tanh %357 : vector<2x32xf32>
    %359 = arith.mulf %354, %358 : vector<2x32xf32>
    %c8_121 = arith.constant 8 : index
    %c0_122 = arith.constant 0 : index
    %360 = vector.load %arg12[%c8_121, %c0_122] : memref<16x64xf32, #tpu.memory_space<vmem>>, vector<2x32xf32>
    tpu.vector_store %arg12[%c8_121, %c0_122], %328 {strides = array<i32>} : memref<16x64xf32, #tpu.memory_space<vmem>>, vector<2x32xf32>,
    %c6_123 = arith.constant 6 : index
    %c32_124 = arith.constant 32 : index
    %361 = vector.load %arg12[%c6_123, %c32_124] : memref<16x64xf32, #tpu.memory_space<vmem>>, vector<2x32xf32>
    tpu.vector_store %arg12[%c6_123, %c32_124], %359 {strides = array<i32>} : memref<16x64xf32, #tpu.memory_space<vmem>>, vector<2x32xf32>,
    %362 = vector.extract_strided_slice %5 {offsets = [10, 0], sizes = [2, 128], strides = [1, 1]} : vector<16x256xf32> to vector<2x128xf32>
    %cst_125 = arith.constant dense<0.000000e+00> : vector<2x128xf32>
    %363 = tpu.matmul %328, %6, %cst_125 {dimension_numbers = #tpu.dot_dimension_numbers<[1], [0], [0], [1], [0, 0, 1, 1], [], []>} : vector<2x32xf32>, vector<32x128xf32>, vector<2x128xf32> -> vector<2x128xf32>
    %364 = arith.addf %362, %363 : vector<2x128xf32>
    %365 = vector.extract_strided_slice %5 {offsets = [4, 128], sizes = [2, 128], strides = [1, 1]} : vector<16x256xf32> to vector<2x128xf32>
    %cst_126 = arith.constant dense<0.000000e+00> : vector<2x128xf32>
    %366 = tpu.matmul %359, %7, %cst_126 {dimension_numbers = #tpu.dot_dimension_numbers<[1], [0], [0], [1], [0, 0, 1, 1], [], []>} : vector<2x32xf32>, vector<32x128xf32>, vector<2x128xf32> -> vector<2x128xf32>
    %367 = arith.addf %365, %366 : vector<2x128xf32>
    %368 = vector.extract_strided_slice %364 {offsets = [0, 0], sizes = [2, 32], strides = [1, 1]} : vector<2x128xf32> to vector<2x32xf32>
    %cst_127 = arith.constant 0.000000e+00 : f32
    %369 = vector.broadcast %cst_127 : f32 to vector<2x32xf32>
    %370 = arith.subf %369, %368 : vector<2x32xf32>
    %371 = math.exp %370 : vector<2x32xf32>
    %cst_128 = arith.constant 1.000000e+00 : f32
    %372 = vector.broadcast %cst_128 : f32 to vector<2x32xf32>
    %373 = arith.addf %372, %371 : vector<2x32xf32>
    %cst_129 = arith.constant 1.000000e+00 : f32
    %374 = vector.broadcast %cst_129 : f32 to vector<2x32xf32>
    %375 = arith.divf %374, %373 : vector<2x32xf32>
    %376 = vector.extract_strided_slice %364 {offsets = [0, 32], sizes = [2, 32], strides = [1, 1]} : vector<2x128xf32> to vector<2x32xf32>
    %cst_130 = arith.constant 0.000000e+00 : f32
    %377 = vector.broadcast %cst_130 : f32 to vector<2x32xf32>
    %378 = arith.subf %377, %376 : vector<2x32xf32>
    %379 = math.exp %378 : vector<2x32xf32>
    %cst_131 = arith.constant 1.000000e+00 : f32
    %380 = vector.broadcast %cst_131 : f32 to vector<2x32xf32>
    %381 = arith.addf %380, %379 : vector<2x32xf32>
    %cst_132 = arith.constant 1.000000e+00 : f32
    %382 = vector.broadcast %cst_132 : f32 to vector<2x32xf32>
    %383 = arith.divf %382, %381 : vector<2x32xf32>
    %384 = vector.extract_strided_slice %364 {offsets = [0, 64], sizes = [2, 32], strides = [1, 1]} : vector<2x128xf32> to vector<2x32xf32>
    %385 = math.tanh %384 : vector<2x32xf32>
    %386 = vector.extract_strided_slice %364 {offsets = [0, 96], sizes = [2, 32], strides = [1, 1]} : vector<2x128xf32> to vector<2x32xf32>
    %cst_133 = arith.constant 0.000000e+00 : f32
    %387 = vector.broadcast %cst_133 : f32 to vector<2x32xf32>
    %388 = arith.subf %387, %386 : vector<2x32xf32>
    %389 = math.exp %388 : vector<2x32xf32>
    %cst_134 = arith.constant 1.000000e+00 : f32
    %390 = vector.broadcast %cst_134 : f32 to vector<2x32xf32>
    %391 = arith.addf %390, %389 : vector<2x32xf32>
    %cst_135 = arith.constant 1.000000e+00 : f32
    %392 = vector.broadcast %cst_135 : f32 to vector<2x32xf32>
    %393 = arith.divf %392, %391 : vector<2x32xf32>
    %394 = arith.mulf %383, %326 : vector<2x32xf32>
    %395 = arith.mulf %375, %385 : vector<2x32xf32>
    %396 = arith.addf %394, %395 : vector<2x32xf32>
    %397 = math.tanh %396 : vector<2x32xf32>
    %398 = arith.mulf %393, %397 : vector<2x32xf32>
    %399 = vector.extract_strided_slice %367 {offsets = [0, 0], sizes = [2, 32], strides = [1, 1]} : vector<2x128xf32> to vector<2x32xf32>
    %cst_136 = arith.constant 0.000000e+00 : f32
    %400 = vector.broadcast %cst_136 : f32 to vector<2x32xf32>
    %401 = arith.subf %400, %399 : vector<2x32xf32>
    %402 = math.exp %401 : vector<2x32xf32>
    %cst_137 = arith.constant 1.000000e+00 : f32
    %403 = vector.broadcast %cst_137 : f32 to vector<2x32xf32>
    %404 = arith.addf %403, %402 : vector<2x32xf32>
    %cst_138 = arith.constant 1.000000e+00 : f32
    %405 = vector.broadcast %cst_138 : f32 to vector<2x32xf32>
    %406 = arith.divf %405, %404 : vector<2x32xf32>
    %407 = vector.extract_strided_slice %367 {offsets = [0, 32], sizes = [2, 32], strides = [1, 1]} : vector<2x128xf32> to vector<2x32xf32>
    %cst_139 = arith.constant 0.000000e+00 : f32
    %408 = vector.broadcast %cst_139 : f32 to vector<2x32xf32>
    %409 = arith.subf %408, %407 : vector<2x32xf32>
    %410 = math.exp %409 : vector<2x32xf32>
    %cst_140 = arith.constant 1.000000e+00 : f32
    %411 = vector.broadcast %cst_140 : f32 to vector<2x32xf32>
    %412 = arith.addf %411, %410 : vector<2x32xf32>
    %cst_141 = arith.constant 1.000000e+00 : f32
    %413 = vector.broadcast %cst_141 : f32 to vector<2x32xf32>
    %414 = arith.divf %413, %412 : vector<2x32xf32>
    %415 = vector.extract_strided_slice %367 {offsets = [0, 64], sizes = [2, 32], strides = [1, 1]} : vector<2x128xf32> to vector<2x32xf32>
    %416 = math.tanh %415 : vector<2x32xf32>
    %417 = vector.extract_strided_slice %367 {offsets = [0, 96], sizes = [2, 32], strides = [1, 1]} : vector<2x128xf32> to vector<2x32xf32>
    %cst_142 = arith.constant 0.000000e+00 : f32
    %418 = vector.broadcast %cst_142 : f32 to vector<2x32xf32>
    %419 = arith.subf %418, %417 : vector<2x32xf32>
    %420 = math.exp %419 : vector<2x32xf32>
    %cst_143 = arith.constant 1.000000e+00 : f32
    %421 = vector.broadcast %cst_143 : f32 to vector<2x32xf32>
    %422 = arith.addf %421, %420 : vector<2x32xf32>
    %cst_144 = arith.constant 1.000000e+00 : f32
    %423 = vector.broadcast %cst_144 : f32 to vector<2x32xf32>
    %424 = arith.divf %423, %422 : vector<2x32xf32>
    %425 = arith.mulf %414, %357 : vector<2x32xf32>
    %426 = arith.mulf %406, %416 : vector<2x32xf32>
    %427 = arith.addf %425, %426 : vector<2x32xf32>
    %428 = math.tanh %427 : vector<2x32xf32>
    %429 = arith.mulf %424, %428 : vector<2x32xf32>
    %c10_145 = arith.constant 10 : index
    %c0_146 = arith.constant 0 : index
    %430 = vector.load %arg12[%c10_145, %c0_146] : memref<16x64xf32, #tpu.memory_space<vmem>>, vector<2x32xf32>
    tpu.vector_store %arg12[%c10_145, %c0_146], %398 {strides = array<i32>} : memref<16x64xf32, #tpu.memory_space<vmem>>, vector<2x32xf32>,
    %c4_147 = arith.constant 4 : index
    %c32_148 = arith.constant 32 : index
    %431 = vector.load %arg12[%c4_147, %c32_148] : memref<16x64xf32, #tpu.memory_space<vmem>>, vector<2x32xf32>
    tpu.vector_store %arg12[%c4_147, %c32_148], %429 {strides = array<i32>} : memref<16x64xf32, #tpu.memory_space<vmem>>, vector<2x32xf32>,
    %432 = vector.extract_strided_slice %5 {offsets = [12, 0], sizes = [2, 128], strides = [1, 1]} : vector<16x256xf32> to vector<2x128xf32>
    %cst_149 = arith.constant dense<0.000000e+00> : vector<2x128xf32>
    %433 = tpu.matmul %398, %6, %cst_149 {dimension_numbers = #tpu.dot_dimension_numbers<[1], [0], [0], [1], [0, 0, 1, 1], [], []>} : vector<2x32xf32>, vector<32x128xf32>, vector<2x128xf32> -> vector<2x128xf32>
    %434 = arith.addf %432, %433 : vector<2x128xf32>
    %435 = vector.extract_strided_slice %5 {offsets = [2, 128], sizes = [2, 128], strides = [1, 1]} : vector<16x256xf32> to vector<2x128xf32>
    %cst_150 = arith.constant dense<0.000000e+00> : vector<2x128xf32>
    %436 = tpu.matmul %429, %7, %cst_150 {dimension_numbers = #tpu.dot_dimension_numbers<[1], [0], [0], [1], [0, 0, 1, 1], [], []>} : vector<2x32xf32>, vector<32x128xf32>, vector<2x128xf32> -> vector<2x128xf32>
    %437 = arith.addf %435, %436 : vector<2x128xf32>
    %438 = vector.extract_strided_slice %434 {offsets = [0, 0], sizes = [2, 32], strides = [1, 1]} : vector<2x128xf32> to vector<2x32xf32>
    %cst_151 = arith.constant 0.000000e+00 : f32
    %439 = vector.broadcast %cst_151 : f32 to vector<2x32xf32>
    %440 = arith.subf %439, %438 : vector<2x32xf32>
    %441 = math.exp %440 : vector<2x32xf32>
    %cst_152 = arith.constant 1.000000e+00 : f32
    %442 = vector.broadcast %cst_152 : f32 to vector<2x32xf32>
    %443 = arith.addf %442, %441 : vector<2x32xf32>
    %cst_153 = arith.constant 1.000000e+00 : f32
    %444 = vector.broadcast %cst_153 : f32 to vector<2x32xf32>
    %445 = arith.divf %444, %443 : vector<2x32xf32>
    %446 = vector.extract_strided_slice %434 {offsets = [0, 32], sizes = [2, 32], strides = [1, 1]} : vector<2x128xf32> to vector<2x32xf32>
    %cst_154 = arith.constant 0.000000e+00 : f32
    %447 = vector.broadcast %cst_154 : f32 to vector<2x32xf32>
    %448 = arith.subf %447, %446 : vector<2x32xf32>
    %449 = math.exp %448 : vector<2x32xf32>
    %cst_155 = arith.constant 1.000000e+00 : f32
    %450 = vector.broadcast %cst_155 : f32 to vector<2x32xf32>
    %451 = arith.addf %450, %449 : vector<2x32xf32>
    %cst_156 = arith.constant 1.000000e+00 : f32
    %452 = vector.broadcast %cst_156 : f32 to vector<2x32xf32>
    %453 = arith.divf %452, %451 : vector<2x32xf32>
    %454 = vector.extract_strided_slice %434 {offsets = [0, 64], sizes = [2, 32], strides = [1, 1]} : vector<2x128xf32> to vector<2x32xf32>
    %455 = math.tanh %454 : vector<2x32xf32>
    %456 = vector.extract_strided_slice %434 {offsets = [0, 96], sizes = [2, 32], strides = [1, 1]} : vector<2x128xf32> to vector<2x32xf32>
    %cst_157 = arith.constant 0.000000e+00 : f32
    %457 = vector.broadcast %cst_157 : f32 to vector<2x32xf32>
    %458 = arith.subf %457, %456 : vector<2x32xf32>
    %459 = math.exp %458 : vector<2x32xf32>
    %cst_158 = arith.constant 1.000000e+00 : f32
    %460 = vector.broadcast %cst_158 : f32 to vector<2x32xf32>
    %461 = arith.addf %460, %459 : vector<2x32xf32>
    %cst_159 = arith.constant 1.000000e+00 : f32
    %462 = vector.broadcast %cst_159 : f32 to vector<2x32xf32>
    %463 = arith.divf %462, %461 : vector<2x32xf32>
    %464 = arith.mulf %453, %396 : vector<2x32xf32>
    %465 = arith.mulf %445, %455 : vector<2x32xf32>
    %466 = arith.addf %464, %465 : vector<2x32xf32>
    %467 = math.tanh %466 : vector<2x32xf32>
    %468 = arith.mulf %463, %467 : vector<2x32xf32>
    %469 = vector.extract_strided_slice %437 {offsets = [0, 0], sizes = [2, 32], strides = [1, 1]} : vector<2x128xf32> to vector<2x32xf32>
    %cst_160 = arith.constant 0.000000e+00 : f32
    %470 = vector.broadcast %cst_160 : f32 to vector<2x32xf32>
    %471 = arith.subf %470, %469 : vector<2x32xf32>
    %472 = math.exp %471 : vector<2x32xf32>
    %cst_161 = arith.constant 1.000000e+00 : f32
    %473 = vector.broadcast %cst_161 : f32 to vector<2x32xf32>
    %474 = arith.addf %473, %472 : vector<2x32xf32>
    %cst_162 = arith.constant 1.000000e+00 : f32
    %475 = vector.broadcast %cst_162 : f32 to vector<2x32xf32>
    %476 = arith.divf %475, %474 : vector<2x32xf32>
    %477 = vector.extract_strided_slice %437 {offsets = [0, 32], sizes = [2, 32], strides = [1, 1]} : vector<2x128xf32> to vector<2x32xf32>
    %cst_163 = arith.constant 0.000000e+00 : f32
    %478 = vector.broadcast %cst_163 : f32 to vector<2x32xf32>
    %479 = arith.subf %478, %477 : vector<2x32xf32>
    %480 = math.exp %479 : vector<2x32xf32>
    %cst_164 = arith.constant 1.000000e+00 : f32
    %481 = vector.broadcast %cst_164 : f32 to vector<2x32xf32>
    %482 = arith.addf %481, %480 : vector<2x32xf32>
    %cst_165 = arith.constant 1.000000e+00 : f32
    %483 = vector.broadcast %cst_165 : f32 to vector<2x32xf32>
    %484 = arith.divf %483, %482 : vector<2x32xf32>
    %485 = vector.extract_strided_slice %437 {offsets = [0, 64], sizes = [2, 32], strides = [1, 1]} : vector<2x128xf32> to vector<2x32xf32>
    %486 = math.tanh %485 : vector<2x32xf32>
    %487 = vector.extract_strided_slice %437 {offsets = [0, 96], sizes = [2, 32], strides = [1, 1]} : vector<2x128xf32> to vector<2x32xf32>
    %cst_166 = arith.constant 0.000000e+00 : f32
    %488 = vector.broadcast %cst_166 : f32 to vector<2x32xf32>
    %489 = arith.subf %488, %487 : vector<2x32xf32>
    %490 = math.exp %489 : vector<2x32xf32>
    %cst_167 = arith.constant 1.000000e+00 : f32
    %491 = vector.broadcast %cst_167 : f32 to vector<2x32xf32>
    %492 = arith.addf %491, %490 : vector<2x32xf32>
    %cst_168 = arith.constant 1.000000e+00 : f32
    %493 = vector.broadcast %cst_168 : f32 to vector<2x32xf32>
    %494 = arith.divf %493, %492 : vector<2x32xf32>
    %495 = arith.mulf %484, %427 : vector<2x32xf32>
    %496 = arith.mulf %476, %486 : vector<2x32xf32>
    %497 = arith.addf %495, %496 : vector<2x32xf32>
    %498 = math.tanh %497 : vector<2x32xf32>
    %499 = arith.mulf %494, %498 : vector<2x32xf32>
    %c12_169 = arith.constant 12 : index
    %c0_170 = arith.constant 0 : index
    %500 = vector.load %arg12[%c12_169, %c0_170] : memref<16x64xf32, #tpu.memory_space<vmem>>, vector<2x32xf32>
    tpu.vector_store %arg12[%c12_169, %c0_170], %468 {strides = array<i32>} : memref<16x64xf32, #tpu.memory_space<vmem>>, vector<2x32xf32>,
    %c2_171 = arith.constant 2 : index
    %c32_172 = arith.constant 32 : index
    %501 = vector.load %arg12[%c2_171, %c32_172] : memref<16x64xf32, #tpu.memory_space<vmem>>, vector<2x32xf32>
    tpu.vector_store %arg12[%c2_171, %c32_172], %499 {strides = array<i32>} : memref<16x64xf32, #tpu.memory_space<vmem>>, vector<2x32xf32>,
    %502 = vector.extract_strided_slice %5 {offsets = [14, 0], sizes = [2, 128], strides = [1, 1]} : vector<16x256xf32> to vector<2x128xf32>
    %cst_173 = arith.constant dense<0.000000e+00> : vector<2x128xf32>
    %503 = tpu.matmul %468, %6, %cst_173 {dimension_numbers = #tpu.dot_dimension_numbers<[1], [0], [0], [1], [0, 0, 1, 1], [], []>} : vector<2x32xf32>, vector<32x128xf32>, vector<2x128xf32> -> vector<2x128xf32>
    %504 = arith.addf %502, %503 : vector<2x128xf32>
    %505 = vector.extract_strided_slice %5 {offsets = [0, 128], sizes = [2, 128], strides = [1, 1]} : vector<16x256xf32> to vector<2x128xf32>
    %cst_174 = arith.constant dense<0.000000e+00> : vector<2x128xf32>
    %506 = tpu.matmul %499, %7, %cst_174 {dimension_numbers = #tpu.dot_dimension_numbers<[1], [0], [0], [1], [0, 0, 1, 1], [], []>} : vector<2x32xf32>, vector<32x128xf32>, vector<2x128xf32> -> vector<2x128xf32>
    %507 = arith.addf %505, %506 : vector<2x128xf32>
    %508 = vector.extract_strided_slice %504 {offsets = [0, 0], sizes = [2, 32], strides = [1, 1]} : vector<2x128xf32> to vector<2x32xf32>
    %cst_175 = arith.constant 0.000000e+00 : f32
    %509 = vector.broadcast %cst_175 : f32 to vector<2x32xf32>
    %510 = arith.subf %509, %508 : vector<2x32xf32>
    %511 = math.exp %510 : vector<2x32xf32>
    %cst_176 = arith.constant 1.000000e+00 : f32
    %512 = vector.broadcast %cst_176 : f32 to vector<2x32xf32>
    %513 = arith.addf %512, %511 : vector<2x32xf32>
    %cst_177 = arith.constant 1.000000e+00 : f32
    %514 = vector.broadcast %cst_177 : f32 to vector<2x32xf32>
    %515 = arith.divf %514, %513 : vector<2x32xf32>
    %516 = vector.extract_strided_slice %504 {offsets = [0, 32], sizes = [2, 32], strides = [1, 1]} : vector<2x128xf32> to vector<2x32xf32>
    %cst_178 = arith.constant 0.000000e+00 : f32
    %517 = vector.broadcast %cst_178 : f32 to vector<2x32xf32>
    %518 = arith.subf %517, %516 : vector<2x32xf32>
    %519 = math.exp %518 : vector<2x32xf32>
    %cst_179 = arith.constant 1.000000e+00 : f32
    %520 = vector.broadcast %cst_179 : f32 to vector<2x32xf32>
    %521 = arith.addf %520, %519 : vector<2x32xf32>
    %cst_180 = arith.constant 1.000000e+00 : f32
    %522 = vector.broadcast %cst_180 : f32 to vector<2x32xf32>
    %523 = arith.divf %522, %521 : vector<2x32xf32>
    %524 = vector.extract_strided_slice %504 {offsets = [0, 64], sizes = [2, 32], strides = [1, 1]} : vector<2x128xf32> to vector<2x32xf32>
    %525 = math.tanh %524 : vector<2x32xf32>
    %526 = vector.extract_strided_slice %504 {offsets = [0, 96], sizes = [2, 32], strides = [1, 1]} : vector<2x128xf32> to vector<2x32xf32>
    %cst_181 = arith.constant 0.000000e+00 : f32
    %527 = vector.broadcast %cst_181 : f32 to vector<2x32xf32>
    %528 = arith.subf %527, %526 : vector<2x32xf32>
    %529 = math.exp %528 : vector<2x32xf32>
    %cst_182 = arith.constant 1.000000e+00 : f32
    %530 = vector.broadcast %cst_182 : f32 to vector<2x32xf32>
    %531 = arith.addf %530, %529 : vector<2x32xf32>
    %cst_183 = arith.constant 1.000000e+00 : f32
    %532 = vector.broadcast %cst_183 : f32 to vector<2x32xf32>
    %533 = arith.divf %532, %531 : vector<2x32xf32>
    %534 = arith.mulf %523, %466 : vector<2x32xf32>
    %535 = arith.mulf %515, %525 : vector<2x32xf32>
    %536 = arith.addf %534, %535 : vector<2x32xf32>
    %537 = math.tanh %536 : vector<2x32xf32>
    %538 = arith.mulf %533, %537 : vector<2x32xf32>
    %539 = vector.extract_strided_slice %507 {offsets = [0, 0], sizes = [2, 32], strides = [1, 1]} : vector<2x128xf32> to vector<2x32xf32>
    %cst_184 = arith.constant 0.000000e+00 : f32
    %540 = vector.broadcast %cst_184 : f32 to vector<2x32xf32>
    %541 = arith.subf %540, %539 : vector<2x32xf32>
    %542 = math.exp %541 : vector<2x32xf32>
    %cst_185 = arith.constant 1.000000e+00 : f32
    %543 = vector.broadcast %cst_185 : f32 to vector<2x32xf32>
    %544 = arith.addf %543, %542 : vector<2x32xf32>
    %cst_186 = arith.constant 1.000000e+00 : f32
    %545 = vector.broadcast %cst_186 : f32 to vector<2x32xf32>
    %546 = arith.divf %545, %544 : vector<2x32xf32>
    %547 = vector.extract_strided_slice %507 {offsets = [0, 32], sizes = [2, 32], strides = [1, 1]} : vector<2x128xf32> to vector<2x32xf32>
    %cst_187 = arith.constant 0.000000e+00 : f32
    %548 = vector.broadcast %cst_187 : f32 to vector<2x32xf32>
    %549 = arith.subf %548, %547 : vector<2x32xf32>
    %550 = math.exp %549 : vector<2x32xf32>
    %cst_188 = arith.constant 1.000000e+00 : f32
    %551 = vector.broadcast %cst_188 : f32 to vector<2x32xf32>
    %552 = arith.addf %551, %550 : vector<2x32xf32>
    %cst_189 = arith.constant 1.000000e+00 : f32
    %553 = vector.broadcast %cst_189 : f32 to vector<2x32xf32>
    %554 = arith.divf %553, %552 : vector<2x32xf32>
    %555 = vector.extract_strided_slice %507 {offsets = [0, 64], sizes = [2, 32], strides = [1, 1]} : vector<2x128xf32> to vector<2x32xf32>
    %556 = math.tanh %555 : vector<2x32xf32>
    %557 = vector.extract_strided_slice %507 {offsets = [0, 96], sizes = [2, 32], strides = [1, 1]} : vector<2x128xf32> to vector<2x32xf32>
    %cst_190 = arith.constant 0.000000e+00 : f32
    %558 = vector.broadcast %cst_190 : f32 to vector<2x32xf32>
    %559 = arith.subf %558, %557 : vector<2x32xf32>
    %560 = math.exp %559 : vector<2x32xf32>
    %cst_191 = arith.constant 1.000000e+00 : f32
    %561 = vector.broadcast %cst_191 : f32 to vector<2x32xf32>
    %562 = arith.addf %561, %560 : vector<2x32xf32>
    %cst_192 = arith.constant 1.000000e+00 : f32
    %563 = vector.broadcast %cst_192 : f32 to vector<2x32xf32>
    %564 = arith.divf %563, %562 : vector<2x32xf32>
    %565 = arith.mulf %554, %497 : vector<2x32xf32>
    %566 = arith.mulf %546, %556 : vector<2x32xf32>
    %567 = arith.addf %565, %566 : vector<2x32xf32>
    %568 = math.tanh %567 : vector<2x32xf32>
    %569 = arith.mulf %564, %568 : vector<2x32xf32>
    %c14_193 = arith.constant 14 : index
    %c0_194 = arith.constant 0 : index
    %570 = vector.load %arg12[%c14_193, %c0_194] : memref<16x64xf32, #tpu.memory_space<vmem>>, vector<2x32xf32>
    tpu.vector_store %arg12[%c14_193, %c0_194], %538 {strides = array<i32>} : memref<16x64xf32, #tpu.memory_space<vmem>>, vector<2x32xf32>,
    %c0_195 = arith.constant 0 : index
    %c32_196 = arith.constant 32 : index
    %571 = vector.load %arg12[%c0_195, %c32_196] : memref<16x64xf32, #tpu.memory_space<vmem>>, vector<2x32xf32>
    tpu.vector_store %arg12[%c0_195, %c32_196], %569 {strides = array<i32>} : memref<16x64xf32, #tpu.memory_space<vmem>>, vector<2x32xf32>,
    %c0_197 = arith.constant 0 : index
    %c0_198 = arith.constant 0 : index
    %572 = vector.load %arg12[%c0_197, %c0_198] : memref<16x64xf32, #tpu.memory_space<vmem>>, vector<16x64xf32>
    %c0_199 = arith.constant 0 : index
    %c0_200 = arith.constant 0 : index
    %573 = vector.load %arg5[%c0_199, %c0_200] : memref<64x256xf32, #tpu.memory_space<vmem>>, vector<64x256xf32>
    %cst_201 = arith.constant dense<0.000000e+00> : vector<16x256xf32>
    %574 = tpu.matmul %572, %573, %cst_201 {dimension_numbers = #tpu.dot_dimension_numbers<[1], [0], [0], [1], [0, 0, 1, 1], [], []>} : vector<16x64xf32>, vector<64x256xf32>, vector<16x256xf32> -> vector<16x256xf32>
    %c0_202 = arith.constant 0 : index
    %c0_203 = arith.constant 0 : index
    %575 = vector.load %arg6[%c0_202, %c0_203] : memref<1x256xf32, #tpu.memory_space<vmem>>, vector<1x256xf32>
    %576 = vector.broadcast %575 : vector<1x256xf32> to vector<16x256xf32>
    %577 = arith.addf %574, %576 : vector<16x256xf32>
    %c0_204 = arith.constant 0 : index
    %c0_205 = arith.constant 0 : index
    %578 = vector.load %arg7[%c0_204, %c0_205] : memref<32x128xf32, #tpu.memory_space<vmem>>, vector<32x128xf32>
    %c0_206 = arith.constant 0 : index
    %c0_207 = arith.constant 0 : index
    %579 = vector.load %arg8[%c0_206, %c0_207] : memref<32x128xf32, #tpu.memory_space<vmem>>, vector<32x128xf32>
    %cst_208 = arith.constant 0.000000e+00 : f32
    %580 = vector.broadcast %cst_208 : f32 to vector<2x32xf32>
    %cst_209 = arith.constant 0.000000e+00 : f32
    %581 = vector.broadcast %cst_209 : f32 to vector<2x32xf32>
    %cst_210 = arith.constant 0.000000e+00 : f32
    %582 = vector.broadcast %cst_210 : f32 to vector<2x32xf32>
    %cst_211 = arith.constant 0.000000e+00 : f32
    %583 = vector.broadcast %cst_211 : f32 to vector<2x32xf32>
    %584 = vector.extract_strided_slice %577 {offsets = [0, 0], sizes = [2, 128], strides = [1, 1]} : vector<16x256xf32> to vector<2x128xf32>
    %cst_212 = arith.constant dense<0.000000e+00> : vector<2x128xf32>
    %585 = tpu.matmul %580, %578, %cst_212 {dimension_numbers = #tpu.dot_dimension_numbers<[1], [0], [0], [1], [0, 0, 1, 1], [], []>} : vector<2x32xf32>, vector<32x128xf32>, vector<2x128xf32> -> vector<2x128xf32>
    %586 = arith.addf %584, %585 : vector<2x128xf32>
    %587 = vector.extract_strided_slice %577 {offsets = [14, 128], sizes = [2, 128], strides = [1, 1]} : vector<16x256xf32> to vector<2x128xf32>
    %cst_213 = arith.constant dense<0.000000e+00> : vector<2x128xf32>
    %588 = tpu.matmul %582, %579, %cst_213 {dimension_numbers = #tpu.dot_dimension_numbers<[1], [0], [0], [1], [0, 0, 1, 1], [], []>} : vector<2x32xf32>, vector<32x128xf32>, vector<2x128xf32> -> vector<2x128xf32>
    %589 = arith.addf %587, %588 : vector<2x128xf32>
    %590 = vector.extract_strided_slice %586 {offsets = [0, 0], sizes = [2, 32], strides = [1, 1]} : vector<2x128xf32> to vector<2x32xf32>
    %cst_214 = arith.constant 0.000000e+00 : f32
    %591 = vector.broadcast %cst_214 : f32 to vector<2x32xf32>
    %592 = arith.subf %591, %590 : vector<2x32xf32>
    %593 = math.exp %592 : vector<2x32xf32>
    %cst_215 = arith.constant 1.000000e+00 : f32
    %594 = vector.broadcast %cst_215 : f32 to vector<2x32xf32>
    %595 = arith.addf %594, %593 : vector<2x32xf32>
    %cst_216 = arith.constant 1.000000e+00 : f32
    %596 = vector.broadcast %cst_216 : f32 to vector<2x32xf32>
    %597 = arith.divf %596, %595 : vector<2x32xf32>
    %598 = vector.extract_strided_slice %586 {offsets = [0, 32], sizes = [2, 32], strides = [1, 1]} : vector<2x128xf32> to vector<2x32xf32>
    %cst_217 = arith.constant 0.000000e+00 : f32
    %599 = vector.broadcast %cst_217 : f32 to vector<2x32xf32>
    %600 = arith.subf %599, %598 : vector<2x32xf32>
    %601 = math.exp %600 : vector<2x32xf32>
    %cst_218 = arith.constant 1.000000e+00 : f32
    %602 = vector.broadcast %cst_218 : f32 to vector<2x32xf32>
    %603 = arith.addf %602, %601 : vector<2x32xf32>
    %cst_219 = arith.constant 1.000000e+00 : f32
    %604 = vector.broadcast %cst_219 : f32 to vector<2x32xf32>
    %605 = arith.divf %604, %603 : vector<2x32xf32>
    %606 = vector.extract_strided_slice %586 {offsets = [0, 64], sizes = [2, 32], strides = [1, 1]} : vector<2x128xf32> to vector<2x32xf32>
    %607 = math.tanh %606 : vector<2x32xf32>
    %608 = vector.extract_strided_slice %586 {offsets = [0, 96], sizes = [2, 32], strides = [1, 1]} : vector<2x128xf32> to vector<2x32xf32>
    %cst_220 = arith.constant 0.000000e+00 : f32
    %609 = vector.broadcast %cst_220 : f32 to vector<2x32xf32>
    %610 = arith.subf %609, %608 : vector<2x32xf32>
    %611 = math.exp %610 : vector<2x32xf32>
    %cst_221 = arith.constant 1.000000e+00 : f32
    %612 = vector.broadcast %cst_221 : f32 to vector<2x32xf32>
    %613 = arith.addf %612, %611 : vector<2x32xf32>
    %cst_222 = arith.constant 1.000000e+00 : f32
    %614 = vector.broadcast %cst_222 : f32 to vector<2x32xf32>
    %615 = arith.divf %614, %613 : vector<2x32xf32>
    %616 = arith.mulf %605, %581 : vector<2x32xf32>
    %617 = arith.mulf %597, %607 : vector<2x32xf32>
    %618 = arith.addf %616, %617 : vector<2x32xf32>
    %619 = math.tanh %618 : vector<2x32xf32>
    %620 = arith.mulf %615, %619 : vector<2x32xf32>
    %621 = vector.extract_strided_slice %589 {offsets = [0, 0], sizes = [2, 32], strides = [1, 1]} : vector<2x128xf32> to vector<2x32xf32>
    %cst_223 = arith.constant 0.000000e+00 : f32
    %622 = vector.broadcast %cst_223 : f32 to vector<2x32xf32>
    %623 = arith.subf %622, %621 : vector<2x32xf32>
    %624 = math.exp %623 : vector<2x32xf32>
    %cst_224 = arith.constant 1.000000e+00 : f32
    %625 = vector.broadcast %cst_224 : f32 to vector<2x32xf32>
    %626 = arith.addf %625, %624 : vector<2x32xf32>
    %cst_225 = arith.constant 1.000000e+00 : f32
    %627 = vector.broadcast %cst_225 : f32 to vector<2x32xf32>
    %628 = arith.divf %627, %626 : vector<2x32xf32>
    %629 = vector.extract_strided_slice %589 {offsets = [0, 32], sizes = [2, 32], strides = [1, 1]} : vector<2x128xf32> to vector<2x32xf32>
    %cst_226 = arith.constant 0.000000e+00 : f32
    %630 = vector.broadcast %cst_226 : f32 to vector<2x32xf32>
    %631 = arith.subf %630, %629 : vector<2x32xf32>
    %632 = math.exp %631 : vector<2x32xf32>
    %cst_227 = arith.constant 1.000000e+00 : f32
    %633 = vector.broadcast %cst_227 : f32 to vector<2x32xf32>
    %634 = arith.addf %633, %632 : vector<2x32xf32>
    %cst_228 = arith.constant 1.000000e+00 : f32
    %635 = vector.broadcast %cst_228 : f32 to vector<2x32xf32>
    %636 = arith.divf %635, %634 : vector<2x32xf32>
    %637 = vector.extract_strided_slice %589 {offsets = [0, 64], sizes = [2, 32], strides = [1, 1]} : vector<2x128xf32> to vector<2x32xf32>
    %638 = math.tanh %637 : vector<2x32xf32>
    %639 = vector.extract_strided_slice %589 {offsets = [0, 96], sizes = [2, 32], strides = [1, 1]} : vector<2x128xf32> to vector<2x32xf32>
    %cst_229 = arith.constant 0.000000e+00 : f32
    %640 = vector.broadcast %cst_229 : f32 to vector<2x32xf32>
    %641 = arith.subf %640, %639 : vector<2x32xf32>
    %642 = math.exp %641 : vector<2x32xf32>
    %cst_230 = arith.constant 1.000000e+00 : f32
    %643 = vector.broadcast %cst_230 : f32 to vector<2x32xf32>
    %644 = arith.addf %643, %642 : vector<2x32xf32>
    %cst_231 = arith.constant 1.000000e+00 : f32
    %645 = vector.broadcast %cst_231 : f32 to vector<2x32xf32>
    %646 = arith.divf %645, %644 : vector<2x32xf32>
    %647 = arith.mulf %636, %583 : vector<2x32xf32>
    %648 = arith.mulf %628, %638 : vector<2x32xf32>
    %649 = arith.addf %647, %648 : vector<2x32xf32>
    %650 = math.tanh %649 : vector<2x32xf32>
    %651 = arith.mulf %646, %650 : vector<2x32xf32>
    %c0_232 = arith.constant 0 : index
    %c0_233 = arith.constant 0 : index
    %652 = vector.load %arg12[%c0_232, %c0_233] : memref<16x64xf32, #tpu.memory_space<vmem>>, vector<2x32xf32>
    tpu.vector_store %arg12[%c0_232, %c0_233], %620 {strides = array<i32>} : memref<16x64xf32, #tpu.memory_space<vmem>>, vector<2x32xf32>,
    %c14_234 = arith.constant 14 : index
    %c32_235 = arith.constant 32 : index
    %653 = vector.load %arg12[%c14_234, %c32_235] : memref<16x64xf32, #tpu.memory_space<vmem>>, vector<2x32xf32>
    tpu.vector_store %arg12[%c14_234, %c32_235], %651 {strides = array<i32>} : memref<16x64xf32, #tpu.memory_space<vmem>>, vector<2x32xf32>,
    %654 = vector.extract_strided_slice %577 {offsets = [2, 0], sizes = [2, 128], strides = [1, 1]} : vector<16x256xf32> to vector<2x128xf32>
    %cst_236 = arith.constant dense<0.000000e+00> : vector<2x128xf32>
    %655 = tpu.matmul %620, %578, %cst_236 {dimension_numbers = #tpu.dot_dimension_numbers<[1], [0], [0], [1], [0, 0, 1, 1], [], []>} : vector<2x32xf32>, vector<32x128xf32>, vector<2x128xf32> -> vector<2x128xf32>
    %656 = arith.addf %654, %655 : vector<2x128xf32>
    %657 = vector.extract_strided_slice %577 {offsets = [12, 128], sizes = [2, 128], strides = [1, 1]} : vector<16x256xf32> to vector<2x128xf32>
    %cst_237 = arith.constant dense<0.000000e+00> : vector<2x128xf32>
    %658 = tpu.matmul %651, %579, %cst_237 {dimension_numbers = #tpu.dot_dimension_numbers<[1], [0], [0], [1], [0, 0, 1, 1], [], []>} : vector<2x32xf32>, vector<32x128xf32>, vector<2x128xf32> -> vector<2x128xf32>
    %659 = arith.addf %657, %658 : vector<2x128xf32>
    %660 = vector.extract_strided_slice %656 {offsets = [0, 0], sizes = [2, 32], strides = [1, 1]} : vector<2x128xf32> to vector<2x32xf32>
    %cst_238 = arith.constant 0.000000e+00 : f32
    %661 = vector.broadcast %cst_238 : f32 to vector<2x32xf32>
    %662 = arith.subf %661, %660 : vector<2x32xf32>
    %663 = math.exp %662 : vector<2x32xf32>
    %cst_239 = arith.constant 1.000000e+00 : f32
    %664 = vector.broadcast %cst_239 : f32 to vector<2x32xf32>
    %665 = arith.addf %664, %663 : vector<2x32xf32>
    %cst_240 = arith.constant 1.000000e+00 : f32
    %666 = vector.broadcast %cst_240 : f32 to vector<2x32xf32>
    %667 = arith.divf %666, %665 : vector<2x32xf32>
    %668 = vector.extract_strided_slice %656 {offsets = [0, 32], sizes = [2, 32], strides = [1, 1]} : vector<2x128xf32> to vector<2x32xf32>
    %cst_241 = arith.constant 0.000000e+00 : f32
    %669 = vector.broadcast %cst_241 : f32 to vector<2x32xf32>
    %670 = arith.subf %669, %668 : vector<2x32xf32>
    %671 = math.exp %670 : vector<2x32xf32>
    %cst_242 = arith.constant 1.000000e+00 : f32
    %672 = vector.broadcast %cst_242 : f32 to vector<2x32xf32>
    %673 = arith.addf %672, %671 : vector<2x32xf32>
    %cst_243 = arith.constant 1.000000e+00 : f32
    %674 = vector.broadcast %cst_243 : f32 to vector<2x32xf32>
    %675 = arith.divf %674, %673 : vector<2x32xf32>
    %676 = vector.extract_strided_slice %656 {offsets = [0, 64], sizes = [2, 32], strides = [1, 1]} : vector<2x128xf32> to vector<2x32xf32>
    %677 = math.tanh %676 : vector<2x32xf32>
    %678 = vector.extract_strided_slice %656 {offsets = [0, 96], sizes = [2, 32], strides = [1, 1]} : vector<2x128xf32> to vector<2x32xf32>
    %cst_244 = arith.constant 0.000000e+00 : f32
    %679 = vector.broadcast %cst_244 : f32 to vector<2x32xf32>
    %680 = arith.subf %679, %678 : vector<2x32xf32>
    %681 = math.exp %680 : vector<2x32xf32>
    %cst_245 = arith.constant 1.000000e+00 : f32
    %682 = vector.broadcast %cst_245 : f32 to vector<2x32xf32>
    %683 = arith.addf %682, %681 : vector<2x32xf32>
    %cst_246 = arith.constant 1.000000e+00 : f32
    %684 = vector.broadcast %cst_246 : f32 to vector<2x32xf32>
    %685 = arith.divf %684, %683 : vector<2x32xf32>
    %686 = arith.mulf %675, %618 : vector<2x32xf32>
    %687 = arith.mulf %667, %677 : vector<2x32xf32>
    %688 = arith.addf %686, %687 : vector<2x32xf32>
    %689 = math.tanh %688 : vector<2x32xf32>
    %690 = arith.mulf %685, %689 : vector<2x32xf32>
    %691 = vector.extract_strided_slice %659 {offsets = [0, 0], sizes = [2, 32], strides = [1, 1]} : vector<2x128xf32> to vector<2x32xf32>
    %cst_247 = arith.constant 0.000000e+00 : f32
    %692 = vector.broadcast %cst_247 : f32 to vector<2x32xf32>
    %693 = arith.subf %692, %691 : vector<2x32xf32>
    %694 = math.exp %693 : vector<2x32xf32>
    %cst_248 = arith.constant 1.000000e+00 : f32
    %695 = vector.broadcast %cst_248 : f32 to vector<2x32xf32>
    %696 = arith.addf %695, %694 : vector<2x32xf32>
    %cst_249 = arith.constant 1.000000e+00 : f32
    %697 = vector.broadcast %cst_249 : f32 to vector<2x32xf32>
    %698 = arith.divf %697, %696 : vector<2x32xf32>
    %699 = vector.extract_strided_slice %659 {offsets = [0, 32], sizes = [2, 32], strides = [1, 1]} : vector<2x128xf32> to vector<2x32xf32>
    %cst_250 = arith.constant 0.000000e+00 : f32
    %700 = vector.broadcast %cst_250 : f32 to vector<2x32xf32>
    %701 = arith.subf %700, %699 : vector<2x32xf32>
    %702 = math.exp %701 : vector<2x32xf32>
    %cst_251 = arith.constant 1.000000e+00 : f32
    %703 = vector.broadcast %cst_251 : f32 to vector<2x32xf32>
    %704 = arith.addf %703, %702 : vector<2x32xf32>
    %cst_252 = arith.constant 1.000000e+00 : f32
    %705 = vector.broadcast %cst_252 : f32 to vector<2x32xf32>
    %706 = arith.divf %705, %704 : vector<2x32xf32>
    %707 = vector.extract_strided_slice %659 {offsets = [0, 64], sizes = [2, 32], strides = [1, 1]} : vector<2x128xf32> to vector<2x32xf32>
    %708 = math.tanh %707 : vector<2x32xf32>
    %709 = vector.extract_strided_slice %659 {offsets = [0, 96], sizes = [2, 32], strides = [1, 1]} : vector<2x128xf32> to vector<2x32xf32>
    %cst_253 = arith.constant 0.000000e+00 : f32
    %710 = vector.broadcast %cst_253 : f32 to vector<2x32xf32>
    %711 = arith.subf %710, %709 : vector<2x32xf32>
    %712 = math.exp %711 : vector<2x32xf32>
    %cst_254 = arith.constant 1.000000e+00 : f32
    %713 = vector.broadcast %cst_254 : f32 to vector<2x32xf32>
    %714 = arith.addf %713, %712 : vector<2x32xf32>
    %cst_255 = arith.constant 1.000000e+00 : f32
    %715 = vector.broadcast %cst_255 : f32 to vector<2x32xf32>
    %716 = arith.divf %715, %714 : vector<2x32xf32>
    %717 = arith.mulf %706, %649 : vector<2x32xf32>
    %718 = arith.mulf %698, %708 : vector<2x32xf32>
    %719 = arith.addf %717, %718 : vector<2x32xf32>
    %720 = math.tanh %719 : vector<2x32xf32>
    %721 = arith.mulf %716, %720 : vector<2x32xf32>
    %c2_256 = arith.constant 2 : index
    %c0_257 = arith.constant 0 : index
    %722 = vector.load %arg12[%c2_256, %c0_257] : memref<16x64xf32, #tpu.memory_space<vmem>>, vector<2x32xf32>
    tpu.vector_store %arg12[%c2_256, %c0_257], %690 {strides = array<i32>} : memref<16x64xf32, #tpu.memory_space<vmem>>, vector<2x32xf32>,
    %c12_258 = arith.constant 12 : index
    %c32_259 = arith.constant 32 : index
    %723 = vector.load %arg12[%c12_258, %c32_259] : memref<16x64xf32, #tpu.memory_space<vmem>>, vector<2x32xf32>
    tpu.vector_store %arg12[%c12_258, %c32_259], %721 {strides = array<i32>} : memref<16x64xf32, #tpu.memory_space<vmem>>, vector<2x32xf32>,
    %724 = vector.extract_strided_slice %577 {offsets = [4, 0], sizes = [2, 128], strides = [1, 1]} : vector<16x256xf32> to vector<2x128xf32>
    %cst_260 = arith.constant dense<0.000000e+00> : vector<2x128xf32>
    %725 = tpu.matmul %690, %578, %cst_260 {dimension_numbers = #tpu.dot_dimension_numbers<[1], [0], [0], [1], [0, 0, 1, 1], [], []>} : vector<2x32xf32>, vector<32x128xf32>, vector<2x128xf32> -> vector<2x128xf32>
    %726 = arith.addf %724, %725 : vector<2x128xf32>
    %727 = vector.extract_strided_slice %577 {offsets = [10, 128], sizes = [2, 128], strides = [1, 1]} : vector<16x256xf32> to vector<2x128xf32>
    %cst_261 = arith.constant dense<0.000000e+00> : vector<2x128xf32>
    %728 = tpu.matmul %721, %579, %cst_261 {dimension_numbers = #tpu.dot_dimension_numbers<[1], [0], [0], [1], [0, 0, 1, 1], [], []>} : vector<2x32xf32>, vector<32x128xf32>, vector<2x128xf32> -> vector<2x128xf32>
    %729 = arith.addf %727, %728 : vector<2x128xf32>
    %730 = vector.extract_strided_slice %726 {offsets = [0, 0], sizes = [2, 32], strides = [1, 1]} : vector<2x128xf32> to vector<2x32xf32>
    %cst_262 = arith.constant 0.000000e+00 : f32
    %731 = vector.broadcast %cst_262 : f32 to vector<2x32xf32>
    %732 = arith.subf %731, %730 : vector<2x32xf32>
    %733 = math.exp %732 : vector<2x32xf32>
    %cst_263 = arith.constant 1.000000e+00 : f32
    %734 = vector.broadcast %cst_263 : f32 to vector<2x32xf32>
    %735 = arith.addf %734, %733 : vector<2x32xf32>
    %cst_264 = arith.constant 1.000000e+00 : f32
    %736 = vector.broadcast %cst_264 : f32 to vector<2x32xf32>
    %737 = arith.divf %736, %735 : vector<2x32xf32>
    %738 = vector.extract_strided_slice %726 {offsets = [0, 32], sizes = [2, 32], strides = [1, 1]} : vector<2x128xf32> to vector<2x32xf32>
    %cst_265 = arith.constant 0.000000e+00 : f32
    %739 = vector.broadcast %cst_265 : f32 to vector<2x32xf32>
    %740 = arith.subf %739, %738 : vector<2x32xf32>
    %741 = math.exp %740 : vector<2x32xf32>
    %cst_266 = arith.constant 1.000000e+00 : f32
    %742 = vector.broadcast %cst_266 : f32 to vector<2x32xf32>
    %743 = arith.addf %742, %741 : vector<2x32xf32>
    %cst_267 = arith.constant 1.000000e+00 : f32
    %744 = vector.broadcast %cst_267 : f32 to vector<2x32xf32>
    %745 = arith.divf %744, %743 : vector<2x32xf32>
    %746 = vector.extract_strided_slice %726 {offsets = [0, 64], sizes = [2, 32], strides = [1, 1]} : vector<2x128xf32> to vector<2x32xf32>
    %747 = math.tanh %746 : vector<2x32xf32>
    %748 = vector.extract_strided_slice %726 {offsets = [0, 96], sizes = [2, 32], strides = [1, 1]} : vector<2x128xf32> to vector<2x32xf32>
    %cst_268 = arith.constant 0.000000e+00 : f32
    %749 = vector.broadcast %cst_268 : f32 to vector<2x32xf32>
    %750 = arith.subf %749, %748 : vector<2x32xf32>
    %751 = math.exp %750 : vector<2x32xf32>
    %cst_269 = arith.constant 1.000000e+00 : f32
    %752 = vector.broadcast %cst_269 : f32 to vector<2x32xf32>
    %753 = arith.addf %752, %751 : vector<2x32xf32>
    %cst_270 = arith.constant 1.000000e+00 : f32
    %754 = vector.broadcast %cst_270 : f32 to vector<2x32xf32>
    %755 = arith.divf %754, %753 : vector<2x32xf32>
    %756 = arith.mulf %745, %688 : vector<2x32xf32>
    %757 = arith.mulf %737, %747 : vector<2x32xf32>
    %758 = arith.addf %756, %757 : vector<2x32xf32>
    %759 = math.tanh %758 : vector<2x32xf32>
    %760 = arith.mulf %755, %759 : vector<2x32xf32>
    %761 = vector.extract_strided_slice %729 {offsets = [0, 0], sizes = [2, 32], strides = [1, 1]} : vector<2x128xf32> to vector<2x32xf32>
    %cst_271 = arith.constant 0.000000e+00 : f32
    %762 = vector.broadcast %cst_271 : f32 to vector<2x32xf32>
    %763 = arith.subf %762, %761 : vector<2x32xf32>
    %764 = math.exp %763 : vector<2x32xf32>
    %cst_272 = arith.constant 1.000000e+00 : f32
    %765 = vector.broadcast %cst_272 : f32 to vector<2x32xf32>
    %766 = arith.addf %765, %764 : vector<2x32xf32>
    %cst_273 = arith.constant 1.000000e+00 : f32
    %767 = vector.broadcast %cst_273 : f32 to vector<2x32xf32>
    %768 = arith.divf %767, %766 : vector<2x32xf32>
    %769 = vector.extract_strided_slice %729 {offsets = [0, 32], sizes = [2, 32], strides = [1, 1]} : vector<2x128xf32> to vector<2x32xf32>
    %cst_274 = arith.constant 0.000000e+00 : f32
    %770 = vector.broadcast %cst_274 : f32 to vector<2x32xf32>
    %771 = arith.subf %770, %769 : vector<2x32xf32>
    %772 = math.exp %771 : vector<2x32xf32>
    %cst_275 = arith.constant 1.000000e+00 : f32
    %773 = vector.broadcast %cst_275 : f32 to vector<2x32xf32>
    %774 = arith.addf %773, %772 : vector<2x32xf32>
    %cst_276 = arith.constant 1.000000e+00 : f32
    %775 = vector.broadcast %cst_276 : f32 to vector<2x32xf32>
    %776 = arith.divf %775, %774 : vector<2x32xf32>
    %777 = vector.extract_strided_slice %729 {offsets = [0, 64], sizes = [2, 32], strides = [1, 1]} : vector<2x128xf32> to vector<2x32xf32>
    %778 = math.tanh %777 : vector<2x32xf32>
    %779 = vector.extract_strided_slice %729 {offsets = [0, 96], sizes = [2, 32], strides = [1, 1]} : vector<2x128xf32> to vector<2x32xf32>
    %cst_277 = arith.constant 0.000000e+00 : f32
    %780 = vector.broadcast %cst_277 : f32 to vector<2x32xf32>
    %781 = arith.subf %780, %779 : vector<2x32xf32>
    %782 = math.exp %781 : vector<2x32xf32>
    %cst_278 = arith.constant 1.000000e+00 : f32
    %783 = vector.broadcast %cst_278 : f32 to vector<2x32xf32>
    %784 = arith.addf %783, %782 : vector<2x32xf32>
    %cst_279 = arith.constant 1.000000e+00 : f32
    %785 = vector.broadcast %cst_279 : f32 to vector<2x32xf32>
    %786 = arith.divf %785, %784 : vector<2x32xf32>
    %787 = arith.mulf %776, %719 : vector<2x32xf32>
    %788 = arith.mulf %768, %778 : vector<2x32xf32>
    %789 = arith.addf %787, %788 : vector<2x32xf32>
    %790 = math.tanh %789 : vector<2x32xf32>
    %791 = arith.mulf %786, %790 : vector<2x32xf32>
    %c4_280 = arith.constant 4 : index
    %c0_281 = arith.constant 0 : index
    %792 = vector.load %arg12[%c4_280, %c0_281] : memref<16x64xf32, #tpu.memory_space<vmem>>, vector<2x32xf32>
    tpu.vector_store %arg12[%c4_280, %c0_281], %760 {strides = array<i32>} : memref<16x64xf32, #tpu.memory_space<vmem>>, vector<2x32xf32>,
    %c10_282 = arith.constant 10 : index
    %c32_283 = arith.constant 32 : index
    %793 = vector.load %arg12[%c10_282, %c32_283] : memref<16x64xf32, #tpu.memory_space<vmem>>, vector<2x32xf32>
    tpu.vector_store %arg12[%c10_282, %c32_283], %791 {strides = array<i32>} : memref<16x64xf32, #tpu.memory_space<vmem>>, vector<2x32xf32>,
    %794 = vector.extract_strided_slice %577 {offsets = [6, 0], sizes = [2, 128], strides = [1, 1]} : vector<16x256xf32> to vector<2x128xf32>
    %cst_284 = arith.constant dense<0.000000e+00> : vector<2x128xf32>
    %795 = tpu.matmul %760, %578, %cst_284 {dimension_numbers = #tpu.dot_dimension_numbers<[1], [0], [0], [1], [0, 0, 1, 1], [], []>} : vector<2x32xf32>, vector<32x128xf32>, vector<2x128xf32> -> vector<2x128xf32>
    %796 = arith.addf %794, %795 : vector<2x128xf32>
    %797 = vector.extract_strided_slice %577 {offsets = [8, 128], sizes = [2, 128], strides = [1, 1]} : vector<16x256xf32> to vector<2x128xf32>
    %cst_285 = arith.constant dense<0.000000e+00> : vector<2x128xf32>
    %798 = tpu.matmul %791, %579, %cst_285 {dimension_numbers = #tpu.dot_dimension_numbers<[1], [0], [0], [1], [0, 0, 1, 1], [], []>} : vector<2x32xf32>, vector<32x128xf32>, vector<2x128xf32> -> vector<2x128xf32>
    %799 = arith.addf %797, %798 : vector<2x128xf32>
    %800 = vector.extract_strided_slice %796 {offsets = [0, 0], sizes = [2, 32], strides = [1, 1]} : vector<2x128xf32> to vector<2x32xf32>
    %cst_286 = arith.constant 0.000000e+00 : f32
    %801 = vector.broadcast %cst_286 : f32 to vector<2x32xf32>
    %802 = arith.subf %801, %800 : vector<2x32xf32>
    %803 = math.exp %802 : vector<2x32xf32>
    %cst_287 = arith.constant 1.000000e+00 : f32
    %804 = vector.broadcast %cst_287 : f32 to vector<2x32xf32>
    %805 = arith.addf %804, %803 : vector<2x32xf32>
    %cst_288 = arith.constant 1.000000e+00 : f32
    %806 = vector.broadcast %cst_288 : f32 to vector<2x32xf32>
    %807 = arith.divf %806, %805 : vector<2x32xf32>
    %808 = vector.extract_strided_slice %796 {offsets = [0, 32], sizes = [2, 32], strides = [1, 1]} : vector<2x128xf32> to vector<2x32xf32>
    %cst_289 = arith.constant 0.000000e+00 : f32
    %809 = vector.broadcast %cst_289 : f32 to vector<2x32xf32>
    %810 = arith.subf %809, %808 : vector<2x32xf32>
    %811 = math.exp %810 : vector<2x32xf32>
    %cst_290 = arith.constant 1.000000e+00 : f32
    %812 = vector.broadcast %cst_290 : f32 to vector<2x32xf32>
    %813 = arith.addf %812, %811 : vector<2x32xf32>
    %cst_291 = arith.constant 1.000000e+00 : f32
    %814 = vector.broadcast %cst_291 : f32 to vector<2x32xf32>
    %815 = arith.divf %814, %813 : vector<2x32xf32>
    %816 = vector.extract_strided_slice %796 {offsets = [0, 64], sizes = [2, 32], strides = [1, 1]} : vector<2x128xf32> to vector<2x32xf32>
    %817 = math.tanh %816 : vector<2x32xf32>
    %818 = vector.extract_strided_slice %796 {offsets = [0, 96], sizes = [2, 32], strides = [1, 1]} : vector<2x128xf32> to vector<2x32xf32>
    %cst_292 = arith.constant 0.000000e+00 : f32
    %819 = vector.broadcast %cst_292 : f32 to vector<2x32xf32>
    %820 = arith.subf %819, %818 : vector<2x32xf32>
    %821 = math.exp %820 : vector<2x32xf32>
    %cst_293 = arith.constant 1.000000e+00 : f32
    %822 = vector.broadcast %cst_293 : f32 to vector<2x32xf32>
    %823 = arith.addf %822, %821 : vector<2x32xf32>
    %cst_294 = arith.constant 1.000000e+00 : f32
    %824 = vector.broadcast %cst_294 : f32 to vector<2x32xf32>
    %825 = arith.divf %824, %823 : vector<2x32xf32>
    %826 = arith.mulf %815, %758 : vector<2x32xf32>
    %827 = arith.mulf %807, %817 : vector<2x32xf32>
    %828 = arith.addf %826, %827 : vector<2x32xf32>
    %829 = math.tanh %828 : vector<2x32xf32>
    %830 = arith.mulf %825, %829 : vector<2x32xf32>
    %831 = vector.extract_strided_slice %799 {offsets = [0, 0], sizes = [2, 32], strides = [1, 1]} : vector<2x128xf32> to vector<2x32xf32>
    %cst_295 = arith.constant 0.000000e+00 : f32
    %832 = vector.broadcast %cst_295 : f32 to vector<2x32xf32>
    %833 = arith.subf %832, %831 : vector<2x32xf32>
    %834 = math.exp %833 : vector<2x32xf32>
    %cst_296 = arith.constant 1.000000e+00 : f32
    %835 = vector.broadcast %cst_296 : f32 to vector<2x32xf32>
    %836 = arith.addf %835, %834 : vector<2x32xf32>
    %cst_297 = arith.constant 1.000000e+00 : f32
    %837 = vector.broadcast %cst_297 : f32 to vector<2x32xf32>
    %838 = arith.divf %837, %836 : vector<2x32xf32>
    %839 = vector.extract_strided_slice %799 {offsets = [0, 32], sizes = [2, 32], strides = [1, 1]} : vector<2x128xf32> to vector<2x32xf32>
    %cst_298 = arith.constant 0.000000e+00 : f32
    %840 = vector.broadcast %cst_298 : f32 to vector<2x32xf32>
    %841 = arith.subf %840, %839 : vector<2x32xf32>
    %842 = math.exp %841 : vector<2x32xf32>
    %cst_299 = arith.constant 1.000000e+00 : f32
    %843 = vector.broadcast %cst_299 : f32 to vector<2x32xf32>
    %844 = arith.addf %843, %842 : vector<2x32xf32>
    %cst_300 = arith.constant 1.000000e+00 : f32
    %845 = vector.broadcast %cst_300 : f32 to vector<2x32xf32>
    %846 = arith.divf %845, %844 : vector<2x32xf32>
    %847 = vector.extract_strided_slice %799 {offsets = [0, 64], sizes = [2, 32], strides = [1, 1]} : vector<2x128xf32> to vector<2x32xf32>
    %848 = math.tanh %847 : vector<2x32xf32>
    %849 = vector.extract_strided_slice %799 {offsets = [0, 96], sizes = [2, 32], strides = [1, 1]} : vector<2x128xf32> to vector<2x32xf32>
    %cst_301 = arith.constant 0.000000e+00 : f32
    %850 = vector.broadcast %cst_301 : f32 to vector<2x32xf32>
    %851 = arith.subf %850, %849 : vector<2x32xf32>
    %852 = math.exp %851 : vector<2x32xf32>
    %cst_302 = arith.constant 1.000000e+00 : f32
    %853 = vector.broadcast %cst_302 : f32 to vector<2x32xf32>
    %854 = arith.addf %853, %852 : vector<2x32xf32>
    %cst_303 = arith.constant 1.000000e+00 : f32
    %855 = vector.broadcast %cst_303 : f32 to vector<2x32xf32>
    %856 = arith.divf %855, %854 : vector<2x32xf32>
    %857 = arith.mulf %846, %789 : vector<2x32xf32>
    %858 = arith.mulf %838, %848 : vector<2x32xf32>
    %859 = arith.addf %857, %858 : vector<2x32xf32>
    %860 = math.tanh %859 : vector<2x32xf32>
    %861 = arith.mulf %856, %860 : vector<2x32xf32>
    %c6_304 = arith.constant 6 : index
    %c0_305 = arith.constant 0 : index
    %862 = vector.load %arg12[%c6_304, %c0_305] : memref<16x64xf32, #tpu.memory_space<vmem>>, vector<2x32xf32>
    tpu.vector_store %arg12[%c6_304, %c0_305], %830 {strides = array<i32>} : memref<16x64xf32, #tpu.memory_space<vmem>>, vector<2x32xf32>,
    %c8_306 = arith.constant 8 : index
    %c32_307 = arith.constant 32 : index
    %863 = vector.load %arg12[%c8_306, %c32_307] : memref<16x64xf32, #tpu.memory_space<vmem>>, vector<2x32xf32>
    tpu.vector_store %arg12[%c8_306, %c32_307], %861 {strides = array<i32>} : memref<16x64xf32, #tpu.memory_space<vmem>>, vector<2x32xf32>,
    %864 = vector.extract_strided_slice %577 {offsets = [8, 0], sizes = [2, 128], strides = [1, 1]} : vector<16x256xf32> to vector<2x128xf32>
    %cst_308 = arith.constant dense<0.000000e+00> : vector<2x128xf32>
    %865 = tpu.matmul %830, %578, %cst_308 {dimension_numbers = #tpu.dot_dimension_numbers<[1], [0], [0], [1], [0, 0, 1, 1], [], []>} : vector<2x32xf32>, vector<32x128xf32>, vector<2x128xf32> -> vector<2x128xf32>
    %866 = arith.addf %864, %865 : vector<2x128xf32>
    %867 = vector.extract_strided_slice %577 {offsets = [6, 128], sizes = [2, 128], strides = [1, 1]} : vector<16x256xf32> to vector<2x128xf32>
    %cst_309 = arith.constant dense<0.000000e+00> : vector<2x128xf32>
    %868 = tpu.matmul %861, %579, %cst_309 {dimension_numbers = #tpu.dot_dimension_numbers<[1], [0], [0], [1], [0, 0, 1, 1], [], []>} : vector<2x32xf32>, vector<32x128xf32>, vector<2x128xf32> -> vector<2x128xf32>
    %869 = arith.addf %867, %868 : vector<2x128xf32>
    %870 = vector.extract_strided_slice %866 {offsets = [0, 0], sizes = [2, 32], strides = [1, 1]} : vector<2x128xf32> to vector<2x32xf32>
    %cst_310 = arith.constant 0.000000e+00 : f32
    %871 = vector.broadcast %cst_310 : f32 to vector<2x32xf32>
    %872 = arith.subf %871, %870 : vector<2x32xf32>
    %873 = math.exp %872 : vector<2x32xf32>
    %cst_311 = arith.constant 1.000000e+00 : f32
    %874 = vector.broadcast %cst_311 : f32 to vector<2x32xf32>
    %875 = arith.addf %874, %873 : vector<2x32xf32>
    %cst_312 = arith.constant 1.000000e+00 : f32
    %876 = vector.broadcast %cst_312 : f32 to vector<2x32xf32>
    %877 = arith.divf %876, %875 : vector<2x32xf32>
    %878 = vector.extract_strided_slice %866 {offsets = [0, 32], sizes = [2, 32], strides = [1, 1]} : vector<2x128xf32> to vector<2x32xf32>
    %cst_313 = arith.constant 0.000000e+00 : f32
    %879 = vector.broadcast %cst_313 : f32 to vector<2x32xf32>
    %880 = arith.subf %879, %878 : vector<2x32xf32>
    %881 = math.exp %880 : vector<2x32xf32>
    %cst_314 = arith.constant 1.000000e+00 : f32
    %882 = vector.broadcast %cst_314 : f32 to vector<2x32xf32>
    %883 = arith.addf %882, %881 : vector<2x32xf32>
    %cst_315 = arith.constant 1.000000e+00 : f32
    %884 = vector.broadcast %cst_315 : f32 to vector<2x32xf32>
    %885 = arith.divf %884, %883 : vector<2x32xf32>
    %886 = vector.extract_strided_slice %866 {offsets = [0, 64], sizes = [2, 32], strides = [1, 1]} : vector<2x128xf32> to vector<2x32xf32>
    %887 = math.tanh %886 : vector<2x32xf32>
    %888 = vector.extract_strided_slice %866 {offsets = [0, 96], sizes = [2, 32], strides = [1, 1]} : vector<2x128xf32> to vector<2x32xf32>
    %cst_316 = arith.constant 0.000000e+00 : f32
    %889 = vector.broadcast %cst_316 : f32 to vector<2x32xf32>
    %890 = arith.subf %889, %888 : vector<2x32xf32>
    %891 = math.exp %890 : vector<2x32xf32>
    %cst_317 = arith.constant 1.000000e+00 : f32
    %892 = vector.broadcast %cst_317 : f32 to vector<2x32xf32>
    %893 = arith.addf %892, %891 : vector<2x32xf32>
    %cst_318 = arith.constant 1.000000e+00 : f32
    %894 = vector.broadcast %cst_318 : f32 to vector<2x32xf32>
    %895 = arith.divf %894, %893 : vector<2x32xf32>
    %896 = arith.mulf %885, %828 : vector<2x32xf32>
    %897 = arith.mulf %877, %887 : vector<2x32xf32>
    %898 = arith.addf %896, %897 : vector<2x32xf32>
    %899 = math.tanh %898 : vector<2x32xf32>
    %900 = arith.mulf %895, %899 : vector<2x32xf32>
    %901 = vector.extract_strided_slice %869 {offsets = [0, 0], sizes = [2, 32], strides = [1, 1]} : vector<2x128xf32> to vector<2x32xf32>
    %cst_319 = arith.constant 0.000000e+00 : f32
    %902 = vector.broadcast %cst_319 : f32 to vector<2x32xf32>
    %903 = arith.subf %902, %901 : vector<2x32xf32>
    %904 = math.exp %903 : vector<2x32xf32>
    %cst_320 = arith.constant 1.000000e+00 : f32
    %905 = vector.broadcast %cst_320 : f32 to vector<2x32xf32>
    %906 = arith.addf %905, %904 : vector<2x32xf32>
    %cst_321 = arith.constant 1.000000e+00 : f32
    %907 = vector.broadcast %cst_321 : f32 to vector<2x32xf32>
    %908 = arith.divf %907, %906 : vector<2x32xf32>
    %909 = vector.extract_strided_slice %869 {offsets = [0, 32], sizes = [2, 32], strides = [1, 1]} : vector<2x128xf32> to vector<2x32xf32>
    %cst_322 = arith.constant 0.000000e+00 : f32
    %910 = vector.broadcast %cst_322 : f32 to vector<2x32xf32>
    %911 = arith.subf %910, %909 : vector<2x32xf32>
    %912 = math.exp %911 : vector<2x32xf32>
    %cst_323 = arith.constant 1.000000e+00 : f32
    %913 = vector.broadcast %cst_323 : f32 to vector<2x32xf32>
    %914 = arith.addf %913, %912 : vector<2x32xf32>
    %cst_324 = arith.constant 1.000000e+00 : f32
    %915 = vector.broadcast %cst_324 : f32 to vector<2x32xf32>
    %916 = arith.divf %915, %914 : vector<2x32xf32>
    %917 = vector.extract_strided_slice %869 {offsets = [0, 64], sizes = [2, 32], strides = [1, 1]} : vector<2x128xf32> to vector<2x32xf32>
    %918 = math.tanh %917 : vector<2x32xf32>
    %919 = vector.extract_strided_slice %869 {offsets = [0, 96], sizes = [2, 32], strides = [1, 1]} : vector<2x128xf32> to vector<2x32xf32>
    %cst_325 = arith.constant 0.000000e+00 : f32
    %920 = vector.broadcast %cst_325 : f32 to vector<2x32xf32>
    %921 = arith.subf %920, %919 : vector<2x32xf32>
    %922 = math.exp %921 : vector<2x32xf32>
    %cst_326 = arith.constant 1.000000e+00 : f32
    %923 = vector.broadcast %cst_326 : f32 to vector<2x32xf32>
    %924 = arith.addf %923, %922 : vector<2x32xf32>
    %cst_327 = arith.constant 1.000000e+00 : f32
    %925 = vector.broadcast %cst_327 : f32 to vector<2x32xf32>
    %926 = arith.divf %925, %924 : vector<2x32xf32>
    %927 = arith.mulf %916, %859 : vector<2x32xf32>
    %928 = arith.mulf %908, %918 : vector<2x32xf32>
    %929 = arith.addf %927, %928 : vector<2x32xf32>
    %930 = math.tanh %929 : vector<2x32xf32>
    %931 = arith.mulf %926, %930 : vector<2x32xf32>
    %c8_328 = arith.constant 8 : index
    %c0_329 = arith.constant 0 : index
    %932 = vector.load %arg12[%c8_328, %c0_329] : memref<16x64xf32, #tpu.memory_space<vmem>>, vector<2x32xf32>
    tpu.vector_store %arg12[%c8_328, %c0_329], %900 {strides = array<i32>} : memref<16x64xf32, #tpu.memory_space<vmem>>, vector<2x32xf32>,
    %c6_330 = arith.constant 6 : index
    %c32_331 = arith.constant 32 : index
    %933 = vector.load %arg12[%c6_330, %c32_331] : memref<16x64xf32, #tpu.memory_space<vmem>>, vector<2x32xf32>
    tpu.vector_store %arg12[%c6_330, %c32_331], %931 {strides = array<i32>} : memref<16x64xf32, #tpu.memory_space<vmem>>, vector<2x32xf32>,
    %934 = vector.extract_strided_slice %577 {offsets = [10, 0], sizes = [2, 128], strides = [1, 1]} : vector<16x256xf32> to vector<2x128xf32>
    %cst_332 = arith.constant dense<0.000000e+00> : vector<2x128xf32>
    %935 = tpu.matmul %900, %578, %cst_332 {dimension_numbers = #tpu.dot_dimension_numbers<[1], [0], [0], [1], [0, 0, 1, 1], [], []>} : vector<2x32xf32>, vector<32x128xf32>, vector<2x128xf32> -> vector<2x128xf32>
    %936 = arith.addf %934, %935 : vector<2x128xf32>
    %937 = vector.extract_strided_slice %577 {offsets = [4, 128], sizes = [2, 128], strides = [1, 1]} : vector<16x256xf32> to vector<2x128xf32>
    %cst_333 = arith.constant dense<0.000000e+00> : vector<2x128xf32>
    %938 = tpu.matmul %931, %579, %cst_333 {dimension_numbers = #tpu.dot_dimension_numbers<[1], [0], [0], [1], [0, 0, 1, 1], [], []>} : vector<2x32xf32>, vector<32x128xf32>, vector<2x128xf32> -> vector<2x128xf32>
    %939 = arith.addf %937, %938 : vector<2x128xf32>
    %940 = vector.extract_strided_slice %936 {offsets = [0, 0], sizes = [2, 32], strides = [1, 1]} : vector<2x128xf32> to vector<2x32xf32>
    %cst_334 = arith.constant 0.000000e+00 : f32
    %941 = vector.broadcast %cst_334 : f32 to vector<2x32xf32>
    %942 = arith.subf %941, %940 : vector<2x32xf32>
    %943 = math.exp %942 : vector<2x32xf32>
    %cst_335 = arith.constant 1.000000e+00 : f32
    %944 = vector.broadcast %cst_335 : f32 to vector<2x32xf32>
    %945 = arith.addf %944, %943 : vector<2x32xf32>
    %cst_336 = arith.constant 1.000000e+00 : f32
    %946 = vector.broadcast %cst_336 : f32 to vector<2x32xf32>
    %947 = arith.divf %946, %945 : vector<2x32xf32>
    %948 = vector.extract_strided_slice %936 {offsets = [0, 32], sizes = [2, 32], strides = [1, 1]} : vector<2x128xf32> to vector<2x32xf32>
    %cst_337 = arith.constant 0.000000e+00 : f32
    %949 = vector.broadcast %cst_337 : f32 to vector<2x32xf32>
    %950 = arith.subf %949, %948 : vector<2x32xf32>
    %951 = math.exp %950 : vector<2x32xf32>
    %cst_338 = arith.constant 1.000000e+00 : f32
    %952 = vector.broadcast %cst_338 : f32 to vector<2x32xf32>
    %953 = arith.addf %952, %951 : vector<2x32xf32>
    %cst_339 = arith.constant 1.000000e+00 : f32
    %954 = vector.broadcast %cst_339 : f32 to vector<2x32xf32>
    %955 = arith.divf %954, %953 : vector<2x32xf32>
    %956 = vector.extract_strided_slice %936 {offsets = [0, 64], sizes = [2, 32], strides = [1, 1]} : vector<2x128xf32> to vector<2x32xf32>
    %957 = math.tanh %956 : vector<2x32xf32>
    %958 = vector.extract_strided_slice %936 {offsets = [0, 96], sizes = [2, 32], strides = [1, 1]} : vector<2x128xf32> to vector<2x32xf32>
    %cst_340 = arith.constant 0.000000e+00 : f32
    %959 = vector.broadcast %cst_340 : f32 to vector<2x32xf32>
    %960 = arith.subf %959, %958 : vector<2x32xf32>
    %961 = math.exp %960 : vector<2x32xf32>
    %cst_341 = arith.constant 1.000000e+00 : f32
    %962 = vector.broadcast %cst_341 : f32 to vector<2x32xf32>
    %963 = arith.addf %962, %961 : vector<2x32xf32>
    %cst_342 = arith.constant 1.000000e+00 : f32
    %964 = vector.broadcast %cst_342 : f32 to vector<2x32xf32>
    %965 = arith.divf %964, %963 : vector<2x32xf32>
    %966 = arith.mulf %955, %898 : vector<2x32xf32>
    %967 = arith.mulf %947, %957 : vector<2x32xf32>
    %968 = arith.addf %966, %967 : vector<2x32xf32>
    %969 = math.tanh %968 : vector<2x32xf32>
    %970 = arith.mulf %965, %969 : vector<2x32xf32>
    %971 = vector.extract_strided_slice %939 {offsets = [0, 0], sizes = [2, 32], strides = [1, 1]} : vector<2x128xf32> to vector<2x32xf32>
    %cst_343 = arith.constant 0.000000e+00 : f32
    %972 = vector.broadcast %cst_343 : f32 to vector<2x32xf32>
    %973 = arith.subf %972, %971 : vector<2x32xf32>
    %974 = math.exp %973 : vector<2x32xf32>
    %cst_344 = arith.constant 1.000000e+00 : f32
    %975 = vector.broadcast %cst_344 : f32 to vector<2x32xf32>
    %976 = arith.addf %975, %974 : vector<2x32xf32>
    %cst_345 = arith.constant 1.000000e+00 : f32
    %977 = vector.broadcast %cst_345 : f32 to vector<2x32xf32>
    %978 = arith.divf %977, %976 : vector<2x32xf32>
    %979 = vector.extract_strided_slice %939 {offsets = [0, 32], sizes = [2, 32], strides = [1, 1]} : vector<2x128xf32> to vector<2x32xf32>
    %cst_346 = arith.constant 0.000000e+00 : f32
    %980 = vector.broadcast %cst_346 : f32 to vector<2x32xf32>
    %981 = arith.subf %980, %979 : vector<2x32xf32>
    %982 = math.exp %981 : vector<2x32xf32>
    %cst_347 = arith.constant 1.000000e+00 : f32
    %983 = vector.broadcast %cst_347 : f32 to vector<2x32xf32>
    %984 = arith.addf %983, %982 : vector<2x32xf32>
    %cst_348 = arith.constant 1.000000e+00 : f32
    %985 = vector.broadcast %cst_348 : f32 to vector<2x32xf32>
    %986 = arith.divf %985, %984 : vector<2x32xf32>
    %987 = vector.extract_strided_slice %939 {offsets = [0, 64], sizes = [2, 32], strides = [1, 1]} : vector<2x128xf32> to vector<2x32xf32>
    %988 = math.tanh %987 : vector<2x32xf32>
    %989 = vector.extract_strided_slice %939 {offsets = [0, 96], sizes = [2, 32], strides = [1, 1]} : vector<2x128xf32> to vector<2x32xf32>
    %cst_349 = arith.constant 0.000000e+00 : f32
    %990 = vector.broadcast %cst_349 : f32 to vector<2x32xf32>
    %991 = arith.subf %990, %989 : vector<2x32xf32>
    %992 = math.exp %991 : vector<2x32xf32>
    %cst_350 = arith.constant 1.000000e+00 : f32
    %993 = vector.broadcast %cst_350 : f32 to vector<2x32xf32>
    %994 = arith.addf %993, %992 : vector<2x32xf32>
    %cst_351 = arith.constant 1.000000e+00 : f32
    %995 = vector.broadcast %cst_351 : f32 to vector<2x32xf32>
    %996 = arith.divf %995, %994 : vector<2x32xf32>
    %997 = arith.mulf %986, %929 : vector<2x32xf32>
    %998 = arith.mulf %978, %988 : vector<2x32xf32>
    %999 = arith.addf %997, %998 : vector<2x32xf32>
    %1000 = math.tanh %999 : vector<2x32xf32>
    %1001 = arith.mulf %996, %1000 : vector<2x32xf32>
    %c10_352 = arith.constant 10 : index
    %c0_353 = arith.constant 0 : index
    %1002 = vector.load %arg12[%c10_352, %c0_353] : memref<16x64xf32, #tpu.memory_space<vmem>>, vector<2x32xf32>
    tpu.vector_store %arg12[%c10_352, %c0_353], %970 {strides = array<i32>} : memref<16x64xf32, #tpu.memory_space<vmem>>, vector<2x32xf32>,
    %c4_354 = arith.constant 4 : index
    %c32_355 = arith.constant 32 : index
    %1003 = vector.load %arg12[%c4_354, %c32_355] : memref<16x64xf32, #tpu.memory_space<vmem>>, vector<2x32xf32>
    tpu.vector_store %arg12[%c4_354, %c32_355], %1001 {strides = array<i32>} : memref<16x64xf32, #tpu.memory_space<vmem>>, vector<2x32xf32>,
    %1004 = vector.extract_strided_slice %577 {offsets = [12, 0], sizes = [2, 128], strides = [1, 1]} : vector<16x256xf32> to vector<2x128xf32>
    %cst_356 = arith.constant dense<0.000000e+00> : vector<2x128xf32>
    %1005 = tpu.matmul %970, %578, %cst_356 {dimension_numbers = #tpu.dot_dimension_numbers<[1], [0], [0], [1], [0, 0, 1, 1], [], []>} : vector<2x32xf32>, vector<32x128xf32>, vector<2x128xf32> -> vector<2x128xf32>
    %1006 = arith.addf %1004, %1005 : vector<2x128xf32>
    %1007 = vector.extract_strided_slice %577 {offsets = [2, 128], sizes = [2, 128], strides = [1, 1]} : vector<16x256xf32> to vector<2x128xf32>
    %cst_357 = arith.constant dense<0.000000e+00> : vector<2x128xf32>
    %1008 = tpu.matmul %1001, %579, %cst_357 {dimension_numbers = #tpu.dot_dimension_numbers<[1], [0], [0], [1], [0, 0, 1, 1], [], []>} : vector<2x32xf32>, vector<32x128xf32>, vector<2x128xf32> -> vector<2x128xf32>
    %1009 = arith.addf %1007, %1008 : vector<2x128xf32>
    %1010 = vector.extract_strided_slice %1006 {offsets = [0, 0], sizes = [2, 32], strides = [1, 1]} : vector<2x128xf32> to vector<2x32xf32>
    %cst_358 = arith.constant 0.000000e+00 : f32
    %1011 = vector.broadcast %cst_358 : f32 to vector<2x32xf32>
    %1012 = arith.subf %1011, %1010 : vector<2x32xf32>
    %1013 = math.exp %1012 : vector<2x32xf32>
    %cst_359 = arith.constant 1.000000e+00 : f32
    %1014 = vector.broadcast %cst_359 : f32 to vector<2x32xf32>
    %1015 = arith.addf %1014, %1013 : vector<2x32xf32>
    %cst_360 = arith.constant 1.000000e+00 : f32
    %1016 = vector.broadcast %cst_360 : f32 to vector<2x32xf32>
    %1017 = arith.divf %1016, %1015 : vector<2x32xf32>
    %1018 = vector.extract_strided_slice %1006 {offsets = [0, 32], sizes = [2, 32], strides = [1, 1]} : vector<2x128xf32> to vector<2x32xf32>
    %cst_361 = arith.constant 0.000000e+00 : f32
    %1019 = vector.broadcast %cst_361 : f32 to vector<2x32xf32>
    %1020 = arith.subf %1019, %1018 : vector<2x32xf32>
    %1021 = math.exp %1020 : vector<2x32xf32>
    %cst_362 = arith.constant 1.000000e+00 : f32
    %1022 = vector.broadcast %cst_362 : f32 to vector<2x32xf32>
    %1023 = arith.addf %1022, %1021 : vector<2x32xf32>
    %cst_363 = arith.constant 1.000000e+00 : f32
    %1024 = vector.broadcast %cst_363 : f32 to vector<2x32xf32>
    %1025 = arith.divf %1024, %1023 : vector<2x32xf32>
    %1026 = vector.extract_strided_slice %1006 {offsets = [0, 64], sizes = [2, 32], strides = [1, 1]} : vector<2x128xf32> to vector<2x32xf32>
    %1027 = math.tanh %1026 : vector<2x32xf32>
    %1028 = vector.extract_strided_slice %1006 {offsets = [0, 96], sizes = [2, 32], strides = [1, 1]} : vector<2x128xf32> to vector<2x32xf32>
    %cst_364 = arith.constant 0.000000e+00 : f32
    %1029 = vector.broadcast %cst_364 : f32 to vector<2x32xf32>
    %1030 = arith.subf %1029, %1028 : vector<2x32xf32>
    %1031 = math.exp %1030 : vector<2x32xf32>
    %cst_365 = arith.constant 1.000000e+00 : f32
    %1032 = vector.broadcast %cst_365 : f32 to vector<2x32xf32>
    %1033 = arith.addf %1032, %1031 : vector<2x32xf32>
    %cst_366 = arith.constant 1.000000e+00 : f32
    %1034 = vector.broadcast %cst_366 : f32 to vector<2x32xf32>
    %1035 = arith.divf %1034, %1033 : vector<2x32xf32>
    %1036 = arith.mulf %1025, %968 : vector<2x32xf32>
    %1037 = arith.mulf %1017, %1027 : vector<2x32xf32>
    %1038 = arith.addf %1036, %1037 : vector<2x32xf32>
    %1039 = math.tanh %1038 : vector<2x32xf32>
    %1040 = arith.mulf %1035, %1039 : vector<2x32xf32>
    %1041 = vector.extract_strided_slice %1009 {offsets = [0, 0], sizes = [2, 32], strides = [1, 1]} : vector<2x128xf32> to vector<2x32xf32>
    %cst_367 = arith.constant 0.000000e+00 : f32
    %1042 = vector.broadcast %cst_367 : f32 to vector<2x32xf32>
    %1043 = arith.subf %1042, %1041 : vector<2x32xf32>
    %1044 = math.exp %1043 : vector<2x32xf32>
    %cst_368 = arith.constant 1.000000e+00 : f32
    %1045 = vector.broadcast %cst_368 : f32 to vector<2x32xf32>
    %1046 = arith.addf %1045, %1044 : vector<2x32xf32>
    %cst_369 = arith.constant 1.000000e+00 : f32
    %1047 = vector.broadcast %cst_369 : f32 to vector<2x32xf32>
    %1048 = arith.divf %1047, %1046 : vector<2x32xf32>
    %1049 = vector.extract_strided_slice %1009 {offsets = [0, 32], sizes = [2, 32], strides = [1, 1]} : vector<2x128xf32> to vector<2x32xf32>
    %cst_370 = arith.constant 0.000000e+00 : f32
    %1050 = vector.broadcast %cst_370 : f32 to vector<2x32xf32>
    %1051 = arith.subf %1050, %1049 : vector<2x32xf32>
    %1052 = math.exp %1051 : vector<2x32xf32>
    %cst_371 = arith.constant 1.000000e+00 : f32
    %1053 = vector.broadcast %cst_371 : f32 to vector<2x32xf32>
    %1054 = arith.addf %1053, %1052 : vector<2x32xf32>
    %cst_372 = arith.constant 1.000000e+00 : f32
    %1055 = vector.broadcast %cst_372 : f32 to vector<2x32xf32>
    %1056 = arith.divf %1055, %1054 : vector<2x32xf32>
    %1057 = vector.extract_strided_slice %1009 {offsets = [0, 64], sizes = [2, 32], strides = [1, 1]} : vector<2x128xf32> to vector<2x32xf32>
    %1058 = math.tanh %1057 : vector<2x32xf32>
    %1059 = vector.extract_strided_slice %1009 {offsets = [0, 96], sizes = [2, 32], strides = [1, 1]} : vector<2x128xf32> to vector<2x32xf32>
    %cst_373 = arith.constant 0.000000e+00 : f32
    %1060 = vector.broadcast %cst_373 : f32 to vector<2x32xf32>
    %1061 = arith.subf %1060, %1059 : vector<2x32xf32>
    %1062 = math.exp %1061 : vector<2x32xf32>
    %cst_374 = arith.constant 1.000000e+00 : f32
    %1063 = vector.broadcast %cst_374 : f32 to vector<2x32xf32>
    %1064 = arith.addf %1063, %1062 : vector<2x32xf32>
    %cst_375 = arith.constant 1.000000e+00 : f32
    %1065 = vector.broadcast %cst_375 : f32 to vector<2x32xf32>
    %1066 = arith.divf %1065, %1064 : vector<2x32xf32>
    %1067 = arith.mulf %1056, %999 : vector<2x32xf32>
    %1068 = arith.mulf %1048, %1058 : vector<2x32xf32>
    %1069 = arith.addf %1067, %1068 : vector<2x32xf32>
    %1070 = math.tanh %1069 : vector<2x32xf32>
    %1071 = arith.mulf %1066, %1070 : vector<2x32xf32>
    %c12_376 = arith.constant 12 : index
    %c0_377 = arith.constant 0 : index
    %1072 = vector.load %arg12[%c12_376, %c0_377] : memref<16x64xf32, #tpu.memory_space<vmem>>, vector<2x32xf32>
    tpu.vector_store %arg12[%c12_376, %c0_377], %1040 {strides = array<i32>} : memref<16x64xf32, #tpu.memory_space<vmem>>, vector<2x32xf32>,
    %c2_378 = arith.constant 2 : index
    %c32_379 = arith.constant 32 : index
    %1073 = vector.load %arg12[%c2_378, %c32_379] : memref<16x64xf32, #tpu.memory_space<vmem>>, vector<2x32xf32>
    tpu.vector_store %arg12[%c2_378, %c32_379], %1071 {strides = array<i32>} : memref<16x64xf32, #tpu.memory_space<vmem>>, vector<2x32xf32>,
    %1074 = vector.extract_strided_slice %577 {offsets = [14, 0], sizes = [2, 128], strides = [1, 1]} : vector<16x256xf32> to vector<2x128xf32>
    %cst_380 = arith.constant dense<0.000000e+00> : vector<2x128xf32>
    %1075 = tpu.matmul %1040, %578, %cst_380 {dimension_numbers = #tpu.dot_dimension_numbers<[1], [0], [0], [1], [0, 0, 1, 1], [], []>} : vector<2x32xf32>, vector<32x128xf32>, vector<2x128xf32> -> vector<2x128xf32>
    %1076 = arith.addf %1074, %1075 : vector<2x128xf32>
    %1077 = vector.extract_strided_slice %577 {offsets = [0, 128], sizes = [2, 128], strides = [1, 1]} : vector<16x256xf32> to vector<2x128xf32>
    %cst_381 = arith.constant dense<0.000000e+00> : vector<2x128xf32>
    %1078 = tpu.matmul %1071, %579, %cst_381 {dimension_numbers = #tpu.dot_dimension_numbers<[1], [0], [0], [1], [0, 0, 1, 1], [], []>} : vector<2x32xf32>, vector<32x128xf32>, vector<2x128xf32> -> vector<2x128xf32>
    %1079 = arith.addf %1077, %1078 : vector<2x128xf32>
    %1080 = vector.extract_strided_slice %1076 {offsets = [0, 0], sizes = [2, 32], strides = [1, 1]} : vector<2x128xf32> to vector<2x32xf32>
    %cst_382 = arith.constant 0.000000e+00 : f32
    %1081 = vector.broadcast %cst_382 : f32 to vector<2x32xf32>
    %1082 = arith.subf %1081, %1080 : vector<2x32xf32>
    %1083 = math.exp %1082 : vector<2x32xf32>
    %cst_383 = arith.constant 1.000000e+00 : f32
    %1084 = vector.broadcast %cst_383 : f32 to vector<2x32xf32>
    %1085 = arith.addf %1084, %1083 : vector<2x32xf32>
    %cst_384 = arith.constant 1.000000e+00 : f32
    %1086 = vector.broadcast %cst_384 : f32 to vector<2x32xf32>
    %1087 = arith.divf %1086, %1085 : vector<2x32xf32>
    %1088 = vector.extract_strided_slice %1076 {offsets = [0, 32], sizes = [2, 32], strides = [1, 1]} : vector<2x128xf32> to vector<2x32xf32>
    %cst_385 = arith.constant 0.000000e+00 : f32
    %1089 = vector.broadcast %cst_385 : f32 to vector<2x32xf32>
    %1090 = arith.subf %1089, %1088 : vector<2x32xf32>
    %1091 = math.exp %1090 : vector<2x32xf32>
    %cst_386 = arith.constant 1.000000e+00 : f32
    %1092 = vector.broadcast %cst_386 : f32 to vector<2x32xf32>
    %1093 = arith.addf %1092, %1091 : vector<2x32xf32>
    %cst_387 = arith.constant 1.000000e+00 : f32
    %1094 = vector.broadcast %cst_387 : f32 to vector<2x32xf32>
    %1095 = arith.divf %1094, %1093 : vector<2x32xf32>
    %1096 = vector.extract_strided_slice %1076 {offsets = [0, 64], sizes = [2, 32], strides = [1, 1]} : vector<2x128xf32> to vector<2x32xf32>
    %1097 = math.tanh %1096 : vector<2x32xf32>
    %1098 = vector.extract_strided_slice %1076 {offsets = [0, 96], sizes = [2, 32], strides = [1, 1]} : vector<2x128xf32> to vector<2x32xf32>
    %cst_388 = arith.constant 0.000000e+00 : f32
    %1099 = vector.broadcast %cst_388 : f32 to vector<2x32xf32>
    %1100 = arith.subf %1099, %1098 : vector<2x32xf32>
    %1101 = math.exp %1100 : vector<2x32xf32>
    %cst_389 = arith.constant 1.000000e+00 : f32
    %1102 = vector.broadcast %cst_389 : f32 to vector<2x32xf32>
    %1103 = arith.addf %1102, %1101 : vector<2x32xf32>
    %cst_390 = arith.constant 1.000000e+00 : f32
    %1104 = vector.broadcast %cst_390 : f32 to vector<2x32xf32>
    %1105 = arith.divf %1104, %1103 : vector<2x32xf32>
    %1106 = arith.mulf %1095, %1038 : vector<2x32xf32>
    %1107 = arith.mulf %1087, %1097 : vector<2x32xf32>
    %1108 = arith.addf %1106, %1107 : vector<2x32xf32>
    %1109 = math.tanh %1108 : vector<2x32xf32>
    %1110 = arith.mulf %1105, %1109 : vector<2x32xf32>
    %1111 = vector.extract_strided_slice %1079 {offsets = [0, 0], sizes = [2, 32], strides = [1, 1]} : vector<2x128xf32> to vector<2x32xf32>
    %cst_391 = arith.constant 0.000000e+00 : f32
    %1112 = vector.broadcast %cst_391 : f32 to vector<2x32xf32>
    %1113 = arith.subf %1112, %1111 : vector<2x32xf32>
    %1114 = math.exp %1113 : vector<2x32xf32>
    %cst_392 = arith.constant 1.000000e+00 : f32
    %1115 = vector.broadcast %cst_392 : f32 to vector<2x32xf32>
    %1116 = arith.addf %1115, %1114 : vector<2x32xf32>
    %cst_393 = arith.constant 1.000000e+00 : f32
    %1117 = vector.broadcast %cst_393 : f32 to vector<2x32xf32>
    %1118 = arith.divf %1117, %1116 : vector<2x32xf32>
    %1119 = vector.extract_strided_slice %1079 {offsets = [0, 32], sizes = [2, 32], strides = [1, 1]} : vector<2x128xf32> to vector<2x32xf32>
    %cst_394 = arith.constant 0.000000e+00 : f32
    %1120 = vector.broadcast %cst_394 : f32 to vector<2x32xf32>
    %1121 = arith.subf %1120, %1119 : vector<2x32xf32>
    %1122 = math.exp %1121 : vector<2x32xf32>
    %cst_395 = arith.constant 1.000000e+00 : f32
    %1123 = vector.broadcast %cst_395 : f32 to vector<2x32xf32>
    %1124 = arith.addf %1123, %1122 : vector<2x32xf32>
    %cst_396 = arith.constant 1.000000e+00 : f32
    %1125 = vector.broadcast %cst_396 : f32 to vector<2x32xf32>
    %1126 = arith.divf %1125, %1124 : vector<2x32xf32>
    %1127 = vector.extract_strided_slice %1079 {offsets = [0, 64], sizes = [2, 32], strides = [1, 1]} : vector<2x128xf32> to vector<2x32xf32>
    %1128 = math.tanh %1127 : vector<2x32xf32>
    %1129 = vector.extract_strided_slice %1079 {offsets = [0, 96], sizes = [2, 32], strides = [1, 1]} : vector<2x128xf32> to vector<2x32xf32>
    %cst_397 = arith.constant 0.000000e+00 : f32
    %1130 = vector.broadcast %cst_397 : f32 to vector<2x32xf32>
    %1131 = arith.subf %1130, %1129 : vector<2x32xf32>
    %1132 = math.exp %1131 : vector<2x32xf32>
    %cst_398 = arith.constant 1.000000e+00 : f32
    %1133 = vector.broadcast %cst_398 : f32 to vector<2x32xf32>
    %1134 = arith.addf %1133, %1132 : vector<2x32xf32>
    %cst_399 = arith.constant 1.000000e+00 : f32
    %1135 = vector.broadcast %cst_399 : f32 to vector<2x32xf32>
    %1136 = arith.divf %1135, %1134 : vector<2x32xf32>
    %1137 = arith.mulf %1126, %1069 : vector<2x32xf32>
    %1138 = arith.mulf %1118, %1128 : vector<2x32xf32>
    %1139 = arith.addf %1137, %1138 : vector<2x32xf32>
    %1140 = math.tanh %1139 : vector<2x32xf32>
    %1141 = arith.mulf %1136, %1140 : vector<2x32xf32>
    %c14_400 = arith.constant 14 : index
    %c0_401 = arith.constant 0 : index
    %1142 = vector.load %arg12[%c14_400, %c0_401] : memref<16x64xf32, #tpu.memory_space<vmem>>, vector<2x32xf32>
    tpu.vector_store %arg12[%c14_400, %c0_401], %1110 {strides = array<i32>} : memref<16x64xf32, #tpu.memory_space<vmem>>, vector<2x32xf32>,
    %c0_402 = arith.constant 0 : index
    %c32_403 = arith.constant 32 : index
    %1143 = vector.load %arg12[%c0_402, %c32_403] : memref<16x64xf32, #tpu.memory_space<vmem>>, vector<2x32xf32>
    tpu.vector_store %arg12[%c0_402, %c32_403], %1141 {strides = array<i32>} : memref<16x64xf32, #tpu.memory_space<vmem>>, vector<2x32xf32>,
    %c0_404 = arith.constant 0 : index
    %c0_405 = arith.constant 0 : index
    %1144 = vector.load %arg12[%c0_404, %c0_405] : memref<16x64xf32, #tpu.memory_space<vmem>>, vector<16x64xf32>
    %c0_406 = arith.constant 0 : index
    %c0_407 = arith.constant 0 : index
    %1145 = vector.load %arg9[%c0_406, %c0_407] : memref<64x8xf32, #tpu.memory_space<vmem>>, vector<64x8xf32>
    %cst_408 = arith.constant dense<0.000000e+00> : vector<16x8xf32>
    %1146 = tpu.matmul %1144, %1145, %cst_408 {dimension_numbers = #tpu.dot_dimension_numbers<[1], [0], [0], [1], [0, 0, 1, 1], [], []>} : vector<16x64xf32>, vector<64x8xf32>, vector<16x8xf32> -> vector<16x8xf32>
    %c0_409 = arith.constant 0 : index
    %c0_410 = arith.constant 0 : index
    %1147 = vector.load %arg10[%c0_409, %c0_410] : memref<1x8xf32, #tpu.memory_space<vmem>>, vector<1x8xf32>
    %1148 = vector.broadcast %1147 : vector<1x8xf32> to vector<16x8xf32>
    %1149 = arith.addf %1146, %1148 : vector<16x8xf32>
    %cst_411 = arith.constant 0.000000e+00 : f32
    %1150 = vector.broadcast %cst_411 : f32 to vector<16x8xf32>
    %1151 = arith.subf %1150, %1149 : vector<16x8xf32>
    %1152 = math.exp %1151 : vector<16x8xf32>
    %cst_412 = arith.constant 1.000000e+00 : f32
    %1153 = vector.broadcast %cst_412 : f32 to vector<16x8xf32>
    %1154 = arith.addf %1153, %1152 : vector<16x8xf32>
    %cst_413 = arith.constant 1.000000e+00 : f32
    %1155 = vector.broadcast %cst_413 : f32 to vector<16x8xf32>
    %1156 = arith.divf %1155, %1154 : vector<16x8xf32>
    %c0_414 = arith.constant 0 : index
    %c0_415 = arith.constant 0 : index
    %1157 = vector.load %arg11[%c0_414, %c0_415] : memref<16x8xf32, #tpu.memory_space<vmem>>, vector<16x8xf32>
    tpu.vector_store %arg11[%c0_414, %c0_415], %1156 {strides = array<i32>} : memref<16x8xf32, #tpu.memory_space<vmem>>, vector<16x8xf32>,
    return
  }
}

</mosaic_0001>

<llo_original>
// kernel: discriminator_forward.1
$region0: #{discriminator_forward.1}
  #allocation0 [shape = 'u32[]', space=smem, size = 0x4, offset = 0x4, fixed_abs, tag = 'smem constant byte address 0x4 - core index']
  #allocation1 [shape = 'u32[144,128]{1,0:T(1,128)}', space=vmem, size = 0x12000, scoped, tag = 'internal scratch']
  #allocation2 [shape = 'f32[16,64]{1,0:T(8,128)}', space=vmem, size = 0x2000, scoped, tag = 'scratch operand']
  %s0 = inlined_call_operand.hbm [shape: f32[16,16], index: 0, kind: input, shape index: {}]
  %s1 = inlined_call_operand.vmem [shape: f32[16,256], index: 1, kind: input, shape index: {}]
  %s2 = inlined_call_operand.vmem [shape: f32[1,256], index: 2, kind: input, shape index: {}]
  %s3 = inlined_call_operand.vmem [shape: f32[32,128], index: 3, kind: input, shape index: {}]
  %s4 = inlined_call_operand.hbm [shape: f32[32,128], index: 4, kind: input, shape index: {}]
  %s5 = inlined_call_operand.hbm [shape: f32[64,256], index: 5, kind: input, shape index: {}]
  %s6 = inlined_call_operand.vmem [shape: f32[1,256], index: 6, kind: input, shape index: {}]
  %s7 = inlined_call_operand.hbm [shape: f32[32,128], index: 7, kind: input, shape index: {}]
  %s8 = inlined_call_operand.hbm [shape: f32[32,128], index: 8, kind: input, shape index: {}]
  %s9 = inlined_call_operand.vmem [shape: f32[64,8], index: 9, kind: input, shape index: {}]
  %s10 = inlined_call_operand.vmem [shape: f32[1,8], index: 10, kind: input, shape index: {}]
  %s11 = inlined_call_operand.hbm [shape: f32[16,8], index: 11, kind: output, shape index: {}]
  %s12 = sld [smem:[#allocation0]]
  $region74: #{discriminator_forward.1} parent=0
    _
  %s14 = ssub.s32 1, %s12
  %s15 = scalar_select 0, %s14, %s12
  $region1: #{discriminator_forward.1} parent=0
    #allocation3 [shape = 'u8[8192]{0}', space=vmem, size = 0x2000, scoped, tag = 'input window, operand 0, single buffered']
    #allocation4 [shape = 's32[1]{0}', space=sflag, size = 0x4, scoped, tag = 'scoped memory for discriminator_forward.1']
    #allocation5 [shape = 's32[1]{0}', space=sflag, size = 0x4, scoped, tag = 'scoped memory for discriminator_forward.1']
    #allocation6 [shape = 'u8[16384]{0}', space=vmem, size = 0x4000, scoped, tag = 'input window, operand 4, single buffered']
    #allocation7 [shape = 's32[1]{0}', space=sflag, size = 0x4, scoped, tag = 'scoped memory for discriminator_forward.1']
    #allocation8 [shape = 'u8[65536]{0}', space=vmem, size = 0x10000, scoped, tag = 'input window, operand 5, single buffered']
    #allocation9 [shape = 'u8[16384]{0}', space=vmem, size = 0x4000, scoped, tag = 'input window, operand 7, single buffered']
    #allocation10 [shape = 's32[1]{0}', space=sflag, size = 0x4, scoped, tag = 'scoped memory for discriminator_forward.1']
    #allocation11 [shape = 'u8[16384]{0}', space=vmem, size = 0x4000, scoped, tag = 'input window, operand 8, single buffered']
    #allocation12 [shape = 'u8[8192]{0}', space=vmem, size = 0x2000, scoped, tag = 'output window, operand 0, single buffered']
    %16 = vsyncpa [#allocation4], 0
    %17 = vsyncpa [#allocation7], 0
    %18 = vsyncpa [#allocation10], 0
    %19 = vsyncpa [#allocation5], 0
    // Predicated region
    $region2: #{discriminator_forward.1} parent=1 // pred_check
      _
    $region3: #{discriminator_forward.1} parent=1 // pred_check_branch
      %21 = sbr.rel (0) target = $region5
    $region4: #{discriminator_forward.1} parent=1 // pred_region
      %s23 = ssub.s32 256, 256
      %24 = vsyncadd [#allocation4], %s23
      %s25 = sshll.u32 [#allocation3], 4
      %s26 = int_to_ptr.vmem [resolvable:$true] %s25
      %31 = dma.hbm_to_vmem [thread:$0]  %s0, 256, %s26, [#allocation4], 128, 128, 8
    $region5: #{discriminator_forward.1} parent=1 // pred_fallthru
      _
    // Predicated region
    $region6: #{discriminator_forward.1} parent=1 // pred_check
      _
    $region7: #{discriminator_forward.1} parent=1 // pred_check_branch
      %33 = sbr.rel (0) target = $region9
    $region8: #{discriminator_forward.1} parent=1 // pred_region
      _
    $region9: #{discriminator_forward.1} parent=1 // pred_fallthru
      _
    // Predicated region
    $region10: #{discriminator_forward.1} parent=1 // pred_check
      _
    $region11: #{discriminator_forward.1} parent=1 // pred_check_branch
      %35 = sbr.rel (0) target = $region13
    $region12: #{discriminator_forward.1} parent=1 // pred_region
      _
    $region13: #{discriminator_forward.1} parent=1 // pred_fallthru
      _
    // Predicated region
    $region14: #{discriminator_forward.1} parent=1 // pred_check
      _
    $region15: #{discriminator_forward.1} parent=1 // pred_check_branch
      %37 = sbr.rel (0) target = $region17
    $region16: #{discriminator_forward.1} parent=1 // pred_region
      _
    $region17: #{discriminator_forward.1} parent=1 // pred_fallthru
      _
    // Predicated region
    $region18: #{discriminator_forward.1} parent=1 // pred_check
      _
    $region19: #{discriminator_forward.1} parent=1 // pred_check_branch
      %39 = sbr.rel (0) target = $region21
    $region20: #{discriminator_forward.1} parent=1 // pred_region
      %s41 = ssub.s32 512, 512
      %42 = vsyncadd [#allocation7], %s41
      %s43 = sshll.u32 [#allocation6], 4
      %s44 = int_to_ptr.vmem [resolvable:$true] %s43
      %49 = dma.hbm_to_vmem [thread:$0]  %s4, 512, %s44, [#allocation7], 128, 128, 8
    $region21: #{discriminator_forward.1} parent=1 // pred_fallthru
      _
    // Predicated region
    $region22: #{discriminator_forward.1} parent=1 // pred_check
      _
    $region23: #{discriminator_forward.1} parent=1 // pred_check_branch
      %51 = sbr.rel (0) target = $region25
    $region24: #{discriminator_forward.1} parent=1 // pred_region
      %s53 = ssub.s32 2048, 2048
      %54 = vsyncadd [#allocation7], %s53
      %s55 = sshll.u32 [#allocation8], 4
      %s56 = int_to_ptr.vmem [resolvable:$true] %s55
      %61 = dma.hbm_to_vmem [thread:$0]  %s5, 2048, %s56, [#allocation7], 256, 256, 16
    $region25: #{discriminator_forward.1} parent=1 // pred_fallthru
      _
    // Predicated region
    $region26: #{discriminator_forward.1} parent=1 // pred_check
      _
    $region27: #{discriminator_forward.1} parent=1 // pred_check_branch
      %63 = sbr.rel (0) target = $region29
    $region28: #{discriminator_forward.1} parent=1 // pred_region
      _
    $region29: #{discriminator_forward.1} parent=1 // pred_fallthru
      _
    // Predicated region
    $region30: #{discriminator_forward.1} parent=1 // pred_check
      _
    $region31: #{discriminator_forward.1} parent=1 // pred_check_branch
      %65 = sbr.rel (0) target = $region33
    $region32: #{discriminator_forward.1} parent=1 // pred_region
      %s67 = ssub.s32 512, 512
      %68 = vsyncadd [#allocation10], %s67
      %s69 = sshll.u32 [#allocation9], 4
      %s70 = int_to_ptr.vmem [resolvable:$true] %s69
      %75 = dma.hbm_to_vmem [thread:$0]  %s7, 512, %s70, [#allocation10], 128, 128, 8
    $region33: #{discriminator_forward.1} parent=1 // pred_fallthru
      _
    // Predicated region
    $region34: #{discriminator_forward.1} parent=1 // pred_check
      _
    $region35: #{discriminator_forward.1} parent=1 // pred_check_branch
      %77 = sbr.rel (0) target = $region37
    $region36: #{discriminator_forward.1} parent=1 // pred_region
      %s79 = ssub.s32 512, 512
      %80 = vsyncadd [#allocation10], %s79
      %s81 = sshll.u32 [#allocation11], 4
      %s82 = int_to_ptr.vmem [resolvable:$true] %s81
      %87 = dma.hbm_to_vmem [thread:$0]  %s8, 512, %s82, [#allocation10], 128, 128, 8
    $region37: #{discriminator_forward.1} parent=1 // pred_fallthru
      _
    // Predicated region
    $region38: #{discriminator_forward.1} parent=1 // pred_check
      _
    $region39: #{discriminator_forward.1} parent=1 // pred_check_branch
      %89 = sbr.rel (0) target = $region41
    $region40: #{discriminator_forward.1} parent=1 // pred_region
      _
    $region41: #{discriminator_forward.1} parent=1 // pred_fallthru
      _
    // Predicated region
    $region42: #{discriminator_forward.1} parent=1 // pred_check
      _
    $region43: #{discriminator_forward.1} parent=1 // pred_check_branch
      %91 = sbr.rel (0) target = $region45
    $region44: #{discriminator_forward.1} parent=1 // pred_region
      _
    $region45: #{discriminator_forward.1} parent=1 // pred_fallthru
      _
    // Predicated region
    $region46: #{discriminator_forward.1} parent=1 // pred_check
      _
    $region47: #{discriminator_forward.1} parent=1 // pred_check_branch
      %93 = sbr.rel (0) target = $region49
    $region48: #{discriminator_forward.1} parent=1 // pred_region
      %94 = dma.done [#allocation4], 256
    $region49: #{discriminator_forward.1} parent=1 // pred_fallthru
      _
    // Predicated region
    $region50: #{discriminator_forward.1} parent=1 // pred_check
      _
    $region51: #{discriminator_forward.1} parent=1 // pred_check_branch
      %96 = sbr.rel (0) target = $region53
    $region52: #{discriminator_forward.1} parent=1 // pred_region
      %97 = dma.done [#allocation7], 512
    $region53: #{discriminator_forward.1} parent=1 // pred_fallthru
      _
    // Predicated region
    $region54: #{discriminator_forward.1} parent=1 // pred_check
      _
    $region55: #{discriminator_forward.1} parent=1 // pred_check_branch
      %99 = sbr.rel (0) target = $region57
    $region56: #{discriminator_forward.1} parent=1 // pred_region
      %100 = dma.done [#allocation7], 2048
    $region57: #{discriminator_forward.1} parent=1 // pred_fallthru
      _
    // Predicated region
    $region58: #{discriminator_forward.1} parent=1 // pred_check
      _
    $region59: #{discriminator_forward.1} parent=1 // pred_check_branch
      %102 = sbr.rel (0) target = $region61
    $region60: #{discriminator_forward.1} parent=1 // pred_region
      %103 = dma.done [#allocation10], 512
    $region61: #{discriminator_forward.1} parent=1 // pred_fallthru
      _
    // Predicated region
    $region62: #{discriminator_forward.1} parent=1 // pred_check
      _
    $region63: #{discriminator_forward.1} parent=1 // pred_check_branch
      %105 = sbr.rel (0) target = $region65
    $region64: #{discriminator_forward.1} parent=1 // pred_region
      %106 = dma.done [#allocation10], 512
    $region65: #{discriminator_forward.1} parent=1 // pred_fallthru
      _
    %v107 = vld [vmem:[#allocation3] sm:$0xff]
    %v108 = vld [vmem:[#allocation3 + $0x8] sm:$0xff]
    %v109 = vld [vmem:[%s1] sm:$0xff]
    %v110 = vld [vmem:[%s1 + $0x8] sm:$0xff]
    %v111 = vld [vmem:[%s1 + $0x10] sm:$0xff]
    %v112 = vld [vmem:[%s1 + $0x18] sm:$0xff]
    %v113 = vld [vmem:[%s2] sm:$0x3]
    %v115 = vlaneseq
    %v116 = vshrl.u32 %v115, 7
    %v117 = vsub.s32 0, %v116
    %v118 = vrot.slane %v113, %v117
    %v119 = vlaneseq
    %v120 = vshrl.u32 %v119, 7
    %v121 = vsub.s32 1, %v120
    %v122 = vrot.slane %v113, %v121
    %vm125 = vcmask 130048
    %v127 = vsel %vm125, %v107, 0
    %v130 = vsel %vm125, %v108, 0
    %132 = vmatprep.subr.mxu0 0.0
    %133 = vmatpush1.msra.mxu0 0.0
    %134 = vmatprep.subr.mxu0 0.0
    %135 = vmatpush1.msra.mxu0 0.0
    %136 = vmatprep.subr.mxu0 0.0
    %137 = vmatpush1.msra.mxu0 0.0
    %138 = vmatprep.subr.mxu0 0.0
    %139 = vmatpush1.msra.mxu0 0.0
    %140 = vmatprep.subr.mxu0 0.0
    %141 = vmatpush1.msra.mxu0 0.0
    %142 = vmatprep.subr.mxu0 0.0
    %143 = vmatpush1.msra.mxu0 0.0
    %144 = vmatprep.subr.mxu0 0.0
    %145 = vmatpush1.msra.mxu0 0.0
    %146 = vmatprep.subr.mxu0 0.0
    %147 = vmatpush1.msra.mxu0 0.0
    %148 = vmatprep.subr.mxu0 0.0
    %149 = vmatpush1.msra.mxu0 0.0
    %150 = vmatprep.subr.mxu0 0.0
    %151 = vmatpush1.msra.mxu0 0.0
    %152 = vmatprep.subr.mxu0 0.0
    %153 = vmatpush1.msra.mxu0 0.0
    %154 = vmatprep.subr.mxu0 0.0
    %155 = vmatpush1.msra.mxu0 0.0
    %156 = vmatprep.subr.mxu0 0.0
    %157 = vmatpush1.msra.mxu0 0.0
    %158 = vmatprep.subr.mxu0 0.0
    %159 = vmatpush1.msra.mxu0 0.0
    %160 = vmatprep.subr.mxu0 %v112
    %161 = vmatpush1.msra.mxu0 %v111
    %162 = vmatprep.subr.mxu0 %v110
    %163 = vmatpush1.msra.mxu0 %v109
    %164 = vmatprep.subr.mxu0 0.0
    %165 = vmatpush2.msra.mxu0 0.0
    %166 = vmatprep.subr.mxu0 0.0
    %167 = vmatpush2.msra.mxu0 0.0
    %168 = vmatprep.subr.mxu0 0.0
    %169 = vmatpush2.msra.mxu0 0.0
    %170 = vmatprep.subr.mxu0 0.0
    %171 = vmatpush2.msra.mxu0 0.0
    %172 = vmatprep.subr.mxu0 0.0
    %173 = vmatpush2.msra.mxu0 0.0
    %174 = vmatprep.subr.mxu0 0.0
    %175 = vmatpush2.msra.mxu0 0.0
    %176 = vmatprep.subr.mxu0 0.0
    %177 = vmatpush2.msra.mxu0 0.0
    %178 = vmatprep.subr.mxu0 0.0
    %179 = vmatpush2.msra.mxu0 0.0
    %180 = vmatprep.subr.mxu0 0.0
    %181 = vmatpush2.msra.mxu0 0.0
    %182 = vmatprep.subr.mxu0 0.0
    %183 = vmatpush2.msra.mxu0 0.0
    %184 = vmatprep.subr.mxu0 0.0
    %185 = vmatpush2.msra.mxu0 0.0
    %186 = vmatprep.subr.mxu0 0.0
    %187 = vmatpush2.msra.mxu0 0.0
    %188 = vmatprep.subr.mxu0 0.0
    %189 = vmatpush2.msra.mxu0 0.0
    %190 = vmatprep.subr.mxu0 0.0
    %191 = vmatpush2.msra.mxu0 0.0
    %192 = vmatprep.subr.mxu0 0.0
    %193 = vmatpush2.msra.mxu0 0.0
    %194 = vmatprep.subr.mxu0 0.0
    %195 = vmatpush2.msra.mxu0 0.0
    %196 = vmatprep.mubr.f32.mxu0 0.0
    %197 = vmatmul.mubr.f32.gmra.mxu0 %v127
    %v198 = vpop.f32.mrf.mxu0
    %v199 = vadd.f32 %v118, %v198
    %v200 = vpop.f32.mrf.mxu0
    %v201 = vadd.f32 %v122, %v200
    %202 = vmatprep.mubr.f32.mxu0 0.0
    %203 = vmatmul.mubr.f32.gmra.mxu0 %v130
    %v204 = vpop.f32.mrf.mxu0
    %v205 = vadd.f32 %v118, %v204
    %v206 = vpop.f32.mrf.mxu0
    %v207 = vadd.f32 %v122, %v206
    %208 = vdwg.mxu0
    %v209 = vld [vmem:[%s3] sm:$0xff]
    %v210 = vld [vmem:[%s3 + $0x8] sm:$0xff]
    %v211 = vld [vmem:[%s3 + $0x10] sm:$0xff]
    %v212 = vld [vmem:[%s3 + $0x18] sm:$0xff]
    %v213 = vld [vmem:[#allocation6] sm:$0xff]
    %v214 = vld [vmem:[#allocation6 + $0x8] sm:$0xff]
    %v215 = vld [vmem:[#allocation6 + $0x10] sm:$0xff]
    %v216 = vld [vmem:[#allocation6 + $0x18] sm:$0xff]
    %vm217 = vcmask 261120
    %v219 = vsel %vm217, 0.0, 0
    %221 = vmatprep.subr.mxu0 0.0
    %222 = vmatpush1.msra.mxu0 0.0
    %223 = vmatprep.subr.mxu0 0.0
    %224 = vmatpush1.msra.mxu0 0.0
    %225 = vmatprep.subr.mxu0 0.0
    %226 = vmatpush1.msra.mxu0 0.0
    %227 = vmatprep.subr.mxu0 0.0
    %228 = vmatpush1.msra.mxu0 0.0
    %229 = vmatprep.subr.mxu0 0.0
    %230 = vmatpush1.msra.mxu0 0.0
    %231 = vmatprep.subr.mxu0 0.0
    %232 = vmatpush1.msra.mxu0 0.0
    %233 = vmatprep.subr.mxu0 0.0
    %234 = vmatpush1.msra.mxu0 0.0
    %235 = vmatprep.subr.mxu0 0.0
    %236 = vmatpush1.msra.mxu0 0.0
    %237 = vmatprep.subr.mxu0 0.0
    %238 = vmatpush1.msra.mxu0 0.0
    %239 = vmatprep.subr.mxu0 0.0
    %240 = vmatpush1.msra.mxu0 0.0
    %241 = vmatprep.subr.mxu0 0.0
    %242 = vmatpush1.msra.mxu0 0.0
    %243 = vmatprep.subr.mxu0 0.0
    %244 = vmatpush1.msra.mxu0 0.0
    %245 = vmatprep.subr.mxu0 0.0
    %246 = vmatpush1.msra.mxu0 %v212
    %247 = vmatprep.subr.mxu0 0.0
    %248 = vmatpush1.msra.mxu0 %v211
    %249 = vmatprep.subr.mxu0 0.0
    %250 = vmatpush1.msra.mxu0 %v210
    %251 = vmatprep.subr.mxu0 0.0
    %252 = vmatpush1.msra.mxu0 %v209
    %253 = vmatprep.subr.mxu0 0.0
    %254 = vmatpush2.msra.mxu0 0.0
    %255 = vmatprep.subr.mxu0 0.0
    %256 = vmatpush2.msra.mxu0 0.0
    %257 = vmatprep.subr.mxu0 0.0
    %258 = vmatpush2.msra.mxu0 0.0
    %259 = vmatprep.subr.mxu0 0.0
    %260 = vmatpush2.msra.mxu0 0.0
    %261 = vmatprep.subr.mxu0 0.0
    %262 = vmatpush2.msra.mxu0 0.0
    %263 = vmatprep.subr.mxu0 0.0
    %264 = vmatpush2.msra.mxu0 0.0
    %265 = vmatprep.subr.mxu0 0.0
    %266 = vmatpush2.msra.mxu0 0.0
    %267 = vmatprep.subr.mxu0 0.0
    %268 = vmatpush2.msra.mxu0 0.0
    %269 = vmatprep.subr.mxu0 0.0
    %270 = vmatpush2.msra.mxu0 0.0
    %271 = vmatprep.subr.mxu0 0.0
    %272 = vmatpush2.msra.mxu0 0.0
    %273 = vmatprep.subr.mxu0 0.0
    %274 = vmatpush2.msra.mxu0 0.0
    %275 = vmatprep.subr.mxu0 0.0
    %276 = vmatpush2.msra.mxu0 0.0
    %277 = vmatprep.subr.mxu0 0.0
    %278 = vmatpush2.msra.mxu0 0.0
    %279 = vmatprep.subr.mxu0 0.0
    %280 = vmatpush2.msra.mxu0 0.0
    %281 = vmatprep.subr.mxu0 0.0
    %282 = vmatpush2.msra.mxu0 0.0
    %283 = vmatprep.subr.mxu0 0.0
    %284 = vmatpush2.msra.mxu0 0.0
    %285 = vmatprep.mubr.f32.mxu0 0.0
    %286 = vmatmul.mubr.f32.gmra.mxu0 %v219
    %v287 = vpop.f32.mrf.mxu0
    %v288 = vadd.f32 0.0, %v287
    %v289 = vpop.f32.mrf.mxu0
    %290 = vdwg.mxu0
    %v291 = vadd.f32 %v199, %v288
    %292 = vmatprep.subr.mxu0 0.0
    %293 = vmatpush1.msra.mxu0 0.0
    %294 = vmatprep.subr.mxu0 0.0
    %295 = vmatpush1.msra.mxu0 0.0
    %296 = vmatprep.subr.mxu0 0.0
    %297 = vmatpush1.msra.mxu0 0.0
    %298 = vmatprep.subr.mxu0 0.0
    %299 = vmatpush1.msra.mxu0 0.0
    %300 = vmatprep.subr.mxu0 0.0
    %301 = vmatpush1.msra.mxu0 0.0
    %302 = vmatprep.subr.mxu0 0.0
    %303 = vmatpush1.msra.mxu0 0.0
    %304 = vmatprep.subr.mxu0 0.0
    %305 = vmatpush1.msra.mxu0 0.0
    %306 = vmatprep.subr.mxu0 0.0
    %307 = vmatpush1.msra.mxu0 0.0
    %308 = vmatprep.subr.mxu0 0.0
    %309 = vmatpush1.msra.mxu0 0.0
    %310 = vmatprep.subr.mxu0 0.0
    %311 = vmatpush1.msra.mxu0 0.0
    %312 = vmatprep.subr.mxu0 0.0
    %313 = vmatpush1.msra.mxu0 0.0
    %314 = vmatprep.subr.mxu0 0.0
    %315 = vmatpush1.msra.mxu0 0.0
    %316 = vmatprep.subr.mxu0 0.0
    %317 = vmatpush1.msra.mxu0 %v216
    %318 = vmatprep.subr.mxu0 0.0
    %319 = vmatpush1.msra.mxu0 %v215
    %320 = vmatprep.subr.mxu0 0.0
    %321 = vmatpush1.msra.mxu0 %v214
    %322 = vmatprep.subr.mxu0 0.0
    %323 = vmatpush1.msra.mxu0 %v213
    %324 = vmatprep.subr.mxu0 0.0
    %325 = vmatpush2.msra.mxu0 0.0
    %326 = vmatprep.subr.mxu0 0.0
    %327 = vmatpush2.msra.mxu0 0.0
    %328 = vmatprep.subr.mxu0 0.0
    %329 = vmatpush2.msra.mxu0 0.0
    %330 = vmatprep.subr.mxu0 0.0
    %331 = vmatpush2.msra.mxu0 0.0
    %332 = vmatprep.subr.mxu0 0.0
    %333 = vmatpush2.msra.mxu0 0.0
    %334 = vmatprep.subr.mxu0 0.0
    %335 = vmatpush2.msra.mxu0 0.0
    %336 = vmatprep.subr.mxu0 0.0
    %337 = vmatpush2.msra.mxu0 0.0
    %338 = vmatprep.subr.mxu0 0.0
    %339 = vmatpush2.msra.mxu0 0.0
    %340 = vmatprep.subr.mxu0 0.0
    %341 = vmatpush2.msra.mxu0 0.0
    %342 = vmatprep.subr.mxu0 0.0
    %343 = vmatpush2.msra.mxu0 0.0
    %344 = vmatprep.subr.mxu0 0.0
    %345 = vmatpush2.msra.mxu0 0.0
    %346 = vmatprep.subr.mxu0 0.0
    %347 = vmatpush2.msra.mxu0 0.0
    %348 = vmatprep.subr.mxu0 0.0
    %349 = vmatpush2.msra.mxu0 0.0
    %350 = vmatprep.subr.mxu0 0.0
    %351 = vmatpush2.msra.mxu0 0.0
    %352 = vmatprep.subr.mxu0 0.0
    %353 = vmatpush2.msra.mxu0 0.0
    %354 = vmatprep.subr.mxu0 0.0
    %355 = vmatpush2.msra.mxu0 0.0
    %356 = vmatprep.mubr.f32.mxu0 0.0
    %357 = vmatmul.mubr.f32.gmra.mxu0 %v219
    %v358 = vpop.f32.mrf.mxu0
    %v359 = vadd.f32 0.0, %v358
    %v360 = vpop.f32.mrf.mxu0
    %361 = vdwg.mxu0
    %v363 = vrot.slane %v359, 2
    %v365 = vadd.f32 %v207, %v363
    %v366 = vsub.f32 0.0, %v291
    %v367 = vmul.f32 %v366, 1.442695
    %v368 = vpow.pop %v367
    %v369 = vadd.f32 %v368, 1.0
    %v370 = vrcp.pop %v369
    %v371 = vmul.f32 1.0, %v370
    %v372 = vtanh.pop %v291
    %v373 = vmul.f32 %v371, 0.0
    %375 = vrot.lane.b32.xlu0 %v372, 64
    %v376 = vpop.permute.xlu0 %375
    %v378 = vmul.f32 %v371, %v376
    %380 = vrot.lane.b32.xlu0 %v378, 32
    %v381 = vpop.permute.xlu0 %380
    %v383 = vadd.f32 %v373, %v381
    %v384 = vtanh.pop %v383
    %386 = vrot.lane.b32.xlu0 %v384, 64
    %v387 = vpop.permute.xlu0 %386
    %v389 = vmul.f32 %v371, %v387
    %v390 = vsub.f32 0.0, %v365
    %v391 = vmul.f32 %v390, 1.442695
    %v392 = vpow.pop %v391
    %v393 = vadd.f32 %v392, 1.0
    %v394 = vrcp.pop %v393
    %v395 = vmul.f32 1.0, %v394
    %v396 = vtanh.pop %v365
    %v397 = vmul.f32 %v395, 0.0
    %399 = vrot.lane.b32.xlu0 %v396, 64
    %v400 = vpop.permute.xlu0 %399
    %v402 = vmul.f32 %v395, %v400
    %404 = vrot.lane.b32.xlu0 %v402, 32
    %v405 = vpop.permute.xlu0 %404
    %v407 = vadd.f32 %v397, %v405
    %v408 = vtanh.pop %v407
    %410 = vrot.lane.b32.xlu0 %v408, 64
    %v411 = vpop.permute.xlu0 %410
    %v413 = vmul.f32 %v395, %v411
    %415 = vrot.lane.b32.xlu0 %v389, 32
    %v416 = vpop.permute.xlu0 %415
    %vm418 = vcmask 254976
    %419 = vst.msk [vmem:[#allocation2] sm:$0x3] %vm418, %v416
    %421 = vrot.lane.b32.xlu0 %v413, 64
    %v422 = vpop.permute.xlu0 %421
    %vm424 = vcmask 523526
    %425 = vst.msk [vmem:[#allocation2 + $0x8] sm:$0xc0] %vm424, %v422
    %v426 = vsel %vm217, %v416, 0
    %428 = vmatprep.subr.mxu0 0.0
    %429 = vmatpush1.msra.mxu0 0.0
    %430 = vmatprep.subr.mxu0 0.0
    %431 = vmatpush1.msra.mxu0 0.0
    %432 = vmatprep.subr.mxu0 0.0
    %433 = vmatpush1.msra.mxu0 0.0
    %434 = vmatprep.subr.mxu0 0.0
    %435 = vmatpush1.msra.mxu0 0.0
    %436 = vmatprep.subr.mxu0 0.0
    %437 = vmatpush1.msra.mxu0 0.0
    %438 = vmatprep.subr.mxu0 0.0
    %439 = vmatpush1.msra.mxu0 0.0
    %440 = vmatprep.subr.mxu0 0.0
    %441 = vmatpush1.msra.mxu0 0.0
    %442 = vmatprep.subr.mxu0 0.0
    %443 = vmatpush1.msra.mxu0 0.0
    %444 = vmatprep.subr.mxu0 0.0
    %445 = vmatpush1.msra.mxu0 0.0
    %446 = vmatprep.subr.mxu0 0.0
    %447 = vmatpush1.msra.mxu0 0.0
    %448 = vmatprep.subr.mxu0 0.0
    %449 = vmatpush1.msra.mxu0 0.0
    %450 = vmatprep.subr.mxu0 0.0
    %451 = vmatpush1.msra.mxu0 0.0
    %452 = vmatprep.subr.mxu0 0.0
    %453 = vmatpush1.msra.mxu0 %v212
    %454 = vmatprep.subr.mxu0 0.0
    %455 = vmatpush1.msra.mxu0 %v211
    %456 = vmatprep.subr.mxu0 0.0
    %457 = vmatpush1.msra.mxu0 %v210
    %458 = vmatprep.subr.mxu0 0.0
    %459 = vmatpush1.msra.mxu0 %v209
    %460 = vmatprep.subr.mxu0 0.0
    %461 = vmatpush2.msra.mxu0 0.0
    %462 = vmatprep.subr.mxu0 0.0
    %463 = vmatpush2.msra.mxu0 0.0
    %464 = vmatprep.subr.mxu0 0.0
    %465 = vmatpush2.msra.mxu0 0.0
    %466 = vmatprep.subr.mxu0 0.0
    %467 = vmatpush2.msra.mxu0 0.0
    %468 = vmatprep.subr.mxu0 0.0
    %469 = vmatpush2.msra.mxu0 0.0
    %470 = vmatprep.subr.mxu0 0.0
    %471 = vmatpush2.msra.mxu0 0.0
    %472 = vmatprep.subr.mxu0 0.0
    %473 = vmatpush2.msra.mxu0 0.0
    %474 = vmatprep.subr.mxu0 0.0
    %475 = vmatpush2.msra.mxu0 0.0
    %476 = vmatprep.subr.mxu0 0.0
    %477 = vmatpush2.msra.mxu0 0.0
    %478 = vmatprep.subr.mxu0 0.0
    %479 = vmatpush2.msra.mxu0 0.0
    %480 = vmatprep.subr.mxu0 0.0
    %481 = vmatpush2.msra.mxu0 0.0
    %482 = vmatprep.subr.mxu0 0.0
    %483 = vmatpush2.msra.mxu0 0.0
    %484 = vmatprep.subr.mxu0 0.0
    %485 = vmatpush2.msra.mxu0 0.0
    %486 = vmatprep.subr.mxu0 0.0
    %487 = vmatpush2.msra.mxu0 0.0
    %488 = vmatprep.subr.mxu0 0.0
    %489 = vmatpush2.msra.mxu0 0.0
    %490 = vmatprep.subr.mxu0 0.0
    %491 = vmatpush2.msra.mxu0 0.0
    %492 = vmatprep.mubr.f32.mxu0 0.0
    %493 = vmatmul.mubr.f32.gmra.mxu0 %v426
    %v494 = vpop.f32.mrf.mxu0
    %v495 = vadd.f32 0.0, %v494
    %v496 = vpop.f32.mrf.mxu0
    %497 = vdwg.mxu0
    %v499 = vrot.slane %v495, 6
    %v501 = vadd.f32 %v199, %v499
    %v502 = vrot.slane %v413, 6
    %503 = vrot.lane.b32.xlu0 %v502, 32
    %v504 = vpop.permute.xlu0 %503
    %v505 = vsel %vm217, %v504, 0
    %507 = vmatprep.subr.mxu0 0.0
    %508 = vmatpush1.msra.mxu0 0.0
    %509 = vmatprep.subr.mxu0 0.0
    %510 = vmatpush1.msra.mxu0 0.0
    %511 = vmatprep.subr.mxu0 0.0
    %512 = vmatpush1.msra.mxu0 0.0
    %513 = vmatprep.subr.mxu0 0.0
    %514 = vmatpush1.msra.mxu0 0.0
    %515 = vmatprep.subr.mxu0 0.0
    %516 = vmatpush1.msra.mxu0 0.0
    %517 = vmatprep.subr.mxu0 0.0
    %518 = vmatpush1.msra.mxu0 0.0
    %519 = vmatprep.subr.mxu0 0.0
    %520 = vmatpush1.msra.mxu0 0.0
    %521 = vmatprep.subr.mxu0 0.0
    %522 = vmatpush1.msra.mxu0 0.0
    %523 = vmatprep.subr.mxu0 0.0
    %524 = vmatpush1.msra.mxu0 0.0
    %525 = vmatprep.subr.mxu0 0.0
    %526 = vmatpush1.msra.mxu0 0.0
    %527 = vmatprep.subr.mxu0 0.0
    %528 = vmatpush1.msra.mxu0 0.0
    %529 = vmatprep.subr.mxu0 0.0
    %530 = vmatpush1.msra.mxu0 0.0
    %531 = vmatprep.subr.mxu0 0.0
    %532 = vmatpush1.msra.mxu0 %v216
    %533 = vmatprep.subr.mxu0 0.0
    %534 = vmatpush1.msra.mxu0 %v215
    %535 = vmatprep.subr.mxu0 0.0
    %536 = vmatpush1.msra.mxu0 %v214
    %537 = vmatprep.subr.mxu0 0.0
    %538 = vmatpush1.msra.mxu0 %v213
    %539 = vmatprep.subr.mxu0 0.0
    %540 = vmatpush2.msra.mxu0 0.0
    %541 = vmatprep.subr.mxu0 0.0
    %542 = vmatpush2.msra.mxu0 0.0
    %543 = vmatprep.subr.mxu0 0.0
    %544 = vmatpush2.msra.mxu0 0.0
    %545 = vmatprep.subr.mxu0 0.0
    %546 = vmatpush2.msra.mxu0 0.0
    %547 = vmatprep.subr.mxu0 0.0
    %548 = vmatpush2.msra.mxu0 0.0
    %549 = vmatprep.subr.mxu0 0.0
    %550 = vmatpush2.msra.mxu0 0.0
    %551 = vmatprep.subr.mxu0 0.0
    %552 = vmatpush2.msra.mxu0 0.0
    %553 = vmatprep.subr.mxu0 0.0
    %554 = vmatpush2.msra.mxu0 0.0
    %555 = vmatprep.subr.mxu0 0.0
    %556 = vmatpush2.msra.mxu0 0.0
    %557 = vmatprep.subr.mxu0 0.0
    %558 = vmatpush2.msra.mxu0 0.0
    %559 = vmatprep.subr.mxu0 0.0
    %560 = vmatpush2.msra.mxu0 0.0
    %561 = vmatprep.subr.mxu0 0.0
    %562 = vmatpush2.msra.mxu0 0.0
    %563 = vmatprep.subr.mxu0 0.0
    %564 = vmatpush2.msra.mxu0 0.0
    %565 = vmatprep.subr.mxu0 0.0
    %566 = vmatpush2.msra.mxu0 0.0
    %567 = vmatprep.subr.mxu0 0.0
    %568 = vmatpush2.msra.mxu0 0.0
    %569 = vmatprep.subr.mxu0 0.0
    %570 = vmatpush2.msra.mxu0 0.0
    %571 = vmatprep.mubr.f32.mxu0 0.0
    %572 = vmatmul.mubr.f32.gmra.mxu0 %v505
    %v573 = vpop.f32.mrf.mxu0
    %v574 = vadd.f32 0.0, %v573
    %v575 = vpop.f32.mrf.mxu0
    %576 = vdwg.mxu0
    %v578 = vrot.slane %v574, 4
    %v580 = vadd.f32 %v207, %v578
    %v581 = vsub.f32 0.0, %v501
    %v582 = vmul.f32 %v581, 1.442695
    %v583 = vpow.pop %v582
    %v584 = vadd.f32 %v583, 1.0
    %v585 = vrcp.pop %v584
    %v586 = vmul.f32 1.0, %v585
    %v587 = vtanh.pop %v501
    %v589 = vrot.slane %v383, 6
    %v591 = vmul.f32 %v586, %v589
    %593 = vrot.lane.b32.xlu0 %v587, 64
    %v594 = vpop.permute.xlu0 %593
    %v596 = vmul.f32 %v586, %v594
    %598 = vrot.lane.b32.xlu0 %v596, 32
    %v599 = vpop.permute.xlu0 %598
    %v601 = vadd.f32 %v591, %v599
    %v602 = vtanh.pop %v601
    %604 = vrot.lane.b32.xlu0 %v602, 64
    %v605 = vpop.permute.xlu0 %604
    %v607 = vmul.f32 %v586, %v605
    %v608 = vsub.f32 0.0, %v580
    %v609 = vmul.f32 %v608, 1.442695
    %v610 = vpow.pop %v609
    %v611 = vadd.f32 %v610, 1.0
    %v612 = vrcp.pop %v611
    %v613 = vmul.f32 1.0, %v612
    %v614 = vtanh.pop %v580
    %v616 = vrot.slane %v407, 2
    %v618 = vmul.f32 %v613, %v616
    %620 = vrot.lane.b32.xlu0 %v614, 64
    %v621 = vpop.permute.xlu0 %620
    %v623 = vmul.f32 %v613, %v621
    %625 = vrot.lane.b32.xlu0 %v623, 32
    %v626 = vpop.permute.xlu0 %625
    %v628 = vadd.f32 %v618, %v626
    %v629 = vtanh.pop %v628
    %631 = vrot.lane.b32.xlu0 %v629, 64
    %v632 = vpop.permute.xlu0 %631
    %v634 = vmul.f32 %v613, %v632
    %636 = vrot.lane.b32.xlu0 %v607, 32
    %v637 = vpop.permute.xlu0 %636
    %vm639 = vcmask 257026
    %640 = vst.msk [vmem:[#allocation2] sm:$0xc] %vm639, %v637
    %642 = vrot.lane.b32.xlu0 %v634, 64
    %v643 = vpop.permute.xlu0 %642
    %vm645 = vcmask 521476
    %646 = vst.msk [vmem:[#allocation2 + $0x8] sm:$0x30] %vm645, %v643
    %v647 = vrot.slane %v607, 2
    %648 = vrot.lane.b32.xlu0 %v647, 32
    %v649 = vpop.permute.xlu0 %648
    %v650 = vsel %vm217, %v649, 0
    %652 = vmatprep.subr.mxu0 0.0
    %653 = vmatpush1.msra.mxu0 0.0
    %654 = vmatprep.subr.mxu0 0.0
    %655 = vmatpush1.msra.mxu0 0.0
    %656 = vmatprep.subr.mxu0 0.0
    %657 = vmatpush1.msra.mxu0 0.0
    %658 = vmatprep.subr.mxu0 0.0
    %659 = vmatpush1.msra.mxu0 0.0
    %660 = vmatprep.subr.mxu0 0.0
    %661 = vmatpush1.msra.mxu0 0.0
    %662 = vmatprep.subr.mxu0 0.0
    %663 = vmatpush1.msra.mxu0 0.0
    %664 = vmatprep.subr.mxu0 0.0
    %665 = vmatpush1.msra.mxu0 0.0
    %666 = vmatprep.subr.mxu0 0.0
    %667 = vmatpush1.msra.mxu0 0.0
    %668 = vmatprep.subr.mxu0 0.0
    %669 = vmatpush1.msra.mxu0 0.0
    %670 = vmatprep.subr.mxu0 0.0
    %671 = vmatpush1.msra.mxu0 0.0
    %672 = vmatprep.subr.mxu0 0.0
    %673 = vmatpush1.msra.mxu0 0.0
    %674 = vmatprep.subr.mxu0 0.0
    %675 = vmatpush1.msra.mxu0 0.0
    %676 = vmatprep.subr.mxu0 0.0
    %677 = vmatpush1.msra.mxu0 %v212
    %678 = vmatprep.subr.mxu0 0.0
    %679 = vmatpush1.msra.mxu0 %v211
    %680 = vmatprep.subr.mxu0 0.0
    %681 = vmatpush1.msra.mxu0 %v210
    %682 = vmatprep.subr.mxu0 0.0
    %683 = vmatpush1.msra.mxu0 %v209
    %684 = vmatprep.subr.mxu0 0.0
    %685 = vmatpush2.msra.mxu0 0.0
    %686 = vmatprep.subr.mxu0 0.0
    %687 = vmatpush2.msra.mxu0 0.0
    %688 = vmatprep.subr.mxu0 0.0
    %689 = vmatpush2.msra.mxu0 0.0
    %690 = vmatprep.subr.mxu0 0.0
    %691 = vmatpush2.msra.mxu0 0.0
    %692 = vmatprep.subr.mxu0 0.0
    %693 = vmatpush2.msra.mxu0 0.0
    %694 = vmatprep.subr.mxu0 0.0
    %695 = vmatpush2.msra.mxu0 0.0
    %696 = vmatprep.subr.mxu0 0.0
    %697 = vmatpush2.msra.mxu0 0.0
    %698 = vmatprep.subr.mxu0 0.0
    %699 = vmatpush2.msra.mxu0 0.0
    %700 = vmatprep.subr.mxu0 0.0
    %701 = vmatpush2.msra.mxu0 0.0
    %702 = vmatprep.subr.mxu0 0.0
    %703 = vmatpush2.msra.mxu0 0.0
    %704 = vmatprep.subr.mxu0 0.0
    %705 = vmatpush2.msra.mxu0 0.0
    %706 = vmatprep.subr.mxu0 0.0
    %707 = vmatpush2.msra.mxu0 0.0
    %708 = vmatprep.subr.mxu0 0.0
    %709 = vmatpush2.msra.mxu0 0.0
    %710 = vmatprep.subr.mxu0 0.0
    %711 = vmatpush2.msra.mxu0 0.0
    %712 = vmatprep.subr.mxu0 0.0
    %713 = vmatpush2.msra.mxu0 0.0
    %714 = vmatprep.subr.mxu0 0.0
    %715 = vmatpush2.msra.mxu0 0.0
    %716 = vmatprep.mubr.f32.mxu0 0.0
    %717 = vmatmul.mubr.f32.gmra.mxu0 %v650
    %v718 = vpop.f32.mrf.mxu0
    %v719 = vadd.f32 0.0, %v718
    %v720 = vpop.f32.mrf.mxu0
    %721 = vdwg.mxu0
    %v723 = vrot.slane %v719, 4
    %v725 = vadd.f32 %v199, %v723
    %v726 = vrot.slane %v634, 4
    %727 = vrot.lane.b32.xlu0 %v726, 32
    %v728 = vpop.permute.xlu0 %727
    %v729 = vsel %vm217, %v728, 0
    %731 = vmatprep.subr.mxu0 0.0
    %732 = vmatpush1.msra.mxu0 0.0
    %733 = vmatprep.subr.mxu0 0.0
    %734 = vmatpush1.msra.mxu0 0.0
    %735 = vmatprep.subr.mxu0 0.0
    %736 = vmatpush1.msra.mxu0 0.0
    %737 = vmatprep.subr.mxu0 0.0
    %738 = vmatpush1.msra.mxu0 0.0
    %739 = vmatprep.subr.mxu0 0.0
    %740 = vmatpush1.msra.mxu0 0.0
    %741 = vmatprep.subr.mxu0 0.0
    %742 = vmatpush1.msra.mxu0 0.0
    %743 = vmatprep.subr.mxu0 0.0
    %744 = vmatpush1.msra.mxu0 0.0
    %745 = vmatprep.subr.mxu0 0.0
    %746 = vmatpush1.msra.mxu0 0.0
    %747 = vmatprep.subr.mxu0 0.0
    %748 = vmatpush1.msra.mxu0 0.0
    %749 = vmatprep.subr.mxu0 0.0
    %750 = vmatpush1.msra.mxu0 0.0
    %751 = vmatprep.subr.mxu0 0.0
    %752 = vmatpush1.msra.mxu0 0.0
    %753 = vmatprep.subr.mxu0 0.0
    %754 = vmatpush1.msra.mxu0 0.0
    %755 = vmatprep.subr.mxu0 0.0
    %756 = vmatpush1.msra.mxu0 %v216
    %757 = vmatprep.subr.mxu0 0.0
    %758 = vmatpush1.msra.mxu0 %v215
    %759 = vmatprep.subr.mxu0 0.0
    %760 = vmatpush1.msra.mxu0 %v214
    %761 = vmatprep.subr.mxu0 0.0
    %762 = vmatpush1.msra.mxu0 %v213
    %763 = vmatprep.subr.mxu0 0.0
    %764 = vmatpush2.msra.mxu0 0.0
    %765 = vmatprep.subr.mxu0 0.0
    %766 = vmatpush2.msra.mxu0 0.0
    %767 = vmatprep.subr.mxu0 0.0
    %768 = vmatpush2.msra.mxu0 0.0
    %769 = vmatprep.subr.mxu0 0.0
    %770 = vmatpush2.msra.mxu0 0.0
    %771 = vmatprep.subr.mxu0 0.0
    %772 = vmatpush2.msra.mxu0 0.0
    %773 = vmatprep.subr.mxu0 0.0
    %774 = vmatpush2.msra.mxu0 0.0
    %775 = vmatprep.subr.mxu0 0.0
    %776 = vmatpush2.msra.mxu0 0.0
    %777 = vmatprep.subr.mxu0 0.0
    %778 = vmatpush2.msra.mxu0 0.0
    %779 = vmatprep.subr.mxu0 0.0
    %780 = vmatpush2.msra.mxu0 0.0
    %781 = vmatprep.subr.mxu0 0.0
    %782 = vmatpush2.msra.mxu0 0.0
    %783 = vmatprep.subr.mxu0 0.0
    %784 = vmatpush2.msra.mxu0 0.0
    %785 = vmatprep.subr.mxu0 0.0
    %786 = vmatpush2.msra.mxu0 0.0
    %787 = vmatprep.subr.mxu0 0.0
    %788 = vmatpush2.msra.mxu0 0.0
    %789 = vmatprep.subr.mxu0 0.0
    %790 = vmatpush2.msra.mxu0 0.0
    %791 = vmatprep.subr.mxu0 0.0
    %792 = vmatpush2.msra.mxu0 0.0
    %793 = vmatprep.subr.mxu0 0.0
    %794 = vmatpush2.msra.mxu0 0.0
    %795 = vmatprep.mubr.f32.mxu0 0.0
    %796 = vmatmul.mubr.f32.gmra.mxu0 %v729
    %v797 = vpop.f32.mrf.mxu0
    %v798 = vadd.f32 0.0, %v797
    %v799 = vpop.f32.mrf.mxu0
    %800 = vdwg.mxu0
    %v802 = vrot.slane %v798, 6
    %v804 = vadd.f32 %v207, %v802
    %v805 = vsub.f32 0.0, %v725
    %v806 = vmul.f32 %v805, 1.442695
    %v807 = vpow.pop %v806
    %v808 = vadd.f32 %v807, 1.0
    %v809 = vrcp.pop %v808
    %v810 = vmul.f32 1.0, %v809
    %v811 = vtanh.pop %v725
    %v813 = vrot.slane %v601, 6
    %v815 = vmul.f32 %v810, %v813
    %817 = vrot.lane.b32.xlu0 %v811, 64
    %v818 = vpop.permute.xlu0 %817
    %v820 = vmul.f32 %v810, %v818
    %822 = vrot.lane.b32.xlu0 %v820, 32
    %v823 = vpop.permute.xlu0 %822
    %v825 = vadd.f32 %v815, %v823
    %v826 = vtanh.pop %v825
    %828 = vrot.lane.b32.xlu0 %v826, 64
    %v829 = vpop.permute.xlu0 %828
    %v831 = vmul.f32 %v810, %v829
    %v832 = vsub.f32 0.0, %v804
    %v833 = vmul.f32 %v832, 1.442695
    %v834 = vpow.pop %v833
    %v835 = vadd.f32 %v834, 1.0
    %v836 = vrcp.pop %v835
    %v837 = vmul.f32 1.0, %v836
    %v838 = vtanh.pop %v804
    %v840 = vrot.slane %v628, 2
    %v842 = vmul.f32 %v837, %v840
    %844 = vrot.lane.b32.xlu0 %v838, 64
    %v845 = vpop.permute.xlu0 %844
    %v847 = vmul.f32 %v837, %v845
    %849 = vrot.lane.b32.xlu0 %v847, 32
    %v850 = vpop.permute.xlu0 %849
    %v852 = vadd.f32 %v842, %v850
    %v853 = vtanh.pop %v852
    %855 = vrot.lane.b32.xlu0 %v853, 64
    %v856 = vpop.permute.xlu0 %855
    %v858 = vmul.f32 %v837, %v856
    %860 = vrot.lane.b32.xlu0 %v831, 32
    %v861 = vpop.permute.xlu0 %860
    %vm863 = vcmask 259076
    %864 = vst.msk [vmem:[#allocation2] sm:$0x30] %vm863, %v861
    %866 = vrot.lane.b32.xlu0 %v858, 64
    %v867 = vpop.permute.xlu0 %866
    %vm869 = vcmask 519426
    %870 = vst.msk [vmem:[#allocation2 + $0x8] sm:$0xc] %vm869, %v867
    %v871 = vrot.slane %v831, 4
    %872 = vrot.lane.b32.xlu0 %v871, 32
    %v873 = vpop.permute.xlu0 %872
    %v874 = vsel %vm217, %v873, 0
    %876 = vmatprep.subr.mxu0 0.0
    %877 = vmatpush1.msra.mxu0 0.0
    %878 = vmatprep.subr.mxu0 0.0
    %879 = vmatpush1.msra.mxu0 0.0
    %880 = vmatprep.subr.mxu0 0.0
    %881 = vmatpush1.msra.mxu0 0.0
    %882 = vmatprep.subr.mxu0 0.0
    %883 = vmatpush1.msra.mxu0 0.0
    %884 = vmatprep.subr.mxu0 0.0
    %885 = vmatpush1.msra.mxu0 0.0
    %886 = vmatprep.subr.mxu0 0.0
    %887 = vmatpush1.msra.mxu0 0.0
    %888 = vmatprep.subr.mxu0 0.0
    %889 = vmatpush1.msra.mxu0 0.0
    %890 = vmatprep.subr.mxu0 0.0
    %891 = vmatpush1.msra.mxu0 0.0
    %892 = vmatprep.subr.mxu0 0.0
    %893 = vmatpush1.msra.mxu0 0.0
    %894 = vmatprep.subr.mxu0 0.0
    %895 = vmatpush1.msra.mxu0 0.0
    %896 = vmatprep.subr.mxu0 0.0
    %897 = vmatpush1.msra.mxu0 0.0
    %898 = vmatprep.subr.mxu0 0.0
    %899 = vmatpush1.msra.mxu0 0.0
    %900 = vmatprep.subr.mxu0 0.0
    %901 = vmatpush1.msra.mxu0 %v212
    %902 = vmatprep.subr.mxu0 0.0
    %903 = vmatpush1.msra.mxu0 %v211
    %904 = vmatprep.subr.mxu0 0.0
    %905 = vmatpush1.msra.mxu0 %v210
    %906 = vmatprep.subr.mxu0 0.0
    %907 = vmatpush1.msra.mxu0 %v209
    %908 = vmatprep.subr.mxu0 0.0
    %909 = vmatpush2.msra.mxu0 0.0
    %910 = vmatprep.subr.mxu0 0.0
    %911 = vmatpush2.msra.mxu0 0.0
    %912 = vmatprep.subr.mxu0 0.0
    %913 = vmatpush2.msra.mxu0 0.0
    %914 = vmatprep.subr.mxu0 0.0
    %915 = vmatpush2.msra.mxu0 0.0
    %916 = vmatprep.subr.mxu0 0.0
    %917 = vmatpush2.msra.mxu0 0.0
    %918 = vmatprep.subr.mxu0 0.0
    %919 = vmatpush2.msra.mxu0 0.0
    %920 = vmatprep.subr.mxu0 0.0
    %921 = vmatpush2.msra.mxu0 0.0
    %922 = vmatprep.subr.mxu0 0.0
    %923 = vmatpush2.msra.mxu0 0.0
    %924 = vmatprep.subr.mxu0 0.0
    %925 = vmatpush2.msra.mxu0 0.0
    %926 = vmatprep.subr.mxu0 0.0
    %927 = vmatpush2.msra.mxu0 0.0
    %928 = vmatprep.subr.mxu0 0.0
    %929 = vmatpush2.msra.mxu0 0.0
    %930 = vmatprep.subr.mxu0 0.0
    %931 = vmatpush2.msra.mxu0 0.0
    %932 = vmatprep.subr.mxu0 0.0
    %933 = vmatpush2.msra.mxu0 0.0
    %934 = vmatprep.subr.mxu0 0.0
    %935 = vmatpush2.msra.mxu0 0.0
    %936 = vmatprep.subr.mxu0 0.0
    %937 = vmatpush2.msra.mxu0 0.0
    %938 = vmatprep.subr.mxu0 0.0
    %939 = vmatpush2.msra.mxu0 0.0
    %940 = vmatprep.mubr.f32.mxu0 0.0
    %941 = vmatmul.mubr.f32.gmra.mxu0 %v874
    %v942 = vpop.f32.mrf.mxu0
    %v943 = vadd.f32 0.0, %v942
    %v944 = vpop.f32.mrf.mxu0
    %945 = vdwg.mxu0
    %v947 = vrot.slane %v943, 2
    %v949 = vadd.f32 %v199, %v947
    %v950 = vrot.slane %v858, 2
    %951 = vrot.lane.b32.xlu0 %v950, 32
    %v952 = vpop.permute.xlu0 %951
    %v953 = vsel %vm217, %v952, 0
    %955 = vmatprep.subr.mxu0 0.0
    %956 = vmatpush1.msra.mxu0 0.0
    %957 = vmatprep.subr.mxu0 0.0
    %958 = vmatpush1.msra.mxu0 0.0
    %959 = vmatprep.subr.mxu0 0.0
    %960 = vmatpush1.msra.mxu0 0.0
    %961 = vmatprep.subr.mxu0 0.0
    %962 = vmatpush1.msra.mxu0 0.0
    %963 = vmatprep.subr.mxu0 0.0
    %964 = vmatpush1.msra.mxu0 0.0
    %965 = vmatprep.subr.mxu0 0.0
    %966 = vmatpush1.msra.mxu0 0.0
    %967 = vmatprep.subr.mxu0 0.0
    %968 = vmatpush1.msra.mxu0 0.0
    %969 = vmatprep.subr.mxu0 0.0
    %970 = vmatpush1.msra.mxu0 0.0
    %971 = vmatprep.subr.mxu0 0.0
    %972 = vmatpush1.msra.mxu0 0.0
    %973 = vmatprep.subr.mxu0 0.0
    %974 = vmatpush1.msra.mxu0 0.0
    %975 = vmatprep.subr.mxu0 0.0
    %976 = vmatpush1.msra.mxu0 0.0
    %977 = vmatprep.subr.mxu0 0.0
    %978 = vmatpush1.msra.mxu0 0.0
    %979 = vmatprep.subr.mxu0 0.0
    %980 = vmatpush1.msra.mxu0 %v216
    %981 = vmatprep.subr.mxu0 0.0
    %982 = vmatpush1.msra.mxu0 %v215
    %983 = vmatprep.subr.mxu0 0.0
    %984 = vmatpush1.msra.mxu0 %v214
    %985 = vmatprep.subr.mxu0 0.0
    %986 = vmatpush1.msra.mxu0 %v213
    %987 = vmatprep.subr.mxu0 0.0
    %988 = vmatpush2.msra.mxu0 0.0
    %989 = vmatprep.subr.mxu0 0.0
    %990 = vmatpush2.msra.mxu0 0.0
    %991 = vmatprep.subr.mxu0 0.0
    %992 = vmatpush2.msra.mxu0 0.0
    %993 = vmatprep.subr.mxu0 0.0
    %994 = vmatpush2.msra.mxu0 0.0
    %995 = vmatprep.subr.mxu0 0.0
    %996 = vmatpush2.msra.mxu0 0.0
    %997 = vmatprep.subr.mxu0 0.0
    %998 = vmatpush2.msra.mxu0 0.0
    %999 = vmatprep.subr.mxu0 0.0
    %1000 = vmatpush2.msra.mxu0 0.0
    %1001 = vmatprep.subr.mxu0 0.0
    %1002 = vmatpush2.msra.mxu0 0.0
    %1003 = vmatprep.subr.mxu0 0.0
    %1004 = vmatpush2.msra.mxu0 0.0
    %1005 = vmatprep.subr.mxu0 0.0
    %1006 = vmatpush2.msra.mxu0 0.0
    %1007 = vmatprep.subr.mxu0 0.0
    %1008 = vmatpush2.msra.mxu0 0.0
    %1009 = vmatprep.subr.mxu0 0.0
    %1010 = vmatpush2.msra.mxu0 0.0
    %1011 = vmatprep.subr.mxu0 0.0
    %1012 = vmatpush2.msra.mxu0 0.0
    %1013 = vmatprep.subr.mxu0 0.0
    %1014 = vmatpush2.msra.mxu0 0.0
    %1015 = vmatprep.subr.mxu0 0.0
    %1016 = vmatpush2.msra.mxu0 0.0
    %1017 = vmatprep.subr.mxu0 0.0
    %1018 = vmatpush2.msra.mxu0 0.0
    %1019 = vmatprep.mubr.f32.mxu0 0.0
    %1020 = vmatmul.mubr.f32.gmra.mxu0 %v953
    %v1021 = vpop.f32.mrf.mxu0
    %v1022 = vadd.f32 0.0, %v1021
    %v1023 = vpop.f32.mrf.mxu0
    %1024 = vdwg.mxu0
    %v1025 = vadd.f32 %v207, %v1022
    %v1026 = vsub.f32 0.0, %v949
    %v1027 = vmul.f32 %v1026, 1.442695
    %v1028 = vpow.pop %v1027
    %v1029 = vadd.f32 %v1028, 1.0
    %v1030 = vrcp.pop %v1029
    %v1031 = vmul.f32 1.0, %v1030
    %v1032 = vtanh.pop %v949
    %v1034 = vrot.slane %v825, 6
    %v1036 = vmul.f32 %v1031, %v1034
    %1038 = vrot.lane.b32.xlu0 %v1032, 64
    %v1039 = vpop.permute.xlu0 %1038
    %v1041 = vmul.f32 %v1031, %v1039
    %1043 = vrot.lane.b32.xlu0 %v1041, 32
    %v1044 = vpop.permute.xlu0 %1043
    %v1046 = vadd.f32 %v1036, %v1044
    %v1047 = vtanh.pop %v1046
    %1049 = vrot.lane.b32.xlu0 %v1047, 64
    %v1050 = vpop.permute.xlu0 %1049
    %v1052 = vmul.f32 %v1031, %v1050
    %v1053 = vsub.f32 0.0, %v1025
    %v1054 = vmul.f32 %v1053, 1.442695
    %v1055 = vpow.pop %v1054
    %v1056 = vadd.f32 %v1055, 1.0
    %v1057 = vrcp.pop %v1056
    %v1058 = vmul.f32 1.0, %v1057
    %v1059 = vtanh.pop %v1025
    %v1061 = vrot.slane %v852, 2
    %v1063 = vmul.f32 %v1058, %v1061
    %1065 = vrot.lane.b32.xlu0 %v1059, 64
    %v1066 = vpop.permute.xlu0 %1065
    %v1068 = vmul.f32 %v1058, %v1066
    %1070 = vrot.lane.b32.xlu0 %v1068, 32
    %v1071 = vpop.permute.xlu0 %1070
    %v1073 = vadd.f32 %v1063, %v1071
    %v1074 = vtanh.pop %v1073
    %1076 = vrot.lane.b32.xlu0 %v1074, 64
    %v1077 = vpop.permute.xlu0 %1076
    %v1079 = vmul.f32 %v1058, %v1077
    %1081 = vrot.lane.b32.xlu0 %v1052, 32
    %v1082 = vpop.permute.xlu0 %1081
    %vm1084 = vcmask 261126
    %1085 = vst.msk [vmem:[#allocation2] sm:$0xc0] %vm1084, %v1082
    %1087 = vrot.lane.b32.xlu0 %v1079, 64
    %v1088 = vpop.permute.xlu0 %1087
    %vm1090 = vcmask 517376
    %1091 = vst.msk [vmem:[#allocation2 + $0x8] sm:$0x3] %vm1090, %v1088
    %v1092 = vrot.slane %v1052, 6
    %1093 = vrot.lane.b32.xlu0 %v1092, 32
    %v1094 = vpop.permute.xlu0 %1093
    %v1095 = vsel %vm217, %v1094, 0
    %1097 = vmatprep.subr.mxu0 0.0
    %1098 = vmatpush1.msra.mxu0 0.0
    %1099 = vmatprep.subr.mxu0 0.0
    %1100 = vmatpush1.msra.mxu0 0.0
    %1101 = vmatprep.subr.mxu0 0.0
    %1102 = vmatpush1.msra.mxu0 0.0
    %1103 = vmatprep.subr.mxu0 0.0
    %1104 = vmatpush1.msra.mxu0 0.0
    %1105 = vmatprep.subr.mxu0 0.0
    %1106 = vmatpush1.msra.mxu0 0.0
    %1107 = vmatprep.subr.mxu0 0.0
    %1108 = vmatpush1.msra.mxu0 0.0
    %1109 = vmatprep.subr.mxu0 0.0
    %1110 = vmatpush1.msra.mxu0 0.0
    %1111 = vmatprep.subr.mxu0 0.0
    %1112 = vmatpush1.msra.mxu0 0.0
    %1113 = vmatprep.subr.mxu0 0.0
    %1114 = vmatpush1.msra.mxu0 0.0
    %1115 = vmatprep.subr.mxu0 0.0
    %1116 = vmatpush1.msra.mxu0 0.0
    %1117 = vmatprep.subr.mxu0 0.0
    %1118 = vmatpush1.msra.mxu0 0.0
    %1119 = vmatprep.subr.mxu0 0.0
    %1120 = vmatpush1.msra.mxu0 0.0
    %1121 = vmatprep.subr.mxu0 0.0
    %1122 = vmatpush1.msra.mxu0 %v212
    %1123 = vmatprep.subr.mxu0 0.0
    %1124 = vmatpush1.msra.mxu0 %v211
    %1125 = vmatprep.subr.mxu0 0.0
    %1126 = vmatpush1.msra.mxu0 %v210
    %1127 = vmatprep.subr.mxu0 0.0
    %1128 = vmatpush1.msra.mxu0 %v209
    %1129 = vmatprep.subr.mxu0 0.0
    %1130 = vmatpush2.msra.mxu0 0.0
    %1131 = vmatprep.subr.mxu0 0.0
    %1132 = vmatpush2.msra.mxu0 0.0
    %1133 = vmatprep.subr.mxu0 0.0
    %1134 = vmatpush2.msra.mxu0 0.0
    %1135 = vmatprep.subr.mxu0 0.0
    %1136 = vmatpush2.msra.mxu0 0.0
    %1137 = vmatprep.subr.mxu0 0.0
    %1138 = vmatpush2.msra.mxu0 0.0
    %1139 = vmatprep.subr.mxu0 0.0
    %1140 = vmatpush2.msra.mxu0 0.0
    %1141 = vmatprep.subr.mxu0 0.0
    %1142 = vmatpush2.msra.mxu0 0.0
    %1143 = vmatprep.subr.mxu0 0.0
    %1144 = vmatpush2.msra.mxu0 0.0
    %1145 = vmatprep.subr.mxu0 0.0
    %1146 = vmatpush2.msra.mxu0 0.0
    %1147 = vmatprep.subr.mxu0 0.0
    %1148 = vmatpush2.msra.mxu0 0.0
    %1149 = vmatprep.subr.mxu0 0.0
    %1150 = vmatpush2.msra.mxu0 0.0
    %1151 = vmatprep.subr.mxu0 0.0
    %1152 = vmatpush2.msra.mxu0 0.0
    %1153 = vmatprep.subr.mxu0 0.0
    %1154 = vmatpush2.msra.mxu0 0.0
    %1155 = vmatprep.subr.mxu0 0.0
    %1156 = vmatpush2.msra.mxu0 0.0
    %1157 = vmatprep.subr.mxu0 0.0
    %1158 = vmatpush2.msra.mxu0 0.0
    %1159 = vmatprep.subr.mxu0 0.0
    %1160 = vmatpush2.msra.mxu0 0.0
    %1161 = vmatprep.mubr.f32.mxu0 0.0
    %1162 = vmatmul.mubr.f32.gmra.mxu0 %v1095
    %v1163 = vpop.f32.mrf.mxu0
    %v1164 = vadd.f32 0.0, %v1163
    %v1165 = vpop.f32.mrf.mxu0
    %1166 = vdwg.mxu0
    %v1167 = vadd.f32 %v205, %v1164
    %1168 = vrot.lane.b32.xlu0 %v1079, 32
    %v1169 = vpop.permute.xlu0 %1168
    %v1170 = vsel %vm217, %v1169, 0
    %1172 = vmatprep.subr.mxu0 0.0
    %1173 = vmatpush1.msra.mxu0 0.0
    %1174 = vmatprep.subr.mxu0 0.0
    %1175 = vmatpush1.msra.mxu0 0.0
    %1176 = vmatprep.subr.mxu0 0.0
    %1177 = vmatpush1.msra.mxu0 0.0
    %1178 = vmatprep.subr.mxu0 0.0
    %1179 = vmatpush1.msra.mxu0 0.0
    %1180 = vmatprep.subr.mxu0 0.0
    %1181 = vmatpush1.msra.mxu0 0.0
    %1182 = vmatprep.subr.mxu0 0.0
    %1183 = vmatpush1.msra.mxu0 0.0
    %1184 = vmatprep.subr.mxu0 0.0
    %1185 = vmatpush1.msra.mxu0 0.0
    %1186 = vmatprep.subr.mxu0 0.0
    %1187 = vmatpush1.msra.mxu0 0.0
    %1188 = vmatprep.subr.mxu0 0.0
    %1189 = vmatpush1.msra.mxu0 0.0
    %1190 = vmatprep.subr.mxu0 0.0
    %1191 = vmatpush1.msra.mxu0 0.0
    %1192 = vmatprep.subr.mxu0 0.0
    %1193 = vmatpush1.msra.mxu0 0.0
    %1194 = vmatprep.subr.mxu0 0.0
    %1195 = vmatpush1.msra.mxu0 0.0
    %1196 = vmatprep.subr.mxu0 0.0
    %1197 = vmatpush1.msra.mxu0 %v216
    %1198 = vmatprep.subr.mxu0 0.0
    %1199 = vmatpush1.msra.mxu0 %v215
    %1200 = vmatprep.subr.mxu0 0.0
    %1201 = vmatpush1.msra.mxu0 %v214
    %1202 = vmatprep.subr.mxu0 0.0
    %1203 = vmatpush1.msra.mxu0 %v213
    %1204 = vmatprep.subr.mxu0 0.0
    %1205 = vmatpush2.msra.mxu0 0.0
    %1206 = vmatprep.subr.mxu0 0.0
    %1207 = vmatpush2.msra.mxu0 0.0
    %1208 = vmatprep.subr.mxu0 0.0
    %1209 = vmatpush2.msra.mxu0 0.0
    %1210 = vmatprep.subr.mxu0 0.0
    %1211 = vmatpush2.msra.mxu0 0.0
    %1212 = vmatprep.subr.mxu0 0.0
    %1213 = vmatpush2.msra.mxu0 0.0
    %1214 = vmatprep.subr.mxu0 0.0
    %1215 = vmatpush2.msra.mxu0 0.0
    %1216 = vmatprep.subr.mxu0 0.0
    %1217 = vmatpush2.msra.mxu0 0.0
    %1218 = vmatprep.subr.mxu0 0.0
    %1219 = vmatpush2.msra.mxu0 0.0
    %1220 = vmatprep.subr.mxu0 0.0
    %1221 = vmatpush2.msra.mxu0 0.0
    %1222 = vmatprep.subr.mxu0 0.0
    %1223 = vmatpush2.msra.mxu0 0.0
    %1224 = vmatprep.subr.mxu0 0.0
    %1225 = vmatpush2.msra.mxu0 0.0
    %1226 = vmatprep.subr.mxu0 0.0
    %1227 = vmatpush2.msra.mxu0 0.0
    %1228 = vmatprep.subr.mxu0 0.0
    %1229 = vmatpush2.msra.mxu0 0.0
    %1230 = vmatprep.subr.mxu0 0.0
    %1231 = vmatpush2.msra.mxu0 0.0
    %1232 = vmatprep.subr.mxu0 0.0
    %1233 = vmatpush2.msra.mxu0 0.0
    %1234 = vmatprep.subr.mxu0 0.0
    %1235 = vmatpush2.msra.mxu0 0.0
    %1236 = vmatprep.mubr.f32.mxu0 0.0
    %1237 = vmatmul.mubr.f32.gmra.mxu0 %v1170
    %v1238 = vpop.f32.mrf.mxu0
    %v1239 = vadd.f32 0.0, %v1238
    %v1240 = vpop.f32.mrf.mxu0
    %1241 = vdwg.mxu0
    %v1243 = vrot.slane %v1239, 2
    %v1245 = vadd.f32 %v201, %v1243
    %v1246 = vsub.f32 0.0, %v1167
    %v1247 = vmul.f32 %v1246, 1.442695
    %v1248 = vpow.pop %v1247
    %v1249 = vadd.f32 %v1248, 1.0
    %v1250 = vrcp.pop %v1249
    %v1251 = vmul.f32 1.0, %v1250
    %v1252 = vtanh.pop %v1167
    %v1254 = vrot.slane %v1046, 6
    %v1256 = vmul.f32 %v1251, %v1254
    %1258 = vrot.lane.b32.xlu0 %v1252, 64
    %v1259 = vpop.permute.xlu0 %1258
    %v1261 = vmul.f32 %v1251, %v1259
    %1263 = vrot.lane.b32.xlu0 %v1261, 32
    %v1264 = vpop.permute.xlu0 %1263
    %v1266 = vadd.f32 %v1256, %v1264
    %v1267 = vtanh.pop %v1266
    %1269 = vrot.lane.b32.xlu0 %v1267, 64
    %v1270 = vpop.permute.xlu0 %1269
    %v1272 = vmul.f32 %v1251, %v1270
    %v1273 = vsub.f32 0.0, %v1245
    %v1274 = vmul.f32 %v1273, 1.442695
    %v1275 = vpow.pop %v1274
    %v1276 = vadd.f32 %v1275, 1.0
    %v1277 = vrcp.pop %v1276
    %v1278 = vmul.f32 1.0, %v1277
    %v1279 = vtanh.pop %v1245
    %v1281 = vrot.slane %v1073, 2
    %v1283 = vmul.f32 %v1278, %v1281
    %1285 = vrot.lane.b32.xlu0 %v1279, 64
    %v1286 = vpop.permute.xlu0 %1285
    %v1288 = vmul.f32 %v1278, %v1286
    %1290 = vrot.lane.b32.xlu0 %v1288, 32
    %v1291 = vpop.permute.xlu0 %1290
    %v1293 = vadd.f32 %v1283, %v1291
    %v1294 = vtanh.pop %v1293
    %1296 = vrot.lane.b32.xlu0 %v1294, 64
    %v1297 = vpop.permute.xlu0 %1296
    %v1299 = vmul.f32 %v1278, %v1297
    %1301 = vrot.lane.b32.xlu0 %v1272, 32
    %v1302 = vpop.permute.xlu0 %1301
    %1304 = vst.msk [vmem:[#allocation2 + $0x8] sm:$0x3] %vm418, %v1302
    %1306 = vrot.lane.b32.xlu0 %v1299, 64
    %v1307 = vpop.permute.xlu0 %1306
    %1309 = vst.msk [vmem:[#allocation2] sm:$0xc0] %vm424, %v1307
    %v1310 = vsel %vm217, %v1302, 0
    %1312 = vmatprep.subr.mxu0 0.0
    %1313 = vmatpush1.msra.mxu0 0.0
    %1314 = vmatprep.subr.mxu0 0.0
    %1315 = vmatpush1.msra.mxu0 0.0
    %1316 = vmatprep.subr.mxu0 0.0
    %1317 = vmatpush1.msra.mxu0 0.0
    %1318 = vmatprep.subr.mxu0 0.0
    %1319 = vmatpush1.msra.mxu0 0.0
    %1320 = vmatprep.subr.mxu0 0.0
    %1321 = vmatpush1.msra.mxu0 0.0
    %1322 = vmatprep.subr.mxu0 0.0
    %1323 = vmatpush1.msra.mxu0 0.0
    %1324 = vmatprep.subr.mxu0 0.0
    %1325 = vmatpush1.msra.mxu0 0.0
    %1326 = vmatprep.subr.mxu0 0.0
    %1327 = vmatpush1.msra.mxu0 0.0
    %1328 = vmatprep.subr.mxu0 0.0
    %1329 = vmatpush1.msra.mxu0 0.0
    %1330 = vmatprep.subr.mxu0 0.0
    %1331 = vmatpush1.msra.mxu0 0.0
    %1332 = vmatprep.subr.mxu0 0.0
    %1333 = vmatpush1.msra.mxu0 0.0
    %1334 = vmatprep.subr.mxu0 0.0
    %1335 = vmatpush1.msra.mxu0 0.0
    %1336 = vmatprep.subr.mxu0 0.0
    %1337 = vmatpush1.msra.mxu0 %v212
    %1338 = vmatprep.subr.mxu0 0.0
    %1339 = vmatpush1.msra.mxu0 %v211
    %1340 = vmatprep.subr.mxu0 0.0
    %1341 = vmatpush1.msra.mxu0 %v210
    %1342 = vmatprep.subr.mxu0 0.0
    %1343 = vmatpush1.msra.mxu0 %v209
    %1344 = vmatprep.subr.mxu0 0.0
    %1345 = vmatpush2.msra.mxu0 0.0
    %1346 = vmatprep.subr.mxu0 0.0
    %1347 = vmatpush2.msra.mxu0 0.0
    %1348 = vmatprep.subr.mxu0 0.0
    %1349 = vmatpush2.msra.mxu0 0.0
    %1350 = vmatprep.subr.mxu0 0.0
    %1351 = vmatpush2.msra.mxu0 0.0
    %1352 = vmatprep.subr.mxu0 0.0
    %1353 = vmatpush2.msra.mxu0 0.0
    %1354 = vmatprep.subr.mxu0 0.0
    %1355 = vmatpush2.msra.mxu0 0.0
    %1356 = vmatprep.subr.mxu0 0.0
    %1357 = vmatpush2.msra.mxu0 0.0
    %1358 = vmatprep.subr.mxu0 0.0
    %1359 = vmatpush2.msra.mxu0 0.0
    %1360 = vmatprep.subr.mxu0 0.0
    %1361 = vmatpush2.msra.mxu0 0.0
    %1362 = vmatprep.subr.mxu0 0.0
    %1363 = vmatpush2.msra.mxu0 0.0
    %1364 = vmatprep.subr.mxu0 0.0
    %1365 = vmatpush2.msra.mxu0 0.0
    %1366 = vmatprep.subr.mxu0 0.0
    %1367 = vmatpush2.msra.mxu0 0.0
    %1368 = vmatprep.subr.mxu0 0.0
    %1369 = vmatpush2.msra.mxu0 0.0
    %1370 = vmatprep.subr.mxu0 0.0
    %1371 = vmatpush2.msra.mxu0 0.0
    %1372 = vmatprep.subr.mxu0 0.0
    %1373 = vmatpush2.msra.mxu0 0.0
    %1374 = vmatprep.subr.mxu0 0.0
    %1375 = vmatpush2.msra.mxu0 0.0
    %1376 = vmatprep.mubr.f32.mxu0 0.0
    %1377 = vmatmul.mubr.f32.gmra.mxu0 %v1310
    %v1378 = vpop.f32.mrf.mxu0
    %v1379 = vadd.f32 0.0, %v1378
    %v1380 = vpop.f32.mrf.mxu0
    %1381 = vdwg.mxu0
    %v1383 = vrot.slane %v1379, 6
    %v1385 = vadd.f32 %v205, %v1383
    %v1386 = vrot.slane %v1299, 6
    %1387 = vrot.lane.b32.xlu0 %v1386, 32
    %v1388 = vpop.permute.xlu0 %1387
    %v1389 = vsel %vm217, %v1388, 0
    %1391 = vmatprep.subr.mxu0 0.0
    %1392 = vmatpush1.msra.mxu0 0.0
    %1393 = vmatprep.subr.mxu0 0.0
    %1394 = vmatpush1.msra.mxu0 0.0
    %1395 = vmatprep.subr.mxu0 0.0
    %1396 = vmatpush1.msra.mxu0 0.0
    %1397 = vmatprep.subr.mxu0 0.0
    %1398 = vmatpush1.msra.mxu0 0.0
    %1399 = vmatprep.subr.mxu0 0.0
    %1400 = vmatpush1.msra.mxu0 0.0
    %1401 = vmatprep.subr.mxu0 0.0
    %1402 = vmatpush1.msra.mxu0 0.0
    %1403 = vmatprep.subr.mxu0 0.0
    %1404 = vmatpush1.msra.mxu0 0.0
    %1405 = vmatprep.subr.mxu0 0.0
    %1406 = vmatpush1.msra.mxu0 0.0
    %1407 = vmatprep.subr.mxu0 0.0
    %1408 = vmatpush1.msra.mxu0 0.0
    %1409 = vmatprep.subr.mxu0 0.0
    %1410 = vmatpush1.msra.mxu0 0.0
    %1411 = vmatprep.subr.mxu0 0.0
    %1412 = vmatpush1.msra.mxu0 0.0
    %1413 = vmatprep.subr.mxu0 0.0
    %1414 = vmatpush1.msra.mxu0 0.0
    %1415 = vmatprep.subr.mxu0 0.0
    %1416 = vmatpush1.msra.mxu0 %v216
    %1417 = vmatprep.subr.mxu0 0.0
    %1418 = vmatpush1.msra.mxu0 %v215
    %1419 = vmatprep.subr.mxu0 0.0
    %1420 = vmatpush1.msra.mxu0 %v214
    %1421 = vmatprep.subr.mxu0 0.0
    %1422 = vmatpush1.msra.mxu0 %v213
    %1423 = vmatprep.subr.mxu0 0.0
    %1424 = vmatpush2.msra.mxu0 0.0
    %1425 = vmatprep.subr.mxu0 0.0
    %1426 = vmatpush2.msra.mxu0 0.0
    %1427 = vmatprep.subr.mxu0 0.0
    %1428 = vmatpush2.msra.mxu0 0.0
    %1429 = vmatprep.subr.mxu0 0.0
    %1430 = vmatpush2.msra.mxu0 0.0
    %1431 = vmatprep.subr.mxu0 0.0
    %1432 = vmatpush2.msra.mxu0 0.0
    %1433 = vmatprep.subr.mxu0 0.0
    %1434 = vmatpush2.msra.mxu0 0.0
    %1435 = vmatprep.subr.mxu0 0.0
    %1436 = vmatpush2.msra.mxu0 0.0
    %1437 = vmatprep.subr.mxu0 0.0
    %1438 = vmatpush2.msra.mxu0 0.0
    %1439 = vmatprep.subr.mxu0 0.0
    %1440 = vmatpush2.msra.mxu0 0.0
    %1441 = vmatprep.subr.mxu0 0.0
    %1442 = vmatpush2.msra.mxu0 0.0
    %1443 = vmatprep.subr.mxu0 0.0
    %1444 = vmatpush2.msra.mxu0 0.0
    %1445 = vmatprep.subr.mxu0 0.0
    %1446 = vmatpush2.msra.mxu0 0.0
    %1447 = vmatprep.subr.mxu0 0.0
    %1448 = vmatpush2.msra.mxu0 0.0
    %1449 = vmatprep.subr.mxu0 0.0
    %1450 = vmatpush2.msra.mxu0 0.0
    %1451 = vmatprep.subr.mxu0 0.0
    %1452 = vmatpush2.msra.mxu0 0.0
    %1453 = vmatprep.subr.mxu0 0.0
    %1454 = vmatpush2.msra.mxu0 0.0
    %1455 = vmatprep.mubr.f32.mxu0 0.0
    %1456 = vmatmul.mubr.f32.gmra.mxu0 %v1389
    %v1457 = vpop.f32.mrf.mxu0
    %v1458 = vadd.f32 0.0, %v1457
    %v1459 = vpop.f32.mrf.mxu0
    %1460 = vdwg.mxu0
    %v1462 = vrot.slane %v1458, 4
    %v1464 = vadd.f32 %v201, %v1462
    %v1465 = vsub.f32 0.0, %v1385
    %v1466 = vmul.f32 %v1465, 1.442695
    %v1467 = vpow.pop %v1466
    %v1468 = vadd.f32 %v1467, 1.0
    %v1469 = vrcp.pop %v1468
    %v1470 = vmul.f32 1.0, %v1469
    %v1471 = vtanh.pop %v1385
    %v1473 = vrot.slane %v1266, 6
    %v1475 = vmul.f32 %v1470, %v1473
    %1477 = vrot.lane.b32.xlu0 %v1471, 64
    %v1478 = vpop.permute.xlu0 %1477
    %v1480 = vmul.f32 %v1470, %v1478
    %1482 = vrot.lane.b32.xlu0 %v1480, 32
    %v1483 = vpop.permute.xlu0 %1482
    %v1485 = vadd.f32 %v1475, %v1483
    %v1486 = vtanh.pop %v1485
    %1488 = vrot.lane.b32.xlu0 %v1486, 64
    %v1489 = vpop.permute.xlu0 %1488
    %v1491 = vmul.f32 %v1470, %v1489
    %v1492 = vsub.f32 0.0, %v1464
    %v1493 = vmul.f32 %v1492, 1.442695
    %v1494 = vpow.pop %v1493
    %v1495 = vadd.f32 %v1494, 1.0
    %v1496 = vrcp.pop %v1495
    %v1497 = vmul.f32 1.0, %v1496
    %v1498 = vtanh.pop %v1464
    %v1500 = vrot.slane %v1293, 2
    %v1502 = vmul.f32 %v1497, %v1500
    %1504 = vrot.lane.b32.xlu0 %v1498, 64
    %v1505 = vpop.permute.xlu0 %1504
    %v1507 = vmul.f32 %v1497, %v1505
    %1509 = vrot.lane.b32.xlu0 %v1507, 32
    %v1510 = vpop.permute.xlu0 %1509
    %v1512 = vadd.f32 %v1502, %v1510
    %v1513 = vtanh.pop %v1512
    %1515 = vrot.lane.b32.xlu0 %v1513, 64
    %v1516 = vpop.permute.xlu0 %1515
    %v1518 = vmul.f32 %v1497, %v1516
    %1520 = vrot.lane.b32.xlu0 %v1491, 32
    %v1521 = vpop.permute.xlu0 %1520
    %1523 = vst.msk [vmem:[#allocation2 + $0x8] sm:$0xc] %vm639, %v1521
    %1525 = vrot.lane.b32.xlu0 %v1518, 64
    %v1526 = vpop.permute.xlu0 %1525
    %1528 = vst.msk [vmem:[#allocation2] sm:$0x30] %vm645, %v1526
    %v1529 = vrot.slane %v1491, 2
    %1530 = vrot.lane.b32.xlu0 %v1529, 32
    %v1531 = vpop.permute.xlu0 %1530
    %v1532 = vsel %vm217, %v1531, 0
    %1534 = vmatprep.subr.mxu0 0.0
    %1535 = vmatpush1.msra.mxu0 0.0
    %1536 = vmatprep.subr.mxu0 0.0
    %1537 = vmatpush1.msra.mxu0 0.0
    %1538 = vmatprep.subr.mxu0 0.0
    %1539 = vmatpush1.msra.mxu0 0.0
    %1540 = vmatprep.subr.mxu0 0.0
    %1541 = vmatpush1.msra.mxu0 0.0
    %1542 = vmatprep.subr.mxu0 0.0
    %1543 = vmatpush1.msra.mxu0 0.0
    %1544 = vmatprep.subr.mxu0 0.0
    %1545 = vmatpush1.msra.mxu0 0.0
    %1546 = vmatprep.subr.mxu0 0.0
    %1547 = vmatpush1.msra.mxu0 0.0
    %1548 = vmatprep.subr.mxu0 0.0
    %1549 = vmatpush1.msra.mxu0 0.0
    %1550 = vmatprep.subr.mxu0 0.0
    %1551 = vmatpush1.msra.mxu0 0.0
    %1552 = vmatprep.subr.mxu0 0.0
    %1553 = vmatpush1.msra.mxu0 0.0
    %1554 = vmatprep.subr.mxu0 0.0
    %1555 = vmatpush1.msra.mxu0 0.0
    %1556 = vmatprep.subr.mxu0 0.0
    %1557 = vmatpush1.msra.mxu0 0.0
    %1558 = vmatprep.subr.mxu0 0.0
    %1559 = vmatpush1.msra.mxu0 %v212
    %1560 = vmatprep.subr.mxu0 0.0
    %1561 = vmatpush1.msra.mxu0 %v211
    %1562 = vmatprep.subr.mxu0 0.0
    %1563 = vmatpush1.msra.mxu0 %v210
    %1564 = vmatprep.subr.mxu0 0.0
    %1565 = vmatpush1.msra.mxu0 %v209
    %1566 = vmatprep.subr.mxu0 0.0
    %1567 = vmatpush2.msra.mxu0 0.0
    %1568 = vmatprep.subr.mxu0 0.0
    %1569 = vmatpush2.msra.mxu0 0.0
    %1570 = vmatprep.subr.mxu0 0.0
    %1571 = vmatpush2.msra.mxu0 0.0
    %1572 = vmatprep.subr.mxu0 0.0
    %1573 = vmatpush2.msra.mxu0 0.0
    %1574 = vmatprep.subr.mxu0 0.0
    %1575 = vmatpush2.msra.mxu0 0.0
    %1576 = vmatprep.subr.mxu0 0.0
    %1577 = vmatpush2.msra.mxu0 0.0
    %1578 = vmatprep.subr.mxu0 0.0
    %1579 = vmatpush2.msra.mxu0 0.0
    %1580 = vmatprep.subr.mxu0 0.0
    %1581 = vmatpush2.msra.mxu0 0.0
    %1582 = vmatprep.subr.mxu0 0.0
    %1583 = vmatpush2.msra.mxu0 0.0
    %1584 = vmatprep.subr.mxu0 0.0
    %1585 = vmatpush2.msra.mxu0 0.0
    %1586 = vmatprep.subr.mxu0 0.0
    %1587 = vmatpush2.msra.mxu0 0.0
    %1588 = vmatprep.subr.mxu0 0.0
    %1589 = vmatpush2.msra.mxu0 0.0
    %1590 = vmatprep.subr.mxu0 0.0
    %1591 = vmatpush2.msra.mxu0 0.0
    %1592 = vmatprep.subr.mxu0 0.0
    %1593 = vmatpush2.msra.mxu0 0.0
    %1594 = vmatprep.subr.mxu0 0.0
    %1595 = vmatpush2.msra.mxu0 0.0
    %1596 = vmatprep.subr.mxu0 0.0
    %1597 = vmatpush2.msra.mxu0 0.0
    %1598 = vmatprep.mubr.f32.mxu0 0.0
    %1599 = vmatmul.mubr.f32.gmra.mxu0 %v1532
    %v1600 = vpop.f32.mrf.mxu0
    %v1601 = vadd.f32 0.0, %v1600
    %v1602 = vpop.f32.mrf.mxu0
    %1603 = vdwg.mxu0
    %v1605 = vrot.slane %v1601, 4
    %v1607 = vadd.f32 %v205, %v1605
    %v1608 = vrot.slane %v1518, 4
    %1609 = vrot.lane.b32.xlu0 %v1608, 32
    %v1610 = vpop.permute.xlu0 %1609
    %v1611 = vsel %vm217, %v1610, 0
    %1613 = vmatprep.subr.mxu0 0.0
    %1614 = vmatpush1.msra.mxu0 0.0
    %1615 = vmatprep.subr.mxu0 0.0
    %1616 = vmatpush1.msra.mxu0 0.0
    %1617 = vmatprep.subr.mxu0 0.0
    %1618 = vmatpush1.msra.mxu0 0.0
    %1619 = vmatprep.subr.mxu0 0.0
    %1620 = vmatpush1.msra.mxu0 0.0
    %1621 = vmatprep.subr.mxu0 0.0
    %1622 = vmatpush1.msra.mxu0 0.0
    %1623 = vmatprep.subr.mxu0 0.0
    %1624 = vmatpush1.msra.mxu0 0.0
    %1625 = vmatprep.subr.mxu0 0.0
    %1626 = vmatpush1.msra.mxu0 0.0
    %1627 = vmatprep.subr.mxu0 0.0
    %1628 = vmatpush1.msra.mxu0 0.0
    %1629 = vmatprep.subr.mxu0 0.0
    %1630 = vmatpush1.msra.mxu0 0.0
    %1631 = vmatprep.subr.mxu0 0.0
    %1632 = vmatpush1.msra.mxu0 0.0
    %1633 = vmatprep.subr.mxu0 0.0
    %1634 = vmatpush1.msra.mxu0 0.0
    %1635 = vmatprep.subr.mxu0 0.0
    %1636 = vmatpush1.msra.mxu0 0.0
    %1637 = vmatprep.subr.mxu0 0.0
    %1638 = vmatpush1.msra.mxu0 %v216
    %1639 = vmatprep.subr.mxu0 0.0
    %1640 = vmatpush1.msra.mxu0 %v215
    %1641 = vmatprep.subr.mxu0 0.0
    %1642 = vmatpush1.msra.mxu0 %v214
    %1643 = vmatprep.subr.mxu0 0.0
    %1644 = vmatpush1.msra.mxu0 %v213
    %1645 = vmatprep.subr.mxu0 0.0
    %1646 = vmatpush2.msra.mxu0 0.0
    %1647 = vmatprep.subr.mxu0 0.0
    %1648 = vmatpush2.msra.mxu0 0.0
    %1649 = vmatprep.subr.mxu0 0.0
    %1650 = vmatpush2.msra.mxu0 0.0
    %1651 = vmatprep.subr.mxu0 0.0
    %1652 = vmatpush2.msra.mxu0 0.0
    %1653 = vmatprep.subr.mxu0 0.0
    %1654 = vmatpush2.msra.mxu0 0.0
    %1655 = vmatprep.subr.mxu0 0.0
    %1656 = vmatpush2.msra.mxu0 0.0
    %1657 = vmatprep.subr.mxu0 0.0
    %1658 = vmatpush2.msra.mxu0 0.0
    %1659 = vmatprep.subr.mxu0 0.0
    %1660 = vmatpush2.msra.mxu0 0.0
    %1661 = vmatprep.subr.mxu0 0.0
    %1662 = vmatpush2.msra.mxu0 0.0
    %1663 = vmatprep.subr.mxu0 0.0
    %1664 = vmatpush2.msra.mxu0 0.0
    %1665 = vmatprep.subr.mxu0 0.0
    %1666 = vmatpush2.msra.mxu0 0.0
    %1667 = vmatprep.subr.mxu0 0.0
    %1668 = vmatpush2.msra.mxu0 0.0
    %1669 = vmatprep.subr.mxu0 0.0
    %1670 = vmatpush2.msra.mxu0 0.0
    %1671 = vmatprep.subr.mxu0 0.0
    %1672 = vmatpush2.msra.mxu0 0.0
    %1673 = vmatprep.subr.mxu0 0.0
    %1674 = vmatpush2.msra.mxu0 0.0
    %1675 = vmatprep.subr.mxu0 0.0
    %1676 = vmatpush2.msra.mxu0 0.0
    %1677 = vmatprep.mubr.f32.mxu0 0.0
    %1678 = vmatmul.mubr.f32.gmra.mxu0 %v1611
    %v1679 = vpop.f32.mrf.mxu0
    %v1680 = vadd.f32 0.0, %v1679
    %v1681 = vpop.f32.mrf.mxu0
    %1682 = vdwg.mxu0
    %v1684 = vrot.slane %v1680, 6
    %v1686 = vadd.f32 %v201, %v1684
    %v1687 = vsub.f32 0.0, %v1607
    %v1688 = vmul.f32 %v1687, 1.442695
    %v1689 = vpow.pop %v1688
    %v1690 = vadd.f32 %v1689, 1.0
    %v1691 = vrcp.pop %v1690
    %v1692 = vmul.f32 1.0, %v1691
    %v1693 = vtanh.pop %v1607
    %v1695 = vrot.slane %v1485, 6
    %v1697 = vmul.f32 %v1692, %v1695
    %1699 = vrot.lane.b32.xlu0 %v1693, 64
    %v1700 = vpop.permute.xlu0 %1699
    %v1702 = vmul.f32 %v1692, %v1700
    %1704 = vrot.lane.b32.xlu0 %v1702, 32
    %v1705 = vpop.permute.xlu0 %1704
    %v1707 = vadd.f32 %v1697, %v1705
    %v1708 = vtanh.pop %v1707
    %1710 = vrot.lane.b32.xlu0 %v1708, 64
    %v1711 = vpop.permute.xlu0 %1710
    %v1713 = vmul.f32 %v1692, %v1711
    %v1714 = vsub.f32 0.0, %v1686
    %v1715 = vmul.f32 %v1714, 1.442695
    %v1716 = vpow.pop %v1715
    %v1717 = vadd.f32 %v1716, 1.0
    %v1718 = vrcp.pop %v1717
    %v1719 = vmul.f32 1.0, %v1718
    %v1720 = vtanh.pop %v1686
    %v1722 = vrot.slane %v1512, 2
    %v1724 = vmul.f32 %v1719, %v1722
    %1726 = vrot.lane.b32.xlu0 %v1720, 64
    %v1727 = vpop.permute.xlu0 %1726
    %v1729 = vmul.f32 %v1719, %v1727
    %1731 = vrot.lane.b32.xlu0 %v1729, 32
    %v1732 = vpop.permute.xlu0 %1731
    %v1734 = vadd.f32 %v1724, %v1732
    %v1735 = vtanh.pop %v1734
    %1737 = vrot.lane.b32.xlu0 %v1735, 64
    %v1738 = vpop.permute.xlu0 %1737
    %v1740 = vmul.f32 %v1719, %v1738
    %1742 = vrot.lane.b32.xlu0 %v1713, 32
    %v1743 = vpop.permute.xlu0 %1742
    %1745 = vst.msk [vmem:[#allocation2 + $0x8] sm:$0x30] %vm863, %v1743
    %1747 = vrot.lane.b32.xlu0 %v1740, 64
    %v1748 = vpop.permute.xlu0 %1747
    %1750 = vst.msk [vmem:[#allocation2] sm:$0xc] %vm869, %v1748
    %v1751 = vrot.slane %v1713, 4
    %1752 = vrot.lane.b32.xlu0 %v1751, 32
    %v1753 = vpop.permute.xlu0 %1752
    %v1754 = vsel %vm217, %v1753, 0
    %1756 = vmatprep.subr.mxu0 0.0
    %1757 = vmatpush1.msra.mxu0 0.0
    %1758 = vmatprep.subr.mxu0 0.0
    %1759 = vmatpush1.msra.mxu0 0.0
    %1760 = vmatprep.subr.mxu0 0.0
    %1761 = vmatpush1.msra.mxu0 0.0
    %1762 = vmatprep.subr.mxu0 0.0
    %1763 = vmatpush1.msra.mxu0 0.0
    %1764 = vmatprep.subr.mxu0 0.0
    %1765 = vmatpush1.msra.mxu0 0.0
    %1766 = vmatprep.subr.mxu0 0.0
    %1767 = vmatpush1.msra.mxu0 0.0
    %1768 = vmatprep.subr.mxu0 0.0
    %1769 = vmatpush1.msra.mxu0 0.0
    %1770 = vmatprep.subr.mxu0 0.0
    %1771 = vmatpush1.msra.mxu0 0.0
    %1772 = vmatprep.subr.mxu0 0.0
    %1773 = vmatpush1.msra.mxu0 0.0
    %1774 = vmatprep.subr.mxu0 0.0
    %1775 = vmatpush1.msra.mxu0 0.0
    %1776 = vmatprep.subr.mxu0 0.0
    %1777 = vmatpush1.msra.mxu0 0.0
    %1778 = vmatprep.subr.mxu0 0.0
    %1779 = vmatpush1.msra.mxu0 0.0
    %1780 = vmatprep.subr.mxu0 0.0
    %1781 = vmatpush1.msra.mxu0 %v212
    %1782 = vmatprep.subr.mxu0 0.0
    %1783 = vmatpush1.msra.mxu0 %v211
    %1784 = vmatprep.subr.mxu0 0.0
    %1785 = vmatpush1.msra.mxu0 %v210
    %1786 = vmatprep.subr.mxu0 0.0
    %1787 = vmatpush1.msra.mxu0 %v209
    %1788 = vmatprep.subr.mxu0 0.0
    %1789 = vmatpush2.msra.mxu0 0.0
    %1790 = vmatprep.subr.mxu0 0.0
    %1791 = vmatpush2.msra.mxu0 0.0
    %1792 = vmatprep.subr.mxu0 0.0
    %1793 = vmatpush2.msra.mxu0 0.0
    %1794 = vmatprep.subr.mxu0 0.0
    %1795 = vmatpush2.msra.mxu0 0.0
    %1796 = vmatprep.subr.mxu0 0.0
    %1797 = vmatpush2.msra.mxu0 0.0
    %1798 = vmatprep.subr.mxu0 0.0
    %1799 = vmatpush2.msra.mxu0 0.0
    %1800 = vmatprep.subr.mxu0 0.0
    %1801 = vmatpush2.msra.mxu0 0.0
    %1802 = vmatprep.subr.mxu0 0.0
    %1803 = vmatpush2.msra.mxu0 0.0
    %1804 = vmatprep.subr.mxu0 0.0
    %1805 = vmatpush2.msra.mxu0 0.0
    %1806 = vmatprep.subr.mxu0 0.0
    %1807 = vmatpush2.msra.mxu0 0.0
    %1808 = vmatprep.subr.mxu0 0.0
    %1809 = vmatpush2.msra.mxu0 0.0
    %1810 = vmatprep.subr.mxu0 0.0
    %1811 = vmatpush2.msra.mxu0 0.0
    %1812 = vmatprep.subr.mxu0 0.0
    %1813 = vmatpush2.msra.mxu0 0.0
    %1814 = vmatprep.subr.mxu0 0.0
    %1815 = vmatpush2.msra.mxu0 0.0
    %1816 = vmatprep.subr.mxu0 0.0
    %1817 = vmatpush2.msra.mxu0 0.0
    %1818 = vmatprep.subr.mxu0 0.0
    %1819 = vmatpush2.msra.mxu0 0.0
    %1820 = vmatprep.mubr.f32.mxu0 0.0
    %1821 = vmatmul.mubr.f32.gmra.mxu0 %v1754
    %v1822 = vpop.f32.mrf.mxu0
    %v1823 = vadd.f32 0.0, %v1822
    %v1824 = vpop.f32.mrf.mxu0
    %1825 = vdwg.mxu0
    %v1827 = vrot.slane %v1823, 2
    %v1829 = vadd.f32 %v205, %v1827
    %v1830 = vrot.slane %v1740, 2
    %1831 = vrot.lane.b32.xlu0 %v1830, 32
    %v1832 = vpop.permute.xlu0 %1831
    %v1833 = vsel %vm217, %v1832, 0
    %1835 = vmatprep.subr.mxu0 0.0
    %1836 = vmatpush1.msra.mxu0 0.0
    %1837 = vmatprep.subr.mxu0 0.0
    %1838 = vmatpush1.msra.mxu0 0.0
    %1839 = vmatprep.subr.mxu0 0.0
    %1840 = vmatpush1.msra.mxu0 0.0
    %1841 = vmatprep.subr.mxu0 0.0
    %1842 = vmatpush1.msra.mxu0 0.0
    %1843 = vmatprep.subr.mxu0 0.0
    %1844 = vmatpush1.msra.mxu0 0.0
    %1845 = vmatprep.subr.mxu0 0.0
    %1846 = vmatpush1.msra.mxu0 0.0
    %1847 = vmatprep.subr.mxu0 0.0
    %1848 = vmatpush1.msra.mxu0 0.0
    %1849 = vmatprep.subr.mxu0 0.0
    %1850 = vmatpush1.msra.mxu0 0.0
    %1851 = vmatprep.subr.mxu0 0.0
    %1852 = vmatpush1.msra.mxu0 0.0
    %1853 = vmatprep.subr.mxu0 0.0
    %1854 = vmatpush1.msra.mxu0 0.0
    %1855 = vmatprep.subr.mxu0 0.0
    %1856 = vmatpush1.msra.mxu0 0.0
    %1857 = vmatprep.subr.mxu0 0.0
    %1858 = vmatpush1.msra.mxu0 0.0
    %1859 = vmatprep.subr.mxu0 0.0
    %1860 = vmatpush1.msra.mxu0 %v216
    %1861 = vmatprep.subr.mxu0 0.0
    %1862 = vmatpush1.msra.mxu0 %v215
    %1863 = vmatprep.subr.mxu0 0.0
    %1864 = vmatpush1.msra.mxu0 %v214
    %1865 = vmatprep.subr.mxu0 0.0
    %1866 = vmatpush1.msra.mxu0 %v213
    %1867 = vmatprep.subr.mxu0 0.0
    %1868 = vmatpush2.msra.mxu0 0.0
    %1869 = vmatprep.subr.mxu0 0.0
    %1870 = vmatpush2.msra.mxu0 0.0
    %1871 = vmatprep.subr.mxu0 0.0
    %1872 = vmatpush2.msra.mxu0 0.0
    %1873 = vmatprep.subr.mxu0 0.0
    %1874 = vmatpush2.msra.mxu0 0.0
    %1875 = vmatprep.subr.mxu0 0.0
    %1876 = vmatpush2.msra.mxu0 0.0
    %1877 = vmatprep.subr.mxu0 0.0
    %1878 = vmatpush2.msra.mxu0 0.0
    %1879 = vmatprep.subr.mxu0 0.0
    %1880 = vmatpush2.msra.mxu0 0.0
    %1881 = vmatprep.subr.mxu0 0.0
    %1882 = vmatpush2.msra.mxu0 0.0
    %1883 = vmatprep.subr.mxu0 0.0
    %1884 = vmatpush2.msra.mxu0 0.0
    %1885 = vmatprep.subr.mxu0 0.0
    %1886 = vmatpush2.msra.mxu0 0.0
    %1887 = vmatprep.subr.mxu0 0.0
    %1888 = vmatpush2.msra.mxu0 0.0
    %1889 = vmatprep.subr.mxu0 0.0
    %1890 = vmatpush2.msra.mxu0 0.0
    %1891 = vmatprep.subr.mxu0 0.0
    %1892 = vmatpush2.msra.mxu0 0.0
    %1893 = vmatprep.subr.mxu0 0.0
    %1894 = vmatpush2.msra.mxu0 0.0
    %1895 = vmatprep.subr.mxu0 0.0
    %1896 = vmatpush2.msra.mxu0 0.0
    %1897 = vmatprep.subr.mxu0 0.0
    %1898 = vmatpush2.msra.mxu0 0.0
    %1899 = vmatprep.mubr.f32.mxu0 0.0
    %1900 = vmatmul.mubr.f32.gmra.mxu0 %v1833
    %v1901 = vpop.f32.mrf.mxu0
    %v1902 = vadd.f32 0.0, %v1901
    %v1903 = vpop.f32.mrf.mxu0
    %1904 = vdwg.mxu0
    %v1905 = vadd.f32 %v201, %v1902
    %v1906 = vsub.f32 0.0, %v1829
    %v1907 = vmul.f32 %v1906, 1.442695
    %v1908 = vpow.pop %v1907
    %v1909 = vadd.f32 %v1908, 1.0
    %v1910 = vrcp.pop %v1909
    %v1911 = vmul.f32 1.0, %v1910
    %v1912 = vtanh.pop %v1829
    %v1914 = vrot.slane %v1707, 6
    %v1916 = vmul.f32 %v1911, %v1914
    %1918 = vrot.lane.b32.xlu0 %v1912, 64
    %v1919 = vpop.permute.xlu0 %1918
    %v1921 = vmul.f32 %v1911, %v1919
    %1923 = vrot.lane.b32.xlu0 %v1921, 32
    %v1924 = vpop.permute.xlu0 %1923
    %v1926 = vadd.f32 %v1916, %v1924
    %v1927 = vtanh.pop %v1926
    %1929 = vrot.lane.b32.xlu0 %v1927, 64
    %v1930 = vpop.permute.xlu0 %1929
    %v1932 = vmul.f32 %v1911, %v1930
    %v1933 = vsub.f32 0.0, %v1905
    %v1934 = vmul.f32 %v1933, 1.442695
    %v1935 = vpow.pop %v1934
    %v1936 = vadd.f32 %v1935, 1.0
    %v1937 = vrcp.pop %v1936
    %v1938 = vmul.f32 1.0, %v1937
    %v1939 = vtanh.pop %v1905
    %v1941 = vrot.slane %v1734, 2
    %v1943 = vmul.f32 %v1938, %v1941
    %1945 = vrot.lane.b32.xlu0 %v1939, 64
    %v1946 = vpop.permute.xlu0 %1945
    %v1948 = vmul.f32 %v1938, %v1946
    %1950 = vrot.lane.b32.xlu0 %v1948, 32
    %v1951 = vpop.permute.xlu0 %1950
    %v1953 = vadd.f32 %v1943, %v1951
    %v1954 = vtanh.pop %v1953
    %1956 = vrot.lane.b32.xlu0 %v1954, 64
    %v1957 = vpop.permute.xlu0 %1956
    %v1959 = vmul.f32 %v1938, %v1957
    %1961 = vrot.lane.b32.xlu0 %v1932, 32
    %v1962 = vpop.permute.xlu0 %1961
    %1964 = vst.msk [vmem:[#allocation2 + $0x8] sm:$0xc0] %vm1084, %v1962
    %1966 = vrot.lane.b32.xlu0 %v1959, 64
    %v1967 = vpop.permute.xlu0 %1966
    %1969 = vst.msk [vmem:[#allocation2] sm:$0x3] %vm1090, %v1967
    %v1970 = vld [vmem:[#allocation2] sm:$0xff]
    %v1971 = vld [vmem:[#allocation2 + $0x8] sm:$0xff]
    %v1972 = vld [vmem:[#allocation8] sm:$0xff]
    %v1973 = vld [vmem:[#allocation8 + $0x8] sm:$0xff]
    %v1974 = vld [vmem:[#allocation8 + $0x10] sm:$0xff]
    %v1975 = vld [vmem:[#allocation8 + $0x18] sm:$0xff]
    %v1976 = vld [vmem:[#allocation8 + $0x20] sm:$0xff]
    %v1977 = vld [vmem:[#allocation8 + $0x28] sm:$0xff]
    %v1978 = vld [vmem:[#allocation8 + $0x30] sm:$0xff]
    %v1979 = vld [vmem:[#allocation8 + $0x38] sm:$0xff]
    %v1980 = vld [vmem:[#allocation8 + $0x40] sm:$0xff]
    %v1981 = vld [vmem:[#allocation8 + $0x48] sm:$0xff]
    %v1982 = vld [vmem:[#allocation8 + $0x50] sm:$0xff]
    %v1983 = vld [vmem:[#allocation8 + $0x58] sm:$0xff]
    %v1984 = vld [vmem:[#allocation8 + $0x60] sm:$0xff]
    %v1985 = vld [vmem:[#allocation8 + $0x68] sm:$0xff]
    %v1986 = vld [vmem:[#allocation8 + $0x70] sm:$0xff]
    %v1987 = vld [vmem:[#allocation8 + $0x78] sm:$0xff]
    %v1988 = vld [vmem:[%s6] sm:$0x3]
    %v1990 = vlaneseq
    %v1991 = vshrl.u32 %v1990, 7
    %v1992 = vsub.s32 0, %v1991
    %v1993 = vrot.slane %v1988, %v1992
    %v1994 = vlaneseq
    %v1995 = vshrl.u32 %v1994, 7
    %v1996 = vsub.s32 1, %v1995
    %v1997 = vrot.slane %v1988, %v1996
    %vm2000 = vcmask 523264
    %v2002 = vsel %vm2000, %v1970, 0
    %v2005 = vsel %vm2000, %v1971, 0
    %2007 = vmatprep.subr.mxu0 0.0
    %2008 = vmatpush1.msra.mxu0 0.0
    %2009 = vmatprep.subr.mxu0 0.0
    %2010 = vmatpush1.msra.mxu0 0.0
    %2011 = vmatprep.subr.mxu0 0.0
    %2012 = vmatpush1.msra.mxu0 0.0
    %2013 = vmatprep.subr.mxu0 0.0
    %2014 = vmatpush1.msra.mxu0 0.0
    %2015 = vmatprep.subr.mxu0 0.0
    %2016 = vmatpush1.msra.mxu0 0.0
    %2017 = vmatprep.subr.mxu0 0.0
    %2018 = vmatpush1.msra.mxu0 0.0
    %2019 = vmatprep.subr.mxu0 0.0
    %2020 = vmatpush1.msra.mxu0 0.0
    %2021 = vmatprep.subr.mxu0 0.0
    %2022 = vmatpush1.msra.mxu0 0.0
    %2023 = vmatprep.subr.mxu0 %v1987
    %2024 = vmatpush1.msra.mxu0 %v1986
    %2025 = vmatprep.subr.mxu0 %v1985
    %2026 = vmatpush1.msra.mxu0 %v1984
    %2027 = vmatprep.subr.mxu0 %v1983
    %2028 = vmatpush1.msra.mxu0 %v1982
    %2029 = vmatprep.subr.mxu0 %v1981
    %2030 = vmatpush1.msra.mxu0 %v1980
    %2031 = vmatprep.subr.mxu0 %v1979
    %2032 = vmatpush1.msra.mxu0 %v1978
    %2033 = vmatprep.subr.mxu0 %v1977
    %2034 = vmatpush1.msra.mxu0 %v1976
    %2035 = vmatprep.subr.mxu0 %v1975
    %2036 = vmatpush1.msra.mxu0 %v1974
    %2037 = vmatprep.subr.mxu0 %v1973
    %2038 = vmatpush1.msra.mxu0 %v1972
    %2039 = vmatprep.subr.mxu0 0.0
    %2040 = vmatpush2.msra.mxu0 0.0
    %2041 = vmatprep.subr.mxu0 0.0
    %2042 = vmatpush2.msra.mxu0 0.0
    %2043 = vmatprep.subr.mxu0 0.0
    %2044 = vmatpush2.msra.mxu0 0.0
    %2045 = vmatprep.subr.mxu0 0.0
    %2046 = vmatpush2.msra.mxu0 0.0
    %2047 = vmatprep.subr.mxu0 0.0
    %2048 = vmatpush2.msra.mxu0 0.0
    %2049 = vmatprep.subr.mxu0 0.0
    %2050 = vmatpush2.msra.mxu0 0.0
    %2051 = vmatprep.subr.mxu0 0.0
    %2052 = vmatpush2.msra.mxu0 0.0
    %2053 = vmatprep.subr.mxu0 0.0
    %2054 = vmatpush2.msra.mxu0 0.0
    %2055 = vmatprep.subr.mxu0 0.0
    %2056 = vmatpush2.msra.mxu0 0.0
    %2057 = vmatprep.subr.mxu0 0.0
    %2058 = vmatpush2.msra.mxu0 0.0
    %2059 = vmatprep.subr.mxu0 0.0
    %2060 = vmatpush2.msra.mxu0 0.0
    %2061 = vmatprep.subr.mxu0 0.0
    %2062 = vmatpush2.msra.mxu0 0.0
    %2063 = vmatprep.subr.mxu0 0.0
    %2064 = vmatpush2.msra.mxu0 0.0
    %2065 = vmatprep.subr.mxu0 0.0
    %2066 = vmatpush2.msra.mxu0 0.0
    %2067 = vmatprep.subr.mxu0 0.0
    %2068 = vmatpush2.msra.mxu0 0.0
    %2069 = vmatprep.subr.mxu0 0.0
    %2070 = vmatpush2.msra.mxu0 0.0
    %2071 = vmatprep.mubr.f32.mxu0 0.0
    %2072 = vmatmul.mubr.f32.gmra.mxu0 %v2002
    %v2073 = vpop.f32.mrf.mxu0
    %v2074 = vadd.f32 %v1993, %v2073
    %v2075 = vpop.f32.mrf.mxu0
    %v2076 = vadd.f32 %v1997, %v2075
    %2077 = vmatprep.mubr.f32.mxu0 0.0
    %2078 = vmatmul.mubr.f32.gmra.mxu0 %v2005
    %v2079 = vpop.f32.mrf.mxu0
    %v2080 = vadd.f32 %v1993, %v2079
    %v2081 = vpop.f32.mrf.mxu0
    %v2082 = vadd.f32 %v1997, %v2081
    %2083 = vdwg.mxu0
    %v2084 = vld [vmem:[#allocation9] sm:$0xff]
    %v2085 = vld [vmem:[#allocation9 + $0x8] sm:$0xff]
    %v2086 = vld [vmem:[#allocation9 + $0x10] sm:$0xff]
    %v2087 = vld [vmem:[#allocation9 + $0x18] sm:$0xff]
    %v2088 = vld [vmem:[#allocation11] sm:$0xff]
    %v2089 = vld [vmem:[#allocation11 + $0x8] sm:$0xff]
    %v2090 = vld [vmem:[#allocation11 + $0x10] sm:$0xff]
    %v2091 = vld [vmem:[#allocation11 + $0x18] sm:$0xff]
    %2092 = vmatprep.subr.mxu0 0.0
    %2093 = vmatpush1.msra.mxu0 0.0
    %2094 = vmatprep.subr.mxu0 0.0
    %2095 = vmatpush1.msra.mxu0 0.0
    %2096 = vmatprep.subr.mxu0 0.0
    %2097 = vmatpush1.msra.mxu0 0.0
    %2098 = vmatprep.subr.mxu0 0.0
    %2099 = vmatpush1.msra.mxu0 0.0
    %2100 = vmatprep.subr.mxu0 0.0
    %2101 = vmatpush1.msra.mxu0 0.0
    %2102 = vmatprep.subr.mxu0 0.0
    %2103 = vmatpush1.msra.mxu0 0.0
    %2104 = vmatprep.subr.mxu0 0.0
    %2105 = vmatpush1.msra.mxu0 0.0
    %2106 = vmatprep.subr.mxu0 0.0
    %2107 = vmatpush1.msra.mxu0 0.0
    %2108 = vmatprep.subr.mxu0 0.0
    %2109 = vmatpush1.msra.mxu0 0.0
    %2110 = vmatprep.subr.mxu0 0.0
    %2111 = vmatpush1.msra.mxu0 0.0
    %2112 = vmatprep.subr.mxu0 0.0
    %2113 = vmatpush1.msra.mxu0 0.0
    %2114 = vmatprep.subr.mxu0 0.0
    %2115 = vmatpush1.msra.mxu0 0.0
    %2116 = vmatprep.subr.mxu0 0.0
    %2117 = vmatpush1.msra.mxu0 %v2087
    %2118 = vmatprep.subr.mxu0 0.0
    %2119 = vmatpush1.msra.mxu0 %v2086
    %2120 = vmatprep.subr.mxu0 0.0
    %2121 = vmatpush1.msra.mxu0 %v2085
    %2122 = vmatprep.subr.mxu0 0.0
    %2123 = vmatpush1.msra.mxu0 %v2084
    %2124 = vmatprep.subr.mxu0 0.0
    %2125 = vmatpush2.msra.mxu0 0.0
    %2126 = vmatprep.subr.mxu0 0.0
    %2127 = vmatpush2.msra.mxu0 0.0
    %2128 = vmatprep.subr.mxu0 0.0
    %2129 = vmatpush2.msra.mxu0 0.0
    %2130 = vmatprep.subr.mxu0 0.0
    %2131 = vmatpush2.msra.mxu0 0.0
    %2132 = vmatprep.subr.mxu0 0.0
    %2133 = vmatpush2.msra.mxu0 0.0
    %2134 = vmatprep.subr.mxu0 0.0
    %2135 = vmatpush2.msra.mxu0 0.0
    %2136 = vmatprep.subr.mxu0 0.0
    %2137 = vmatpush2.msra.mxu0 0.0
    %2138 = vmatprep.subr.mxu0 0.0
    %2139 = vmatpush2.msra.mxu0 0.0
    %2140 = vmatprep.subr.mxu0 0.0
    %2141 = vmatpush2.msra.mxu0 0.0
    %2142 = vmatprep.subr.mxu0 0.0
    %2143 = vmatpush2.msra.mxu0 0.0
    %2144 = vmatprep.subr.mxu0 0.0
    %2145 = vmatpush2.msra.mxu0 0.0
    %2146 = vmatprep.subr.mxu0 0.0
    %2147 = vmatpush2.msra.mxu0 0.0
    %2148 = vmatprep.subr.mxu0 0.0
    %2149 = vmatpush2.msra.mxu0 0.0
    %2150 = vmatprep.subr.mxu0 0.0
    %2151 = vmatpush2.msra.mxu0 0.0
    %2152 = vmatprep.subr.mxu0 0.0
    %2153 = vmatpush2.msra.mxu0 0.0
    %2154 = vmatprep.subr.mxu0 0.0
    %2155 = vmatpush2.msra.mxu0 0.0
    %2156 = vmatprep.mubr.f32.mxu0 0.0
    %2157 = vmatmul.mubr.f32.gmra.mxu0 %v219
    %v2158 = vpop.f32.mrf.mxu0
    %v2159 = vadd.f32 0.0, %v2158
    %v2160 = vpop.f32.mrf.mxu0
    %2161 = vdwg.mxu0
    %v2162 = vadd.f32 %v2074, %v2159
    %2163 = vmatprep.subr.mxu0 0.0
    %2164 = vmatpush1.msra.mxu0 0.0
    %2165 = vmatprep.subr.mxu0 0.0
    %2166 = vmatpush1.msra.mxu0 0.0
    %2167 = vmatprep.subr.mxu0 0.0
    %2168 = vmatpush1.msra.mxu0 0.0
    %2169 = vmatprep.subr.mxu0 0.0
    %2170 = vmatpush1.msra.mxu0 0.0
    %2171 = vmatprep.subr.mxu0 0.0
    %2172 = vmatpush1.msra.mxu0 0.0
    %2173 = vmatprep.subr.mxu0 0.0
    %2174 = vmatpush1.msra.mxu0 0.0
    %2175 = vmatprep.subr.mxu0 0.0
    %2176 = vmatpush1.msra.mxu0 0.0
    %2177 = vmatprep.subr.mxu0 0.0
    %2178 = vmatpush1.msra.mxu0 0.0
    %2179 = vmatprep.subr.mxu0 0.0
    %2180 = vmatpush1.msra.mxu0 0.0
    %2181 = vmatprep.subr.mxu0 0.0
    %2182 = vmatpush1.msra.mxu0 0.0
    %2183 = vmatprep.subr.mxu0 0.0
    %2184 = vmatpush1.msra.mxu0 0.0
    %2185 = vmatprep.subr.mxu0 0.0
    %2186 = vmatpush1.msra.mxu0 0.0
    %2187 = vmatprep.subr.mxu0 0.0
    %2188 = vmatpush1.msra.mxu0 %v2091
    %2189 = vmatprep.subr.mxu0 0.0
    %2190 = vmatpush1.msra.mxu0 %v2090
    %2191 = vmatprep.subr.mxu0 0.0
    %2192 = vmatpush1.msra.mxu0 %v2089
    %2193 = vmatprep.subr.mxu0 0.0
    %2194 = vmatpush1.msra.mxu0 %v2088
    %2195 = vmatprep.subr.mxu0 0.0
    %2196 = vmatpush2.msra.mxu0 0.0
    %2197 = vmatprep.subr.mxu0 0.0
    %2198 = vmatpush2.msra.mxu0 0.0
    %2199 = vmatprep.subr.mxu0 0.0
    %2200 = vmatpush2.msra.mxu0 0.0
    %2201 = vmatprep.subr.mxu0 0.0
    %2202 = vmatpush2.msra.mxu0 0.0
    %2203 = vmatprep.subr.mxu0 0.0
    %2204 = vmatpush2.msra.mxu0 0.0
    %2205 = vmatprep.subr.mxu0 0.0
    %2206 = vmatpush2.msra.mxu0 0.0
    %2207 = vmatprep.subr.mxu0 0.0
    %2208 = vmatpush2.msra.mxu0 0.0
    %2209 = vmatprep.subr.mxu0 0.0
    %2210 = vmatpush2.msra.mxu0 0.0
    %2211 = vmatprep.subr.mxu0 0.0
    %2212 = vmatpush2.msra.mxu0 0.0
    %2213 = vmatprep.subr.mxu0 0.0
    %2214 = vmatpush2.msra.mxu0 0.0
    %2215 = vmatprep.subr.mxu0 0.0
    %2216 = vmatpush2.msra.mxu0 0.0
    %2217 = vmatprep.subr.mxu0 0.0
    %2218 = vmatpush2.msra.mxu0 0.0
    %2219 = vmatprep.subr.mxu0 0.0
    %2220 = vmatpush2.msra.mxu0 0.0
    %2221 = vmatprep.subr.mxu0 0.0
    %2222 = vmatpush2.msra.mxu0 0.0
    %2223 = vmatprep.subr.mxu0 0.0
    %2224 = vmatpush2.msra.mxu0 0.0
    %2225 = vmatprep.subr.mxu0 0.0
    %2226 = vmatpush2.msra.mxu0 0.0
    %2227 = vmatprep.mubr.f32.mxu0 0.0
    %2228 = vmatmul.mubr.f32.gmra.mxu0 %v219
    %v2229 = vpop.f32.mrf.mxu0
    %v2230 = vadd.f32 0.0, %v2229
    %v2231 = vpop.f32.mrf.mxu0
    %2232 = vdwg.mxu0
    %v2234 = vrot.slane %v2230, 2
    %v2236 = vadd.f32 %v2082, %v2234
    %v2237 = vsub.f32 0.0, %v2162
    %v2238 = vmul.f32 %v2237, 1.442695
    %v2239 = vpow.pop %v2238
    %v2240 = vadd.f32 %v2239, 1.0
    %v2241 = vrcp.pop %v2240
    %v2242 = vmul.f32 1.0, %v2241
    %v2243 = vtanh.pop %v2162
    %v2244 = vmul.f32 %v2242, 0.0
    %2246 = vrot.lane.b32.xlu0 %v2243, 64
    %v2247 = vpop.permute.xlu0 %2246
    %v2249 = vmul.f32 %v2242, %v2247
    %2251 = vrot.lane.b32.xlu0 %v2249, 32
    %v2252 = vpop.permute.xlu0 %2251
    %v2254 = vadd.f32 %v2244, %v2252
    %v2255 = vtanh.pop %v2254
    %2257 = vrot.lane.b32.xlu0 %v2255, 64
    %v2258 = vpop.permute.xlu0 %2257
    %v2260 = vmul.f32 %v2242, %v2258
    %v2261 = vsub.f32 0.0, %v2236
    %v2262 = vmul.f32 %v2261, 1.442695
    %v2263 = vpow.pop %v2262
    %v2264 = vadd.f32 %v2263, 1.0
    %v2265 = vrcp.pop %v2264
    %v2266 = vmul.f32 1.0, %v2265
    %v2267 = vtanh.pop %v2236
    %v2268 = vmul.f32 %v2266, 0.0
    %2270 = vrot.lane.b32.xlu0 %v2267, 64
    %v2271 = vpop.permute.xlu0 %2270
    %v2273 = vmul.f32 %v2266, %v2271
    %2275 = vrot.lane.b32.xlu0 %v2273, 32
    %v2276 = vpop.permute.xlu0 %2275
    %v2278 = vadd.f32 %v2268, %v2276
    %v2279 = vtanh.pop %v2278
    %2281 = vrot.lane.b32.xlu0 %v2279, 64
    %v2282 = vpop.permute.xlu0 %2281
    %v2284 = vmul.f32 %v2266, %v2282
    %2286 = vrot.lane.b32.xlu0 %v2260, 32
    %v2287 = vpop.permute.xlu0 %2286
    %2289 = vst.msk [vmem:[#allocation2] sm:$0x3] %vm418, %v2287
    %2291 = vrot.lane.b32.xlu0 %v2284, 64
    %v2292 = vpop.permute.xlu0 %2291
    %2294 = vst.msk [vmem:[#allocation2 + $0x8] sm:$0xc0] %vm424, %v2292
    %v2295 = vsel %vm217, %v2287, 0
    %2297 = vmatprep.subr.mxu0 0.0
    %2298 = vmatpush1.msra.mxu0 0.0
    %2299 = vmatprep.subr.mxu0 0.0
    %2300 = vmatpush1.msra.mxu0 0.0
    %2301 = vmatprep.subr.mxu0 0.0
    %2302 = vmatpush1.msra.mxu0 0.0
    %2303 = vmatprep.subr.mxu0 0.0
    %2304 = vmatpush1.msra.mxu0 0.0
    %2305 = vmatprep.subr.mxu0 0.0
    %2306 = vmatpush1.msra.mxu0 0.0
    %2307 = vmatprep.subr.mxu0 0.0
    %2308 = vmatpush1.msra.mxu0 0.0
    %2309 = vmatprep.subr.mxu0 0.0
    %2310 = vmatpush1.msra.mxu0 0.0
    %2311 = vmatprep.subr.mxu0 0.0
    %2312 = vmatpush1.msra.mxu0 0.0
    %2313 = vmatprep.subr.mxu0 0.0
    %2314 = vmatpush1.msra.mxu0 0.0
    %2315 = vmatprep.subr.mxu0 0.0
    %2316 = vmatpush1.msra.mxu0 0.0
    %2317 = vmatprep.subr.mxu0 0.0
    %2318 = vmatpush1.msra.mxu0 0.0
    %2319 = vmatprep.subr.mxu0 0.0
    %2320 = vmatpush1.msra.mxu0 0.0
    %2321 = vmatprep.subr.mxu0 0.0
    %2322 = vmatpush1.msra.mxu0 %v2087
    %2323 = vmatprep.subr.mxu0 0.0
    %2324 = vmatpush1.msra.mxu0 %v2086
    %2325 = vmatprep.subr.mxu0 0.0
    %2326 = vmatpush1.msra.mxu0 %v2085
    %2327 = vmatprep.subr.mxu0 0.0
    %2328 = vmatpush1.msra.mxu0 %v2084
    %2329 = vmatprep.subr.mxu0 0.0
    %2330 = vmatpush2.msra.mxu0 0.0
    %2331 = vmatprep.subr.mxu0 0.0
    %2332 = vmatpush2.msra.mxu0 0.0
    %2333 = vmatprep.subr.mxu0 0.0
    %2334 = vmatpush2.msra.mxu0 0.0
    %2335 = vmatprep.subr.mxu0 0.0
    %2336 = vmatpush2.msra.mxu0 0.0
    %2337 = vmatprep.subr.mxu0 0.0
    %2338 = vmatpush2.msra.mxu0 0.0
    %2339 = vmatprep.subr.mxu0 0.0
    %2340 = vmatpush2.msra.mxu0 0.0
    %2341 = vmatprep.subr.mxu0 0.0
    %2342 = vmatpush2.msra.mxu0 0.0
    %2343 = vmatprep.subr.mxu0 0.0
    %2344 = vmatpush2.msra.mxu0 0.0
    %2345 = vmatprep.subr.mxu0 0.0
    %2346 = vmatpush2.msra.mxu0 0.0
    %2347 = vmatprep.subr.mxu0 0.0
    %2348 = vmatpush2.msra.mxu0 0.0
    %2349 = vmatprep.subr.mxu0 0.0
    %2350 = vmatpush2.msra.mxu0 0.0
    %2351 = vmatprep.subr.mxu0 0.0
    %2352 = vmatpush2.msra.mxu0 0.0
    %2353 = vmatprep.subr.mxu0 0.0
    %2354 = vmatpush2.msra.mxu0 0.0
    %2355 = vmatprep.subr.mxu0 0.0
    %2356 = vmatpush2.msra.mxu0 0.0
    %2357 = vmatprep.subr.mxu0 0.0
    %2358 = vmatpush2.msra.mxu0 0.0
    %2359 = vmatprep.subr.mxu0 0.0
    %2360 = vmatpush2.msra.mxu0 0.0
    %2361 = vmatprep.mubr.f32.mxu0 0.0
    %2362 = vmatmul.mubr.f32.gmra.mxu0 %v2295
    %v2363 = vpop.f32.mrf.mxu0
    %v2364 = vadd.f32 0.0, %v2363
    %v2365 = vpop.f32.mrf.mxu0
    %2366 = vdwg.mxu0
    %v2368 = vrot.slane %v2364, 6
    %v2370 = vadd.f32 %v2074, %v2368
    %v2371 = vrot.slane %v2284, 6
    %2372 = vrot.lane.b32.xlu0 %v2371, 32
    %v2373 = vpop.permute.xlu0 %2372
    %v2374 = vsel %vm217, %v2373, 0
    %2376 = vmatprep.subr.mxu0 0.0
    %2377 = vmatpush1.msra.mxu0 0.0
    %2378 = vmatprep.subr.mxu0 0.0
    %2379 = vmatpush1.msra.mxu0 0.0
    %2380 = vmatprep.subr.mxu0 0.0
    %2381 = vmatpush1.msra.mxu0 0.0
    %2382 = vmatprep.subr.mxu0 0.0
    %2383 = vmatpush1.msra.mxu0 0.0
    %2384 = vmatprep.subr.mxu0 0.0
    %2385 = vmatpush1.msra.mxu0 0.0
    %2386 = vmatprep.subr.mxu0 0.0
    %2387 = vmatpush1.msra.mxu0 0.0
    %2388 = vmatprep.subr.mxu0 0.0
    %2389 = vmatpush1.msra.mxu0 0.0
    %2390 = vmatprep.subr.mxu0 0.0
    %2391 = vmatpush1.msra.mxu0 0.0
    %2392 = vmatprep.subr.mxu0 0.0
    %2393 = vmatpush1.msra.mxu0 0.0
    %2394 = vmatprep.subr.mxu0 0.0
    %2395 = vmatpush1.msra.mxu0 0.0
    %2396 = vmatprep.subr.mxu0 0.0
    %2397 = vmatpush1.msra.mxu0 0.0
    %2398 = vmatprep.subr.mxu0 0.0
    %2399 = vmatpush1.msra.mxu0 0.0
    %2400 = vmatprep.subr.mxu0 0.0
    %2401 = vmatpush1.msra.mxu0 %v2091
    %2402 = vmatprep.subr.mxu0 0.0
    %2403 = vmatpush1.msra.mxu0 %v2090
    %2404 = vmatprep.subr.mxu0 0.0
    %2405 = vmatpush1.msra.mxu0 %v2089
    %2406 = vmatprep.subr.mxu0 0.0
    %2407 = vmatpush1.msra.mxu0 %v2088
    %2408 = vmatprep.subr.mxu0 0.0
    %2409 = vmatpush2.msra.mxu0 0.0
    %2410 = vmatprep.subr.mxu0 0.0
    %2411 = vmatpush2.msra.mxu0 0.0
    %2412 = vmatprep.subr.mxu0 0.0
    %2413 = vmatpush2.msra.mxu0 0.0
    %2414 = vmatprep.subr.mxu0 0.0
    %2415 = vmatpush2.msra.mxu0 0.0
    %2416 = vmatprep.subr.mxu0 0.0
    %2417 = vmatpush2.msra.mxu0 0.0
    %2418 = vmatprep.subr.mxu0 0.0
    %2419 = vmatpush2.msra.mxu0 0.0
    %2420 = vmatprep.subr.mxu0 0.0
    %2421 = vmatpush2.msra.mxu0 0.0
    %2422 = vmatprep.subr.mxu0 0.0
    %2423 = vmatpush2.msra.mxu0 0.0
    %2424 = vmatprep.subr.mxu0 0.0
    %2425 = vmatpush2.msra.mxu0 0.0
    %2426 = vmatprep.subr.mxu0 0.0
    %2427 = vmatpush2.msra.mxu0 0.0
    %2428 = vmatprep.subr.mxu0 0.0
    %2429 = vmatpush2.msra.mxu0 0.0
    %2430 = vmatprep.subr.mxu0 0.0
    %2431 = vmatpush2.msra.mxu0 0.0
    %2432 = vmatprep.subr.mxu0 0.0
    %2433 = vmatpush2.msra.mxu0 0.0
    %2434 = vmatprep.subr.mxu0 0.0
    %2435 = vmatpush2.msra.mxu0 0.0
    %2436 = vmatprep.subr.mxu0 0.0
    %2437 = vmatpush2.msra.mxu0 0.0
    %2438 = vmatprep.subr.mxu0 0.0
    %2439 = vmatpush2.msra.mxu0 0.0
    %2440 = vmatprep.mubr.f32.mxu0 0.0
    %2441 = vmatmul.mubr.f32.gmra.mxu0 %v2374
    %v2442 = vpop.f32.mrf.mxu0
    %v2443 = vadd.f32 0.0, %v2442
    %v2444 = vpop.f32.mrf.mxu0
    %2445 = vdwg.mxu0
    %v2447 = vrot.slane %v2443, 4
    %v2449 = vadd.f32 %v2082, %v2447
    %v2450 = vsub.f32 0.0, %v2370
    %v2451 = vmul.f32 %v2450, 1.442695
    %v2452 = vpow.pop %v2451
    %v2453 = vadd.f32 %v2452, 1.0
    %v2454 = vrcp.pop %v2453
    %v2455 = vmul.f32 1.0, %v2454
    %v2456 = vtanh.pop %v2370
    %v2458 = vrot.slane %v2254, 6
    %v2460 = vmul.f32 %v2455, %v2458
    %2462 = vrot.lane.b32.xlu0 %v2456, 64
    %v2463 = vpop.permute.xlu0 %2462
    %v2465 = vmul.f32 %v2455, %v2463
    %2467 = vrot.lane.b32.xlu0 %v2465, 32
    %v2468 = vpop.permute.xlu0 %2467
    %v2470 = vadd.f32 %v2460, %v2468
    %v2471 = vtanh.pop %v2470
    %2473 = vrot.lane.b32.xlu0 %v2471, 64
    %v2474 = vpop.permute.xlu0 %2473
    %v2476 = vmul.f32 %v2455, %v2474
    %v2477 = vsub.f32 0.0, %v2449
    %v2478 = vmul.f32 %v2477, 1.442695
    %v2479 = vpow.pop %v2478
    %v2480 = vadd.f32 %v2479, 1.0
    %v2481 = vrcp.pop %v2480
    %v2482 = vmul.f32 1.0, %v2481
    %v2483 = vtanh.pop %v2449
    %v2485 = vrot.slane %v2278, 2
    %v2487 = vmul.f32 %v2482, %v2485
    %2489 = vrot.lane.b32.xlu0 %v2483, 64
    %v2490 = vpop.permute.xlu0 %2489
    %v2492 = vmul.f32 %v2482, %v2490
    %2494 = vrot.lane.b32.xlu0 %v2492, 32
    %v2495 = vpop.permute.xlu0 %2494
    %v2497 = vadd.f32 %v2487, %v2495
    %v2498 = vtanh.pop %v2497
    %2500 = vrot.lane.b32.xlu0 %v2498, 64
    %v2501 = vpop.permute.xlu0 %2500
    %v2503 = vmul.f32 %v2482, %v2501
    %2505 = vrot.lane.b32.xlu0 %v2476, 32
    %v2506 = vpop.permute.xlu0 %2505
    %2508 = vst.msk [vmem:[#allocation2] sm:$0xc] %vm639, %v2506
    %2510 = vrot.lane.b32.xlu0 %v2503, 64
    %v2511 = vpop.permute.xlu0 %2510
    %2513 = vst.msk [vmem:[#allocation2 + $0x8] sm:$0x30] %vm645, %v2511
    %v2514 = vrot.slane %v2476, 2
    %2515 = vrot.lane.b32.xlu0 %v2514, 32
    %v2516 = vpop.permute.xlu0 %2515
    %v2517 = vsel %vm217, %v2516, 0
    %2519 = vmatprep.subr.mxu0 0.0
    %2520 = vmatpush1.msra.mxu0 0.0
    %2521 = vmatprep.subr.mxu0 0.0
    %2522 = vmatpush1.msra.mxu0 0.0
    %2523 = vmatprep.subr.mxu0 0.0
    %2524 = vmatpush1.msra.mxu0 0.0
    %2525 = vmatprep.subr.mxu0 0.0
    %2526 = vmatpush1.msra.mxu0 0.0
    %2527 = vmatprep.subr.mxu0 0.0
    %2528 = vmatpush1.msra.mxu0 0.0
    %2529 = vmatprep.subr.mxu0 0.0
    %2530 = vmatpush1.msra.mxu0 0.0
    %2531 = vmatprep.subr.mxu0 0.0
    %2532 = vmatpush1.msra.mxu0 0.0
    %2533 = vmatprep.subr.mxu0 0.0
    %2534 = vmatpush1.msra.mxu0 0.0
    %2535 = vmatprep.subr.mxu0 0.0
    %2536 = vmatpush1.msra.mxu0 0.0
    %2537 = vmatprep.subr.mxu0 0.0
    %2538 = vmatpush1.msra.mxu0 0.0
    %2539 = vmatprep.subr.mxu0 0.0
    %2540 = vmatpush1.msra.mxu0 0.0
    %2541 = vmatprep.subr.mxu0 0.0
    %2542 = vmatpush1.msra.mxu0 0.0
    %2543 = vmatprep.subr.mxu0 0.0
    %2544 = vmatpush1.msra.mxu0 %v2087
    %2545 = vmatprep.subr.mxu0 0.0
    %2546 = vmatpush1.msra.mxu0 %v2086
    %2547 = vmatprep.subr.mxu0 0.0
    %2548 = vmatpush1.msra.mxu0 %v2085
    %2549 = vmatprep.subr.mxu0 0.0
    %2550 = vmatpush1.msra.mxu0 %v2084
    %2551 = vmatprep.subr.mxu0 0.0
    %2552 = vmatpush2.msra.mxu0 0.0
    %2553 = vmatprep.subr.mxu0 0.0
    %2554 = vmatpush2.msra.mxu0 0.0
    %2555 = vmatprep.subr.mxu0 0.0
    %2556 = vmatpush2.msra.mxu0 0.0
    %2557 = vmatprep.subr.mxu0 0.0
    %2558 = vmatpush2.msra.mxu0 0.0
    %2559 = vmatprep.subr.mxu0 0.0
    %2560 = vmatpush2.msra.mxu0 0.0
    %2561 = vmatprep.subr.mxu0 0.0
    %2562 = vmatpush2.msra.mxu0 0.0
    %2563 = vmatprep.subr.mxu0 0.0
    %2564 = vmatpush2.msra.mxu0 0.0
    %2565 = vmatprep.subr.mxu0 0.0
    %2566 = vmatpush2.msra.mxu0 0.0
    %2567 = vmatprep.subr.mxu0 0.0
    %2568 = vmatpush2.msra.mxu0 0.0
    %2569 = vmatprep.subr.mxu0 0.0
    %2570 = vmatpush2.msra.mxu0 0.0
    %2571 = vmatprep.subr.mxu0 0.0
    %2572 = vmatpush2.msra.mxu0 0.0
    %2573 = vmatprep.subr.mxu0 0.0
    %2574 = vmatpush2.msra.mxu0 0.0
    %2575 = vmatprep.subr.mxu0 0.0
    %2576 = vmatpush2.msra.mxu0 0.0
    %2577 = vmatprep.subr.mxu0 0.0
    %2578 = vmatpush2.msra.mxu0 0.0
    %2579 = vmatprep.subr.mxu0 0.0
    %2580 = vmatpush2.msra.mxu0 0.0
    %2581 = vmatprep.subr.mxu0 0.0
    %2582 = vmatpush2.msra.mxu0 0.0
    %2583 = vmatprep.mubr.f32.mxu0 0.0
    %2584 = vmatmul.mubr.f32.gmra.mxu0 %v2517
    %v2585 = vpop.f32.mrf.mxu0
    %v2586 = vadd.f32 0.0, %v2585
    %v2587 = vpop.f32.mrf.mxu0
    %2588 = vdwg.mxu0
    %v2590 = vrot.slane %v2586, 4
    %v2592 = vadd.f32 %v2074, %v2590
    %v2593 = vrot.slane %v2503, 4
    %2594 = vrot.lane.b32.xlu0 %v2593, 32
    %v2595 = vpop.permute.xlu0 %2594
    %v2596 = vsel %vm217, %v2595, 0
    %2598 = vmatprep.subr.mxu0 0.0
    %2599 = vmatpush1.msra.mxu0 0.0
    %2600 = vmatprep.subr.mxu0 0.0
    %2601 = vmatpush1.msra.mxu0 0.0
    %2602 = vmatprep.subr.mxu0 0.0
    %2603 = vmatpush1.msra.mxu0 0.0
    %2604 = vmatprep.subr.mxu0 0.0
    %2605 = vmatpush1.msra.mxu0 0.0
    %2606 = vmatprep.subr.mxu0 0.0
    %2607 = vmatpush1.msra.mxu0 0.0
    %2608 = vmatprep.subr.mxu0 0.0
    %2609 = vmatpush1.msra.mxu0 0.0
    %2610 = vmatprep.subr.mxu0 0.0
    %2611 = vmatpush1.msra.mxu0 0.0
    %2612 = vmatprep.subr.mxu0 0.0
    %2613 = vmatpush1.msra.mxu0 0.0
    %2614 = vmatprep.subr.mxu0 0.0
    %2615 = vmatpush1.msra.mxu0 0.0
    %2616 = vmatprep.subr.mxu0 0.0
    %2617 = vmatpush1.msra.mxu0 0.0
    %2618 = vmatprep.subr.mxu0 0.0
    %2619 = vmatpush1.msra.mxu0 0.0
    %2620 = vmatprep.subr.mxu0 0.0
    %2621 = vmatpush1.msra.mxu0 0.0
    %2622 = vmatprep.subr.mxu0 0.0
    %2623 = vmatpush1.msra.mxu0 %v2091
    %2624 = vmatprep.subr.mxu0 0.0
    %2625 = vmatpush1.msra.mxu0 %v2090
    %2626 = vmatprep.subr.mxu0 0.0
    %2627 = vmatpush1.msra.mxu0 %v2089
    %2628 = vmatprep.subr.mxu0 0.0
    %2629 = vmatpush1.msra.mxu0 %v2088
    %2630 = vmatprep.subr.mxu0 0.0
    %2631 = vmatpush2.msra.mxu0 0.0
    %2632 = vmatprep.subr.mxu0 0.0
    %2633 = vmatpush2.msra.mxu0 0.0
    %2634 = vmatprep.subr.mxu0 0.0
    %2635 = vmatpush2.msra.mxu0 0.0
    %2636 = vmatprep.subr.mxu0 0.0
    %2637 = vmatpush2.msra.mxu0 0.0
    %2638 = vmatprep.subr.mxu0 0.0
    %2639 = vmatpush2.msra.mxu0 0.0
    %2640 = vmatprep.subr.mxu0 0.0
    %2641 = vmatpush2.msra.mxu0 0.0
    %2642 = vmatprep.subr.mxu0 0.0
    %2643 = vmatpush2.msra.mxu0 0.0
    %2644 = vmatprep.subr.mxu0 0.0
    %2645 = vmatpush2.msra.mxu0 0.0
    %2646 = vmatprep.subr.mxu0 0.0
    %2647 = vmatpush2.msra.mxu0 0.0
    %2648 = vmatprep.subr.mxu0 0.0
    %2649 = vmatpush2.msra.mxu0 0.0
    %2650 = vmatprep.subr.mxu0 0.0
    %2651 = vmatpush2.msra.mxu0 0.0
    %2652 = vmatprep.subr.mxu0 0.0
    %2653 = vmatpush2.msra.mxu0 0.0
    %2654 = vmatprep.subr.mxu0 0.0
    %2655 = vmatpush2.msra.mxu0 0.0
    %2656 = vmatprep.subr.mxu0 0.0
    %2657 = vmatpush2.msra.mxu0 0.0
    %2658 = vmatprep.subr.mxu0 0.0
    %2659 = vmatpush2.msra.mxu0 0.0
    %2660 = vmatprep.subr.mxu0 0.0
    %2661 = vmatpush2.msra.mxu0 0.0
    %2662 = vmatprep.mubr.f32.mxu0 0.0
    %2663 = vmatmul.mubr.f32.gmra.mxu0 %v2596
    %v2664 = vpop.f32.mrf.mxu0
    %v2665 = vadd.f32 0.0, %v2664
    %v2666 = vpop.f32.mrf.mxu0
    %2667 = vdwg.mxu0
    %v2669 = vrot.slane %v2665, 6
    %v2671 = vadd.f32 %v2082, %v2669
    %v2672 = vsub.f32 0.0, %v2592
    %v2673 = vmul.f32 %v2672, 1.442695
    %v2674 = vpow.pop %v2673
    %v2675 = vadd.f32 %v2674, 1.0
    %v2676 = vrcp.pop %v2675
    %v2677 = vmul.f32 1.0, %v2676
    %v2678 = vtanh.pop %v2592
    %v2680 = vrot.slane %v2470, 6
    %v2682 = vmul.f32 %v2677, %v2680
    %2684 = vrot.lane.b32.xlu0 %v2678, 64
    %v2685 = vpop.permute.xlu0 %2684
    %v2687 = vmul.f32 %v2677, %v2685
    %2689 = vrot.lane.b32.xlu0 %v2687, 32
    %v2690 = vpop.permute.xlu0 %2689
    %v2692 = vadd.f32 %v2682, %v2690
    %v2693 = vtanh.pop %v2692
    %2695 = vrot.lane.b32.xlu0 %v2693, 64
    %v2696 = vpop.permute.xlu0 %2695
    %v2698 = vmul.f32 %v2677, %v2696
    %v2699 = vsub.f32 0.0, %v2671
    %v2700 = vmul.f32 %v2699, 1.442695
    %v2701 = vpow.pop %v2700
    %v2702 = vadd.f32 %v2701, 1.0
    %v2703 = vrcp.pop %v2702
    %v2704 = vmul.f32 1.0, %v2703
    %v2705 = vtanh.pop %v2671
    %v2707 = vrot.slane %v2497, 2
    %v2709 = vmul.f32 %v2704, %v2707
    %2711 = vrot.lane.b32.xlu0 %v2705, 64
    %v2712 = vpop.permute.xlu0 %2711
    %v2714 = vmul.f32 %v2704, %v2712
    %2716 = vrot.lane.b32.xlu0 %v2714, 32
    %v2717 = vpop.permute.xlu0 %2716
    %v2719 = vadd.f32 %v2709, %v2717
    %v2720 = vtanh.pop %v2719
    %2722 = vrot.lane.b32.xlu0 %v2720, 64
    %v2723 = vpop.permute.xlu0 %2722
    %v2725 = vmul.f32 %v2704, %v2723
    %2727 = vrot.lane.b32.xlu0 %v2698, 32
    %v2728 = vpop.permute.xlu0 %2727
    %2730 = vst.msk [vmem:[#allocation2] sm:$0x30] %vm863, %v2728
    %2732 = vrot.lane.b32.xlu0 %v2725, 64
    %v2733 = vpop.permute.xlu0 %2732
    %2735 = vst.msk [vmem:[#allocation2 + $0x8] sm:$0xc] %vm869, %v2733
    %v2736 = vrot.slane %v2698, 4
    %2737 = vrot.lane.b32.xlu0 %v2736, 32
    %v2738 = vpop.permute.xlu0 %2737
    %v2739 = vsel %vm217, %v2738, 0
    %2741 = vmatprep.subr.mxu0 0.0
    %2742 = vmatpush1.msra.mxu0 0.0
    %2743 = vmatprep.subr.mxu0 0.0
    %2744 = vmatpush1.msra.mxu0 0.0
    %2745 = vmatprep.subr.mxu0 0.0
    %2746 = vmatpush1.msra.mxu0 0.0
    %2747 = vmatprep.subr.mxu0 0.0
    %2748 = vmatpush1.msra.mxu0 0.0
    %2749 = vmatprep.subr.mxu0 0.0
    %2750 = vmatpush1.msra.mxu0 0.0
    %2751 = vmatprep.subr.mxu0 0.0
    %2752 = vmatpush1.msra.mxu0 0.0
    %2753 = vmatprep.subr.mxu0 0.0
    %2754 = vmatpush1.msra.mxu0 0.0
    %2755 = vmatprep.subr.mxu0 0.0
    %2756 = vmatpush1.msra.mxu0 0.0
    %2757 = vmatprep.subr.mxu0 0.0
    %2758 = vmatpush1.msra.mxu0 0.0
    %2759 = vmatprep.subr.mxu0 0.0
    %2760 = vmatpush1.msra.mxu0 0.0
    %2761 = vmatprep.subr.mxu0 0.0
    %2762 = vmatpush1.msra.mxu0 0.0
    %2763 = vmatprep.subr.mxu0 0.0
    %2764 = vmatpush1.msra.mxu0 0.0
    %2765 = vmatprep.subr.mxu0 0.0
    %2766 = vmatpush1.msra.mxu0 %v2087
    %2767 = vmatprep.subr.mxu0 0.0
    %2768 = vmatpush1.msra.mxu0 %v2086
    %2769 = vmatprep.subr.mxu0 0.0
    %2770 = vmatpush1.msra.mxu0 %v2085
    %2771 = vmatprep.subr.mxu0 0.0
    %2772 = vmatpush1.msra.mxu0 %v2084
    %2773 = vmatprep.subr.mxu0 0.0
    %2774 = vmatpush2.msra.mxu0 0.0
    %2775 = vmatprep.subr.mxu0 0.0
    %2776 = vmatpush2.msra.mxu0 0.0
    %2777 = vmatprep.subr.mxu0 0.0
    %2778 = vmatpush2.msra.mxu0 0.0
    %2779 = vmatprep.subr.mxu0 0.0
    %2780 = vmatpush2.msra.mxu0 0.0
    %2781 = vmatprep.subr.mxu0 0.0
    %2782 = vmatpush2.msra.mxu0 0.0
    %2783 = vmatprep.subr.mxu0 0.0
    %2784 = vmatpush2.msra.mxu0 0.0
    %2785 = vmatprep.subr.mxu0 0.0
    %2786 = vmatpush2.msra.mxu0 0.0
    %2787 = vmatprep.subr.mxu0 0.0
    %2788 = vmatpush2.msra.mxu0 0.0
    %2789 = vmatprep.subr.mxu0 0.0
    %2790 = vmatpush2.msra.mxu0 0.0
    %2791 = vmatprep.subr.mxu0 0.0
    %2792 = vmatpush2.msra.mxu0 0.0
    %2793 = vmatprep.subr.mxu0 0.0
    %2794 = vmatpush2.msra.mxu0 0.0
    %2795 = vmatprep.subr.mxu0 0.0
    %2796 = vmatpush2.msra.mxu0 0.0
    %2797 = vmatprep.subr.mxu0 0.0
    %2798 = vmatpush2.msra.mxu0 0.0
    %2799 = vmatprep.subr.mxu0 0.0
    %2800 = vmatpush2.msra.mxu0 0.0
    %2801 = vmatprep.subr.mxu0 0.0
    %2802 = vmatpush2.msra.mxu0 0.0
    %2803 = vmatprep.subr.mxu0 0.0
    %2804 = vmatpush2.msra.mxu0 0.0
    %2805 = vmatprep.mubr.f32.mxu0 0.0
    %2806 = vmatmul.mubr.f32.gmra.mxu0 %v2739
    %v2807 = vpop.f32.mrf.mxu0
    %v2808 = vadd.f32 0.0, %v2807
    %v2809 = vpop.f32.mrf.mxu0
    %2810 = vdwg.mxu0
    %v2812 = vrot.slane %v2808, 2
    %v2814 = vadd.f32 %v2074, %v2812
    %v2815 = vrot.slane %v2725, 2
    %2816 = vrot.lane.b32.xlu0 %v2815, 32
    %v2817 = vpop.permute.xlu0 %2816
    %v2818 = vsel %vm217, %v2817, 0
    %2820 = vmatprep.subr.mxu0 0.0
    %2821 = vmatpush1.msra.mxu0 0.0
    %2822 = vmatprep.subr.mxu0 0.0
    %2823 = vmatpush1.msra.mxu0 0.0
    %2824 = vmatprep.subr.mxu0 0.0
    %2825 = vmatpush1.msra.mxu0 0.0
    %2826 = vmatprep.subr.mxu0 0.0
    %2827 = vmatpush1.msra.mxu0 0.0
    %2828 = vmatprep.subr.mxu0 0.0
    %2829 = vmatpush1.msra.mxu0 0.0
    %2830 = vmatprep.subr.mxu0 0.0
    %2831 = vmatpush1.msra.mxu0 0.0
    %2832 = vmatprep.subr.mxu0 0.0
    %2833 = vmatpush1.msra.mxu0 0.0
    %2834 = vmatprep.subr.mxu0 0.0
    %2835 = vmatpush1.msra.mxu0 0.0
    %2836 = vmatprep.subr.mxu0 0.0
    %2837 = vmatpush1.msra.mxu0 0.0
    %2838 = vmatprep.subr.mxu0 0.0
    %2839 = vmatpush1.msra.mxu0 0.0
    %2840 = vmatprep.subr.mxu0 0.0
    %2841 = vmatpush1.msra.mxu0 0.0
    %2842 = vmatprep.subr.mxu0 0.0
    %2843 = vmatpush1.msra.mxu0 0.0
    %2844 = vmatprep.subr.mxu0 0.0
    %2845 = vmatpush1.msra.mxu0 %v2091
    %2846 = vmatprep.subr.mxu0 0.0
    %2847 = vmatpush1.msra.mxu0 %v2090
    %2848 = vmatprep.subr.mxu0 0.0
    %2849 = vmatpush1.msra.mxu0 %v2089
    %2850 = vmatprep.subr.mxu0 0.0
    %2851 = vmatpush1.msra.mxu0 %v2088
    %2852 = vmatprep.subr.mxu0 0.0
    %2853 = vmatpush2.msra.mxu0 0.0
    %2854 = vmatprep.subr.mxu0 0.0
    %2855 = vmatpush2.msra.mxu0 0.0
    %2856 = vmatprep.subr.mxu0 0.0
    %2857 = vmatpush2.msra.mxu0 0.0
    %2858 = vmatprep.subr.mxu0 0.0
    %2859 = vmatpush2.msra.mxu0 0.0
    %2860 = vmatprep.subr.mxu0 0.0
    %2861 = vmatpush2.msra.mxu0 0.0
    %2862 = vmatprep.subr.mxu0 0.0
    %2863 = vmatpush2.msra.mxu0 0.0
    %2864 = vmatprep.subr.mxu0 0.0
    %2865 = vmatpush2.msra.mxu0 0.0
    %2866 = vmatprep.subr.mxu0 0.0
    %2867 = vmatpush2.msra.mxu0 0.0
    %2868 = vmatprep.subr.mxu0 0.0
    %2869 = vmatpush2.msra.mxu0 0.0
    %2870 = vmatprep.subr.mxu0 0.0
    %2871 = vmatpush2.msra.mxu0 0.0
    %2872 = vmatprep.subr.mxu0 0.0
    %2873 = vmatpush2.msra.mxu0 0.0
    %2874 = vmatprep.subr.mxu0 0.0
    %2875 = vmatpush2.msra.mxu0 0.0
    %2876 = vmatprep.subr.mxu0 0.0
    %2877 = vmatpush2.msra.mxu0 0.0
    %2878 = vmatprep.subr.mxu0 0.0
    %2879 = vmatpush2.msra.mxu0 0.0
    %2880 = vmatprep.subr.mxu0 0.0
    %2881 = vmatpush2.msra.mxu0 0.0
    %2882 = vmatprep.subr.mxu0 0.0
    %2883 = vmatpush2.msra.mxu0 0.0
    %2884 = vmatprep.mubr.f32.mxu0 0.0
    %2885 = vmatmul.mubr.f32.gmra.mxu0 %v2818
    %v2886 = vpop.f32.mrf.mxu0
    %v2887 = vadd.f32 0.0, %v2886
    %v2888 = vpop.f32.mrf.mxu0
    %2889 = vdwg.mxu0
    %v2890 = vadd.f32 %v2082, %v2887
    %v2891 = vsub.f32 0.0, %v2814
    %v2892 = vmul.f32 %v2891, 1.442695
    %v2893 = vpow.pop %v2892
    %v2894 = vadd.f32 %v2893, 1.0
    %v2895 = vrcp.pop %v2894
    %v2896 = vmul.f32 1.0, %v2895
    %v2897 = vtanh.pop %v2814
    %v2899 = vrot.slane %v2692, 6
    %v2901 = vmul.f32 %v2896, %v2899
    %2903 = vrot.lane.b32.xlu0 %v2897, 64
    %v2904 = vpop.permute.xlu0 %2903
    %v2906 = vmul.f32 %v2896, %v2904
    %2908 = vrot.lane.b32.xlu0 %v2906, 32
    %v2909 = vpop.permute.xlu0 %2908
    %v2911 = vadd.f32 %v2901, %v2909
    %v2912 = vtanh.pop %v2911
    %2914 = vrot.lane.b32.xlu0 %v2912, 64
    %v2915 = vpop.permute.xlu0 %2914
    %v2917 = vmul.f32 %v2896, %v2915
    %v2918 = vsub.f32 0.0, %v2890
    %v2919 = vmul.f32 %v2918, 1.442695
    %v2920 = vpow.pop %v2919
    %v2921 = vadd.f32 %v2920, 1.0
    %v2922 = vrcp.pop %v2921
    %v2923 = vmul.f32 1.0, %v2922
    %v2924 = vtanh.pop %v2890
    %v2926 = vrot.slane %v2719, 2
    %v2928 = vmul.f32 %v2923, %v2926
    %2930 = vrot.lane.b32.xlu0 %v2924, 64
    %v2931 = vpop.permute.xlu0 %2930
    %v2933 = vmul.f32 %v2923, %v2931
    %2935 = vrot.lane.b32.xlu0 %v2933, 32
    %v2936 = vpop.permute.xlu0 %2935
    %v2938 = vadd.f32 %v2928, %v2936
    %v2939 = vtanh.pop %v2938
    %2941 = vrot.lane.b32.xlu0 %v2939, 64
    %v2942 = vpop.permute.xlu0 %2941
    %v2944 = vmul.f32 %v2923, %v2942
    %2946 = vrot.lane.b32.xlu0 %v2917, 32
    %v2947 = vpop.permute.xlu0 %2946
    %2949 = vst.msk [vmem:[#allocation2] sm:$0xc0] %vm1084, %v2947
    %2951 = vrot.lane.b32.xlu0 %v2944, 64
    %v2952 = vpop.permute.xlu0 %2951
    %2954 = vst.msk [vmem:[#allocation2 + $0x8] sm:$0x3] %vm1090, %v2952
    %v2955 = vrot.slane %v2917, 6
    %2956 = vrot.lane.b32.xlu0 %v2955, 32
    %v2957 = vpop.permute.xlu0 %2956
    %v2958 = vsel %vm217, %v2957, 0
    %2960 = vmatprep.subr.mxu0 0.0
    %2961 = vmatpush1.msra.mxu0 0.0
    %2962 = vmatprep.subr.mxu0 0.0
    %2963 = vmatpush1.msra.mxu0 0.0
    %2964 = vmatprep.subr.mxu0 0.0
    %2965 = vmatpush1.msra.mxu0 0.0
    %2966 = vmatprep.subr.mxu0 0.0
    %2967 = vmatpush1.msra.mxu0 0.0
    %2968 = vmatprep.subr.mxu0 0.0
    %2969 = vmatpush1.msra.mxu0 0.0
    %2970 = vmatprep.subr.mxu0 0.0
    %2971 = vmatpush1.msra.mxu0 0.0
    %2972 = vmatprep.subr.mxu0 0.0
    %2973 = vmatpush1.msra.mxu0 0.0
    %2974 = vmatprep.subr.mxu0 0.0
    %2975 = vmatpush1.msra.mxu0 0.0
    %2976 = vmatprep.subr.mxu0 0.0
    %2977 = vmatpush1.msra.mxu0 0.0
    %2978 = vmatprep.subr.mxu0 0.0
    %2979 = vmatpush1.msra.mxu0 0.0
    %2980 = vmatprep.subr.mxu0 0.0
    %2981 = vmatpush1.msra.mxu0 0.0
    %2982 = vmatprep.subr.mxu0 0.0
    %2983 = vmatpush1.msra.mxu0 0.0
    %2984 = vmatprep.subr.mxu0 0.0
    %2985 = vmatpush1.msra.mxu0 %v2087
    %2986 = vmatprep.subr.mxu0 0.0
    %2987 = vmatpush1.msra.mxu0 %v2086
    %2988 = vmatprep.subr.mxu0 0.0
    %2989 = vmatpush1.msra.mxu0 %v2085
    %2990 = vmatprep.subr.mxu0 0.0
    %2991 = vmatpush1.msra.mxu0 %v2084
    %2992 = vmatprep.subr.mxu0 0.0
    %2993 = vmatpush2.msra.mxu0 0.0
    %2994 = vmatprep.subr.mxu0 0.0
    %2995 = vmatpush2.msra.mxu0 0.0
    %2996 = vmatprep.subr.mxu0 0.0
    %2997 = vmatpush2.msra.mxu0 0.0
    %2998 = vmatprep.subr.mxu0 0.0
    %2999 = vmatpush2.msra.mxu0 0.0
    %3000 = vmatprep.subr.mxu0 0.0
    %3001 = vmatpush2.msra.mxu0 0.0
    %3002 = vmatprep.subr.mxu0 0.0
    %3003 = vmatpush2.msra.mxu0 0.0
    %3004 = vmatprep.subr.mxu0 0.0
    %3005 = vmatpush2.msra.mxu0 0.0
    %3006 = vmatprep.subr.mxu0 0.0
    %3007 = vmatpush2.msra.mxu0 0.0
    %3008 = vmatprep.subr.mxu0 0.0
    %3009 = vmatpush2.msra.mxu0 0.0
    %3010 = vmatprep.subr.mxu0 0.0
    %3011 = vmatpush2.msra.mxu0 0.0
    %3012 = vmatprep.subr.mxu0 0.0
    %3013 = vmatpush2.msra.mxu0 0.0
    %3014 = vmatprep.subr.mxu0 0.0
    %3015 = vmatpush2.msra.mxu0 0.0
    %3016 = vmatprep.subr.mxu0 0.0
    %3017 = vmatpush2.msra.mxu0 0.0
    %3018 = vmatprep.subr.mxu0 0.0
    %3019 = vmatpush2.msra.mxu0 0.0
    %3020 = vmatprep.subr.mxu0 0.0
    %3021 = vmatpush2.msra.mxu0 0.0
    %3022 = vmatprep.subr.mxu0 0.0
    %3023 = vmatpush2.msra.mxu0 0.0
    %3024 = vmatprep.mubr.f32.mxu0 0.0
    %3025 = vmatmul.mubr.f32.gmra.mxu0 %v2958
    %v3026 = vpop.f32.mrf.mxu0
    %v3027 = vadd.f32 0.0, %v3026
    %v3028 = vpop.f32.mrf.mxu0
    %3029 = vdwg.mxu0
    %v3030 = vadd.f32 %v2080, %v3027
    %3031 = vrot.lane.b32.xlu0 %v2944, 32
    %v3032 = vpop.permute.xlu0 %3031
    %v3033 = vsel %vm217, %v3032, 0
    %3035 = vmatprep.subr.mxu0 0.0
    %3036 = vmatpush1.msra.mxu0 0.0
    %3037 = vmatprep.subr.mxu0 0.0
    %3038 = vmatpush1.msra.mxu0 0.0
    %3039 = vmatprep.subr.mxu0 0.0
    %3040 = vmatpush1.msra.mxu0 0.0
    %3041 = vmatprep.subr.mxu0 0.0
    %3042 = vmatpush1.msra.mxu0 0.0
    %3043 = vmatprep.subr.mxu0 0.0
    %3044 = vmatpush1.msra.mxu0 0.0
    %3045 = vmatprep.subr.mxu0 0.0
    %3046 = vmatpush1.msra.mxu0 0.0
    %3047 = vmatprep.subr.mxu0 0.0
    %3048 = vmatpush1.msra.mxu0 0.0
    %3049 = vmatprep.subr.mxu0 0.0
    %3050 = vmatpush1.msra.mxu0 0.0
    %3051 = vmatprep.subr.mxu0 0.0
    %3052 = vmatpush1.msra.mxu0 0.0
    %3053 = vmatprep.subr.mxu0 0.0
    %3054 = vmatpush1.msra.mxu0 0.0
    %3055 = vmatprep.subr.mxu0 0.0
    %3056 = vmatpush1.msra.mxu0 0.0
    %3057 = vmatprep.subr.mxu0 0.0
    %3058 = vmatpush1.msra.mxu0 0.0
    %3059 = vmatprep.subr.mxu0 0.0
    %3060 = vmatpush1.msra.mxu0 %v2091
    %3061 = vmatprep.subr.mxu0 0.0
    %3062 = vmatpush1.msra.mxu0 %v2090
    %3063 = vmatprep.subr.mxu0 0.0
    %3064 = vmatpush1.msra.mxu0 %v2089
    %3065 = vmatprep.subr.mxu0 0.0
    %3066 = vmatpush1.msra.mxu0 %v2088
    %3067 = vmatprep.subr.mxu0 0.0
    %3068 = vmatpush2.msra.mxu0 0.0
    %3069 = vmatprep.subr.mxu0 0.0
    %3070 = vmatpush2.msra.mxu0 0.0
    %3071 = vmatprep.subr.mxu0 0.0
    %3072 = vmatpush2.msra.mxu0 0.0
    %3073 = vmatprep.subr.mxu0 0.0
    %3074 = vmatpush2.msra.mxu0 0.0
    %3075 = vmatprep.subr.mxu0 0.0
    %3076 = vmatpush2.msra.mxu0 0.0
    %3077 = vmatprep.subr.mxu0 0.0
    %3078 = vmatpush2.msra.mxu0 0.0
    %3079 = vmatprep.subr.mxu0 0.0
    %3080 = vmatpush2.msra.mxu0 0.0
    %3081 = vmatprep.subr.mxu0 0.0
    %3082 = vmatpush2.msra.mxu0 0.0
    %3083 = vmatprep.subr.mxu0 0.0
    %3084 = vmatpush2.msra.mxu0 0.0
    %3085 = vmatprep.subr.mxu0 0.0
    %3086 = vmatpush2.msra.mxu0 0.0
    %3087 = vmatprep.subr.mxu0 0.0
    %3088 = vmatpush2.msra.mxu0 0.0
    %3089 = vmatprep.subr.mxu0 0.0
    %3090 = vmatpush2.msra.mxu0 0.0
    %3091 = vmatprep.subr.mxu0 0.0
    %3092 = vmatpush2.msra.mxu0 0.0
    %3093 = vmatprep.subr.mxu0 0.0
    %3094 = vmatpush2.msra.mxu0 0.0
    %3095 = vmatprep.subr.mxu0 0.0
    %3096 = vmatpush2.msra.mxu0 0.0
    %3097 = vmatprep.subr.mxu0 0.0
    %3098 = vmatpush2.msra.mxu0 0.0
    %3099 = vmatprep.mubr.f32.mxu0 0.0
    %3100 = vmatmul.mubr.f32.gmra.mxu0 %v3033
    %v3101 = vpop.f32.mrf.mxu0
    %v3102 = vadd.f32 0.0, %v3101
    %v3103 = vpop.f32.mrf.mxu0
    %3104 = vdwg.mxu0
    %v3106 = vrot.slane %v3102, 2
    %v3108 = vadd.f32 %v2076, %v3106
    %v3109 = vsub.f32 0.0, %v3030
    %v3110 = vmul.f32 %v3109, 1.442695
    %v3111 = vpow.pop %v3110
    %v3112 = vadd.f32 %v3111, 1.0
    %v3113 = vrcp.pop %v3112
    %v3114 = vmul.f32 1.0, %v3113
    %v3115 = vtanh.pop %v3030
    %v3117 = vrot.slane %v2911, 6
    %v3119 = vmul.f32 %v3114, %v3117
    %3121 = vrot.lane.b32.xlu0 %v3115, 64
    %v3122 = vpop.permute.xlu0 %3121
    %v3124 = vmul.f32 %v3114, %v3122
    %3126 = vrot.lane.b32.xlu0 %v3124, 32
    %v3127 = vpop.permute.xlu0 %3126
    %v3129 = vadd.f32 %v3119, %v3127
    %v3130 = vtanh.pop %v3129
    %3132 = vrot.lane.b32.xlu0 %v3130, 64
    %v3133 = vpop.permute.xlu0 %3132
    %v3135 = vmul.f32 %v3114, %v3133
    %v3136 = vsub.f32 0.0, %v3108
    %v3137 = vmul.f32 %v3136, 1.442695
    %v3138 = vpow.pop %v3137
    %v3139 = vadd.f32 %v3138, 1.0
    %v3140 = vrcp.pop %v3139
    %v3141 = vmul.f32 1.0, %v3140
    %v3142 = vtanh.pop %v3108
    %v3144 = vrot.slane %v2938, 2
    %v3146 = vmul.f32 %v3141, %v3144
    %3148 = vrot.lane.b32.xlu0 %v3142, 64
    %v3149 = vpop.permute.xlu0 %3148
    %v3151 = vmul.f32 %v3141, %v3149
    %3153 = vrot.lane.b32.xlu0 %v3151, 32
    %v3154 = vpop.permute.xlu0 %3153
    %v3156 = vadd.f32 %v3146, %v3154
    %v3157 = vtanh.pop %v3156
    %3159 = vrot.lane.b32.xlu0 %v3157, 64
    %v3160 = vpop.permute.xlu0 %3159
    %v3162 = vmul.f32 %v3141, %v3160
    %3164 = vrot.lane.b32.xlu0 %v3135, 32
    %v3165 = vpop.permute.xlu0 %3164
    %3167 = vst.msk [vmem:[#allocation2 + $0x8] sm:$0x3] %vm418, %v3165
    %3169 = vrot.lane.b32.xlu0 %v3162, 64
    %v3170 = vpop.permute.xlu0 %3169
    %3172 = vst.msk [vmem:[#allocation2] sm:$0xc0] %vm424, %v3170
    %v3173 = vsel %vm217, %v3165, 0
    %3175 = vmatprep.subr.mxu0 0.0
    %3176 = vmatpush1.msra.mxu0 0.0
    %3177 = vmatprep.subr.mxu0 0.0
    %3178 = vmatpush1.msra.mxu0 0.0
    %3179 = vmatprep.subr.mxu0 0.0
    %3180 = vmatpush1.msra.mxu0 0.0
    %3181 = vmatprep.subr.mxu0 0.0
    %3182 = vmatpush1.msra.mxu0 0.0
    %3183 = vmatprep.subr.mxu0 0.0
    %3184 = vmatpush1.msra.mxu0 0.0
    %3185 = vmatprep.subr.mxu0 0.0
    %3186 = vmatpush1.msra.mxu0 0.0
    %3187 = vmatprep.subr.mxu0 0.0
    %3188 = vmatpush1.msra.mxu0 0.0
    %3189 = vmatprep.subr.mxu0 0.0
    %3190 = vmatpush1.msra.mxu0 0.0
    %3191 = vmatprep.subr.mxu0 0.0
    %3192 = vmatpush1.msra.mxu0 0.0
    %3193 = vmatprep.subr.mxu0 0.0
    %3194 = vmatpush1.msra.mxu0 0.0
    %3195 = vmatprep.subr.mxu0 0.0
    %3196 = vmatpush1.msra.mxu0 0.0
    %3197 = vmatprep.subr.mxu0 0.0
    %3198 = vmatpush1.msra.mxu0 0.0
    %3199 = vmatprep.subr.mxu0 0.0
    %3200 = vmatpush1.msra.mxu0 %v2087
    %3201 = vmatprep.subr.mxu0 0.0
    %3202 = vmatpush1.msra.mxu0 %v2086
    %3203 = vmatprep.subr.mxu0 0.0
    %3204 = vmatpush1.msra.mxu0 %v2085
    %3205 = vmatprep.subr.mxu0 0.0
    %3206 = vmatpush1.msra.mxu0 %v2084
    %3207 = vmatprep.subr.mxu0 0.0
    %3208 = vmatpush2.msra.mxu0 0.0
    %3209 = vmatprep.subr.mxu0 0.0
    %3210 = vmatpush2.msra.mxu0 0.0
    %3211 = vmatprep.subr.mxu0 0.0
    %3212 = vmatpush2.msra.mxu0 0.0
    %3213 = vmatprep.subr.mxu0 0.0
    %3214 = vmatpush2.msra.mxu0 0.0
    %3215 = vmatprep.subr.mxu0 0.0
    %3216 = vmatpush2.msra.mxu0 0.0
    %3217 = vmatprep.subr.mxu0 0.0
    %3218 = vmatpush2.msra.mxu0 0.0
    %3219 = vmatprep.subr.mxu0 0.0
    %3220 = vmatpush2.msra.mxu0 0.0
    %3221 = vmatprep.subr.mxu0 0.0
    %3222 = vmatpush2.msra.mxu0 0.0
    %3223 = vmatprep.subr.mxu0 0.0
    %3224 = vmatpush2.msra.mxu0 0.0
    %3225 = vmatprep.subr.mxu0 0.0
    %3226 = vmatpush2.msra.mxu0 0.0
    %3227 = vmatprep.subr.mxu0 0.0
    %3228 = vmatpush2.msra.mxu0 0.0
    %3229 = vmatprep.subr.mxu0 0.0
    %3230 = vmatpush2.msra.mxu0 0.0
    %3231 = vmatprep.subr.mxu0 0.0
    %3232 = vmatpush2.msra.mxu0 0.0
    %3233 = vmatprep.subr.mxu0 0.0
    %3234 = vmatpush2.msra.mxu0 0.0
    %3235 = vmatprep.subr.mxu0 0.0
    %3236 = vmatpush2.msra.mxu0 0.0
    %3237 = vmatprep.subr.mxu0 0.0
    %3238 = vmatpush2.msra.mxu0 0.0
    %3239 = vmatprep.mubr.f32.mxu0 0.0
    %3240 = vmatmul.mubr.f32.gmra.mxu0 %v3173
    %v3241 = vpop.f32.mrf.mxu0
    %v3242 = vadd.f32 0.0, %v3241
    %v3243 = vpop.f32.mrf.mxu0
    %3244 = vdwg.mxu0
    %v3246 = vrot.slane %v3242, 6
    %v3248 = vadd.f32 %v2080, %v3246
    %v3249 = vrot.slane %v3162, 6
    %3250 = vrot.lane.b32.xlu0 %v3249, 32
    %v3251 = vpop.permute.xlu0 %3250
    %v3252 = vsel %vm217, %v3251, 0
    %3254 = vmatprep.subr.mxu0 0.0
    %3255 = vmatpush1.msra.mxu0 0.0
    %3256 = vmatprep.subr.mxu0 0.0
    %3257 = vmatpush1.msra.mxu0 0.0
    %3258 = vmatprep.subr.mxu0 0.0
    %3259 = vmatpush1.msra.mxu0 0.0
    %3260 = vmatprep.subr.mxu0 0.0
    %3261 = vmatpush1.msra.mxu0 0.0
    %3262 = vmatprep.subr.mxu0 0.0
    %3263 = vmatpush1.msra.mxu0 0.0
    %3264 = vmatprep.subr.mxu0 0.0
    %3265 = vmatpush1.msra.mxu0 0.0
    %3266 = vmatprep.subr.mxu0 0.0
    %3267 = vmatpush1.msra.mxu0 0.0
    %3268 = vmatprep.subr.mxu0 0.0
    %3269 = vmatpush1.msra.mxu0 0.0
    %3270 = vmatprep.subr.mxu0 0.0
    %3271 = vmatpush1.msra.mxu0 0.0
    %3272 = vmatprep.subr.mxu0 0.0
    %3273 = vmatpush1.msra.mxu0 0.0
    %3274 = vmatprep.subr.mxu0 0.0
    %3275 = vmatpush1.msra.mxu0 0.0
    %3276 = vmatprep.subr.mxu0 0.0
    %3277 = vmatpush1.msra.mxu0 0.0
    %3278 = vmatprep.subr.mxu0 0.0
    %3279 = vmatpush1.msra.mxu0 %v2091
    %3280 = vmatprep.subr.mxu0 0.0
    %3281 = vmatpush1.msra.mxu0 %v2090
    %3282 = vmatprep.subr.mxu0 0.0
    %3283 = vmatpush1.msra.mxu0 %v2089
    %3284 = vmatprep.subr.mxu0 0.0
    %3285 = vmatpush1.msra.mxu0 %v2088
    %3286 = vmatprep.subr.mxu0 0.0
    %3287 = vmatpush2.msra.mxu0 0.0
    %3288 = vmatprep.subr.mxu0 0.0
    %3289 = vmatpush2.msra.mxu0 0.0
    %3290 = vmatprep.subr.mxu0 0.0
    %3291 = vmatpush2.msra.mxu0 0.0
    %3292 = vmatprep.subr.mxu0 0.0
    %3293 = vmatpush2.msra.mxu0 0.0
    %3294 = vmatprep.subr.mxu0 0.0
    %3295 = vmatpush2.msra.mxu0 0.0
    %3296 = vmatprep.subr.mxu0 0.0
    %3297 = vmatpush2.msra.mxu0 0.0
    %3298 = vmatprep.subr.mxu0 0.0
    %3299 = vmatpush2.msra.mxu0 0.0
    %3300 = vmatprep.subr.mxu0 0.0
    %3301 = vmatpush2.msra.mxu0 0.0
    %3302 = vmatprep.subr.mxu0 0.0
    %3303 = vmatpush2.msra.mxu0 0.0
    %3304 = vmatprep.subr.mxu0 0.0
    %3305 = vmatpush2.msra.mxu0 0.0
    %3306 = vmatprep.subr.mxu0 0.0
    %3307 = vmatpush2.msra.mxu0 0.0
    %3308 = vmatprep.subr.mxu0 0.0
    %3309 = vmatpush2.msra.mxu0 0.0
    %3310 = vmatprep.subr.mxu0 0.0
    %3311 = vmatpush2.msra.mxu0 0.0
    %3312 = vmatprep.subr.mxu0 0.0
    %3313 = vmatpush2.msra.mxu0 0.0
    %3314 = vmatprep.subr.mxu0 0.0
    %3315 = vmatpush2.msra.mxu0 0.0
    %3316 = vmatprep.subr.mxu0 0.0
    %3317 = vmatpush2.msra.mxu0 0.0
    %3318 = vmatprep.mubr.f32.mxu0 0.0
    %3319 = vmatmul.mubr.f32.gmra.mxu0 %v3252
    %v3320 = vpop.f32.mrf.mxu0
    %v3321 = vadd.f32 0.0, %v3320
    %v3322 = vpop.f32.mrf.mxu0
    %3323 = vdwg.mxu0
    %v3325 = vrot.slane %v3321, 4
    %v3327 = vadd.f32 %v2076, %v3325
    %v3328 = vsub.f32 0.0, %v3248
    %v3329 = vmul.f32 %v3328, 1.442695
    %v3330 = vpow.pop %v3329
    %v3331 = vadd.f32 %v3330, 1.0
    %v3332 = vrcp.pop %v3331
    %v3333 = vmul.f32 1.0, %v3332
    %v3334 = vtanh.pop %v3248
    %v3336 = vrot.slane %v3129, 6
    %v3338 = vmul.f32 %v3333, %v3336
    %3340 = vrot.lane.b32.xlu0 %v3334, 64
    %v3341 = vpop.permute.xlu0 %3340
    %v3343 = vmul.f32 %v3333, %v3341
    %3345 = vrot.lane.b32.xlu0 %v3343, 32
    %v3346 = vpop.permute.xlu0 %3345
    %v3348 = vadd.f32 %v3338, %v3346
    %v3349 = vtanh.pop %v3348
    %3351 = vrot.lane.b32.xlu0 %v3349, 64
    %v3352 = vpop.permute.xlu0 %3351
    %v3354 = vmul.f32 %v3333, %v3352
    %v3355 = vsub.f32 0.0, %v3327
    %v3356 = vmul.f32 %v3355, 1.442695
    %v3357 = vpow.pop %v3356
    %v3358 = vadd.f32 %v3357, 1.0
    %v3359 = vrcp.pop %v3358
    %v3360 = vmul.f32 1.0, %v3359
    %v3361 = vtanh.pop %v3327
    %v3363 = vrot.slane %v3156, 2
    %v3365 = vmul.f32 %v3360, %v3363
    %3367 = vrot.lane.b32.xlu0 %v3361, 64
    %v3368 = vpop.permute.xlu0 %3367
    %v3370 = vmul.f32 %v3360, %v3368
    %3372 = vrot.lane.b32.xlu0 %v3370, 32
    %v3373 = vpop.permute.xlu0 %3372
    %v3375 = vadd.f32 %v3365, %v3373
    %v3376 = vtanh.pop %v3375
    %3378 = vrot.lane.b32.xlu0 %v3376, 64
    %v3379 = vpop.permute.xlu0 %3378
    %v3381 = vmul.f32 %v3360, %v3379
    %3383 = vrot.lane.b32.xlu0 %v3354, 32
    %v3384 = vpop.permute.xlu0 %3383
    %3386 = vst.msk [vmem:[#allocation2 + $0x8] sm:$0xc] %vm639, %v3384
    %3388 = vrot.lane.b32.xlu0 %v3381, 64
    %v3389 = vpop.permute.xlu0 %3388
    %3391 = vst.msk [vmem:[#allocation2] sm:$0x30] %vm645, %v3389
    %v3392 = vrot.slane %v3354, 2
    %3393 = vrot.lane.b32.xlu0 %v3392, 32
    %v3394 = vpop.permute.xlu0 %3393
    %v3395 = vsel %vm217, %v3394, 0
    %3397 = vmatprep.subr.mxu0 0.0
    %3398 = vmatpush1.msra.mxu0 0.0
    %3399 = vmatprep.subr.mxu0 0.0
    %3400 = vmatpush1.msra.mxu0 0.0
    %3401 = vmatprep.subr.mxu0 0.0
    %3402 = vmatpush1.msra.mxu0 0.0
    %3403 = vmatprep.subr.mxu0 0.0
    %3404 = vmatpush1.msra.mxu0 0.0
    %3405 = vmatprep.subr.mxu0 0.0
    %3406 = vmatpush1.msra.mxu0 0.0
    %3407 = vmatprep.subr.mxu0 0.0
    %3408 = vmatpush1.msra.mxu0 0.0
    %3409 = vmatprep.subr.mxu0 0.0
    %3410 = vmatpush1.msra.mxu0 0.0
    %3411 = vmatprep.subr.mxu0 0.0
    %3412 = vmatpush1.msra.mxu0 0.0
    %3413 = vmatprep.subr.mxu0 0.0
    %3414 = vmatpush1.msra.mxu0 0.0
    %3415 = vmatprep.subr.mxu0 0.0
    %3416 = vmatpush1.msra.mxu0 0.0
    %3417 = vmatprep.subr.mxu0 0.0
    %3418 = vmatpush1.msra.mxu0 0.0
    %3419 = vmatprep.subr.mxu0 0.0
    %3420 = vmatpush1.msra.mxu0 0.0
    %3421 = vmatprep.subr.mxu0 0.0
    %3422 = vmatpush1.msra.mxu0 %v2087
    %3423 = vmatprep.subr.mxu0 0.0
    %3424 = vmatpush1.msra.mxu0 %v2086
    %3425 = vmatprep.subr.mxu0 0.0
    %3426 = vmatpush1.msra.mxu0 %v2085
    %3427 = vmatprep.subr.mxu0 0.0
    %3428 = vmatpush1.msra.mxu0 %v2084
    %3429 = vmatprep.subr.mxu0 0.0
    %3430 = vmatpush2.msra.mxu0 0.0
    %3431 = vmatprep.subr.mxu0 0.0
    %3432 = vmatpush2.msra.mxu0 0.0
    %3433 = vmatprep.subr.mxu0 0.0
    %3434 = vmatpush2.msra.mxu0 0.0
    %3435 = vmatprep.subr.mxu0 0.0
    %3436 = vmatpush2.msra.mxu0 0.0
    %3437 = vmatprep.subr.mxu0 0.0
    %3438 = vmatpush2.msra.mxu0 0.0
    %3439 = vmatprep.subr.mxu0 0.0
    %3440 = vmatpush2.msra.mxu0 0.0
    %3441 = vmatprep.subr.mxu0 0.0
    %3442 = vmatpush2.msra.mxu0 0.0
    %3443 = vmatprep.subr.mxu0 0.0
    %3444 = vmatpush2.msra.mxu0 0.0
    %3445 = vmatprep.subr.mxu0 0.0
    %3446 = vmatpush2.msra.mxu0 0.0
    %3447 = vmatprep.subr.mxu0 0.0
    %3448 = vmatpush2.msra.mxu0 0.0
    %3449 = vmatprep.subr.mxu0 0.0
    %3450 = vmatpush2.msra.mxu0 0.0
    %3451 = vmatprep.subr.mxu0 0.0
    %3452 = vmatpush2.msra.mxu0 0.0
    %3453 = vmatprep.subr.mxu0 0.0
    %3454 = vmatpush2.msra.mxu0 0.0
    %3455 = vmatprep.subr.mxu0 0.0
    %3456 = vmatpush2.msra.mxu0 0.0
    %3457 = vmatprep.subr.mxu0 0.0
    %3458 = vmatpush2.msra.mxu0 0.0
    %3459 = vmatprep.subr.mxu0 0.0
    %3460 = vmatpush2.msra.mxu0 0.0
    %3461 = vmatprep.mubr.f32.mxu0 0.0
    %3462 = vmatmul.mubr.f32.gmra.mxu0 %v3395
    %v3463 = vpop.f32.mrf.mxu0
    %v3464 = vadd.f32 0.0, %v3463
    %v3465 = vpop.f32.mrf.mxu0
    %3466 = vdwg.mxu0
    %v3468 = vrot.slane %v3464, 4
    %v3470 = vadd.f32 %v2080, %v3468
    %v3471 = vrot.slane %v3381, 4
    %3472 = vrot.lane.b32.xlu0 %v3471, 32
    %v3473 = vpop.permute.xlu0 %3472
    %v3474 = vsel %vm217, %v3473, 0
    %3476 = vmatprep.subr.mxu0 0.0
    %3477 = vmatpush1.msra.mxu0 0.0
    %3478 = vmatprep.subr.mxu0 0.0
    %3479 = vmatpush1.msra.mxu0 0.0
    %3480 = vmatprep.subr.mxu0 0.0
    %3481 = vmatpush1.msra.mxu0 0.0
    %3482 = vmatprep.subr.mxu0 0.0
    %3483 = vmatpush1.msra.mxu0 0.0
    %3484 = vmatprep.subr.mxu0 0.0
    %3485 = vmatpush1.msra.mxu0 0.0
    %3486 = vmatprep.subr.mxu0 0.0
    %3487 = vmatpush1.msra.mxu0 0.0
    %3488 = vmatprep.subr.mxu0 0.0
    %3489 = vmatpush1.msra.mxu0 0.0
    %3490 = vmatprep.subr.mxu0 0.0
    %3491 = vmatpush1.msra.mxu0 0.0
    %3492 = vmatprep.subr.mxu0 0.0
    %3493 = vmatpush1.msra.mxu0 0.0
    %3494 = vmatprep.subr.mxu0 0.0
    %3495 = vmatpush1.msra.mxu0 0.0
    %3496 = vmatprep.subr.mxu0 0.0
    %3497 = vmatpush1.msra.mxu0 0.0
    %3498 = vmatprep.subr.mxu0 0.0
    %3499 = vmatpush1.msra.mxu0 0.0
    %3500 = vmatprep.subr.mxu0 0.0
    %3501 = vmatpush1.msra.mxu0 %v2091
    %3502 = vmatprep.subr.mxu0 0.0
    %3503 = vmatpush1.msra.mxu0 %v2090
    %3504 = vmatprep.subr.mxu0 0.0
    %3505 = vmatpush1.msra.mxu0 %v2089
    %3506 = vmatprep.subr.mxu0 0.0
    %3507 = vmatpush1.msra.mxu0 %v2088
    %3508 = vmatprep.subr.mxu0 0.0
    %3509 = vmatpush2.msra.mxu0 0.0
    %3510 = vmatprep.subr.mxu0 0.0
    %3511 = vmatpush2.msra.mxu0 0.0
    %3512 = vmatprep.subr.mxu0 0.0
    %3513 = vmatpush2.msra.mxu0 0.0
    %3514 = vmatprep.subr.mxu0 0.0
    %3515 = vmatpush2.msra.mxu0 0.0
    %3516 = vmatprep.subr.mxu0 0.0
    %3517 = vmatpush2.msra.mxu0 0.0
    %3518 = vmatprep.subr.mxu0 0.0
    %3519 = vmatpush2.msra.mxu0 0.0
    %3520 = vmatprep.subr.mxu0 0.0
    %3521 = vmatpush2.msra.mxu0 0.0
    %3522 = vmatprep.subr.mxu0 0.0
    %3523 = vmatpush2.msra.mxu0 0.0
    %3524 = vmatprep.subr.mxu0 0.0
    %3525 = vmatpush2.msra.mxu0 0.0
    %3526 = vmatprep.subr.mxu0 0.0
    %3527 = vmatpush2.msra.mxu0 0.0
    %3528 = vmatprep.subr.mxu0 0.0
    %3529 = vmatpush2.msra.mxu0 0.0
    %3530 = vmatprep.subr.mxu0 0.0
    %3531 = vmatpush2.msra.mxu0 0.0
    %3532 = vmatprep.subr.mxu0 0.0
    %3533 = vmatpush2.msra.mxu0 0.0
    %3534 = vmatprep.subr.mxu0 0.0
    %3535 = vmatpush2.msra.mxu0 0.0
    %3536 = vmatprep.subr.mxu0 0.0
    %3537 = vmatpush2.msra.mxu0 0.0
    %3538 = vmatprep.subr.mxu0 0.0
    %3539 = vmatpush2.msra.mxu0 0.0
    %3540 = vmatprep.mubr.f32.mxu0 0.0
    %3541 = vmatmul.mubr.f32.gmra.mxu0 %v3474
    %v3542 = vpop.f32.mrf.mxu0
    %v3543 = vadd.f32 0.0, %v3542
    %v3544 = vpop.f32.mrf.mxu0
    %3545 = vdwg.mxu0
    %v3547 = vrot.slane %v3543, 6
    %v3549 = vadd.f32 %v2076, %v3547
    %v3550 = vsub.f32 0.0, %v3470
    %v3551 = vmul.f32 %v3550, 1.442695
    %v3552 = vpow.pop %v3551
    %v3553 = vadd.f32 %v3552, 1.0
    %v3554 = vrcp.pop %v3553
    %v3555 = vmul.f32 1.0, %v3554
    %v3556 = vtanh.pop %v3470
    %v3558 = vrot.slane %v3348, 6
    %v3560 = vmul.f32 %v3555, %v3558
    %3562 = vrot.lane.b32.xlu0 %v3556, 64
    %v3563 = vpop.permute.xlu0 %3562
    %v3565 = vmul.f32 %v3555, %v3563
    %3567 = vrot.lane.b32.xlu0 %v3565, 32
    %v3568 = vpop.permute.xlu0 %3567
    %v3570 = vadd.f32 %v3560, %v3568
    %v3571 = vtanh.pop %v3570
    %3573 = vrot.lane.b32.xlu0 %v3571, 64
    %v3574 = vpop.permute.xlu0 %3573
    %v3576 = vmul.f32 %v3555, %v3574
    %v3577 = vsub.f32 0.0, %v3549
    %v3578 = vmul.f32 %v3577, 1.442695
    %v3579 = vpow.pop %v3578
    %v3580 = vadd.f32 %v3579, 1.0
    %v3581 = vrcp.pop %v3580
    %v3582 = vmul.f32 1.0, %v3581
    %v3583 = vtanh.pop %v3549
    %v3585 = vrot.slane %v3375, 2
    %v3587 = vmul.f32 %v3582, %v3585
    %3589 = vrot.lane.b32.xlu0 %v3583, 64
    %v3590 = vpop.permute.xlu0 %3589
    %v3592 = vmul.f32 %v3582, %v3590
    %3594 = vrot.lane.b32.xlu0 %v3592, 32
    %v3595 = vpop.permute.xlu0 %3594
    %v3597 = vadd.f32 %v3587, %v3595
    %v3598 = vtanh.pop %v3597
    %3600 = vrot.lane.b32.xlu0 %v3598, 64
    %v3601 = vpop.permute.xlu0 %3600
    %v3603 = vmul.f32 %v3582, %v3601
    %3605 = vrot.lane.b32.xlu0 %v3576, 32
    %v3606 = vpop.permute.xlu0 %3605
    %3608 = vst.msk [vmem:[#allocation2 + $0x8] sm:$0x30] %vm863, %v3606
    %3610 = vrot.lane.b32.xlu0 %v3603, 64
    %v3611 = vpop.permute.xlu0 %3610
    %3613 = vst.msk [vmem:[#allocation2] sm:$0xc] %vm869, %v3611
    %v3614 = vrot.slane %v3576, 4
    %3615 = vrot.lane.b32.xlu0 %v3614, 32
    %v3616 = vpop.permute.xlu0 %3615
    %v3617 = vsel %vm217, %v3616, 0
    %3619 = vmatprep.subr.mxu0 0.0
    %3620 = vmatpush1.msra.mxu0 0.0
    %3621 = vmatprep.subr.mxu0 0.0
    %3622 = vmatpush1.msra.mxu0 0.0
    %3623 = vmatprep.subr.mxu0 0.0
    %3624 = vmatpush1.msra.mxu0 0.0
    %3625 = vmatprep.subr.mxu0 0.0
    %3626 = vmatpush1.msra.mxu0 0.0
    %3627 = vmatprep.subr.mxu0 0.0
    %3628 = vmatpush1.msra.mxu0 0.0
    %3629 = vmatprep.subr.mxu0 0.0
    %3630 = vmatpush1.msra.mxu0 0.0
    %3631 = vmatprep.subr.mxu0 0.0
    %3632 = vmatpush1.msra.mxu0 0.0
    %3633 = vmatprep.subr.mxu0 0.0
    %3634 = vmatpush1.msra.mxu0 0.0
    %3635 = vmatprep.subr.mxu0 0.0
    %3636 = vmatpush1.msra.mxu0 0.0
    %3637 = vmatprep.subr.mxu0 0.0
    %3638 = vmatpush1.msra.mxu0 0.0
    %3639 = vmatprep.subr.mxu0 0.0
    %3640 = vmatpush1.msra.mxu0 0.0
    %3641 = vmatprep.subr.mxu0 0.0
    %3642 = vmatpush1.msra.mxu0 0.0
    %3643 = vmatprep.subr.mxu0 0.0
    %3644 = vmatpush1.msra.mxu0 %v2087
    %3645 = vmatprep.subr.mxu0 0.0
    %3646 = vmatpush1.msra.mxu0 %v2086
    %3647 = vmatprep.subr.mxu0 0.0
    %3648 = vmatpush1.msra.mxu0 %v2085
    %3649 = vmatprep.subr.mxu0 0.0
    %3650 = vmatpush1.msra.mxu0 %v2084
    %3651 = vmatprep.subr.mxu0 0.0
    %3652 = vmatpush2.msra.mxu0 0.0
    %3653 = vmatprep.subr.mxu0 0.0
    %3654 = vmatpush2.msra.mxu0 0.0
    %3655 = vmatprep.subr.mxu0 0.0
    %3656 = vmatpush2.msra.mxu0 0.0
    %3657 = vmatprep.subr.mxu0 0.0
    %3658 = vmatpush2.msra.mxu0 0.0
    %3659 = vmatprep.subr.mxu0 0.0
    %3660 = vmatpush2.msra.mxu0 0.0
    %3661 = vmatprep.subr.mxu0 0.0
    %3662 = vmatpush2.msra.mxu0 0.0
    %3663 = vmatprep.subr.mxu0 0.0
    %3664 = vmatpush2.msra.mxu0 0.0
    %3665 = vmatprep.subr.mxu0 0.0
    %3666 = vmatpush2.msra.mxu0 0.0
    %3667 = vmatprep.subr.mxu0 0.0
    %3668 = vmatpush2.msra.mxu0 0.0
    %3669 = vmatprep.subr.mxu0 0.0
    %3670 = vmatpush2.msra.mxu0 0.0
    %3671 = vmatprep.subr.mxu0 0.0
    %3672 = vmatpush2.msra.mxu0 0.0
    %3673 = vmatprep.subr.mxu0 0.0
    %3674 = vmatpush2.msra.mxu0 0.0
    %3675 = vmatprep.subr.mxu0 0.0
    %3676 = vmatpush2.msra.mxu0 0.0
    %3677 = vmatprep.subr.mxu0 0.0
    %3678 = vmatpush2.msra.mxu0 0.0
    %3679 = vmatprep.subr.mxu0 0.0
    %3680 = vmatpush2.msra.mxu0 0.0
    %3681 = vmatprep.subr.mxu0 0.0
    %3682 = vmatpush2.msra.mxu0 0.0
    %3683 = vmatprep.mubr.f32.mxu0 0.0
    %3684 = vmatmul.mubr.f32.gmra.mxu0 %v3617
    %v3685 = vpop.f32.mrf.mxu0
    %v3686 = vadd.f32 0.0, %v3685
    %v3687 = vpop.f32.mrf.mxu0
    %3688 = vdwg.mxu0
    %v3690 = vrot.slane %v3686, 2
    %v3692 = vadd.f32 %v2080, %v3690
    %v3693 = vrot.slane %v3603, 2
    %3694 = vrot.lane.b32.xlu0 %v3693, 32
    %v3695 = vpop.permute.xlu0 %3694
    %v3696 = vsel %vm217, %v3695, 0
    %3698 = vmatprep.subr.mxu0 0.0
    %3699 = vmatpush1.msra.mxu0 0.0
    %3700 = vmatprep.subr.mxu0 0.0
    %3701 = vmatpush1.msra.mxu0 0.0
    %3702 = vmatprep.subr.mxu0 0.0
    %3703 = vmatpush1.msra.mxu0 0.0
    %3704 = vmatprep.subr.mxu0 0.0
    %3705 = vmatpush1.msra.mxu0 0.0
    %3706 = vmatprep.subr.mxu0 0.0
    %3707 = vmatpush1.msra.mxu0 0.0
    %3708 = vmatprep.subr.mxu0 0.0
    %3709 = vmatpush1.msra.mxu0 0.0
    %3710 = vmatprep.subr.mxu0 0.0
    %3711 = vmatpush1.msra.mxu0 0.0
    %3712 = vmatprep.subr.mxu0 0.0
    %3713 = vmatpush1.msra.mxu0 0.0
    %3714 = vmatprep.subr.mxu0 0.0
    %3715 = vmatpush1.msra.mxu0 0.0
    %3716 = vmatprep.subr.mxu0 0.0
    %3717 = vmatpush1.msra.mxu0 0.0
    %3718 = vmatprep.subr.mxu0 0.0
    %3719 = vmatpush1.msra.mxu0 0.0
    %3720 = vmatprep.subr.mxu0 0.0
    %3721 = vmatpush1.msra.mxu0 0.0
    %3722 = vmatprep.subr.mxu0 0.0
    %3723 = vmatpush1.msra.mxu0 %v2091
    %3724 = vmatprep.subr.mxu0 0.0
    %3725 = vmatpush1.msra.mxu0 %v2090
    %3726 = vmatprep.subr.mxu0 0.0
    %3727 = vmatpush1.msra.mxu0 %v2089
    %3728 = vmatprep.subr.mxu0 0.0
    %3729 = vmatpush1.msra.mxu0 %v2088
    %3730 = vmatprep.subr.mxu0 0.0
    %3731 = vmatpush2.msra.mxu0 0.0
    %3732 = vmatprep.subr.mxu0 0.0
    %3733 = vmatpush2.msra.mxu0 0.0
    %3734 = vmatprep.subr.mxu0 0.0
    %3735 = vmatpush2.msra.mxu0 0.0
    %3736 = vmatprep.subr.mxu0 0.0
    %3737 = vmatpush2.msra.mxu0 0.0
    %3738 = vmatprep.subr.mxu0 0.0
    %3739 = vmatpush2.msra.mxu0 0.0
    %3740 = vmatprep.subr.mxu0 0.0
    %3741 = vmatpush2.msra.mxu0 0.0
    %3742 = vmatprep.subr.mxu0 0.0
    %3743 = vmatpush2.msra.mxu0 0.0
    %3744 = vmatprep.subr.mxu0 0.0
    %3745 = vmatpush2.msra.mxu0 0.0
    %3746 = vmatprep.subr.mxu0 0.0
    %3747 = vmatpush2.msra.mxu0 0.0
    %3748 = vmatprep.subr.mxu0 0.0
    %3749 = vmatpush2.msra.mxu0 0.0
    %3750 = vmatprep.subr.mxu0 0.0
    %3751 = vmatpush2.msra.mxu0 0.0
    %3752 = vmatprep.subr.mxu0 0.0
    %3753 = vmatpush2.msra.mxu0 0.0
    %3754 = vmatprep.subr.mxu0 0.0
    %3755 = vmatpush2.msra.mxu0 0.0
    %3756 = vmatprep.subr.mxu0 0.0
    %3757 = vmatpush2.msra.mxu0 0.0
    %3758 = vmatprep.subr.mxu0 0.0
    %3759 = vmatpush2.msra.mxu0 0.0
    %3760 = vmatprep.subr.mxu0 0.0
    %3761 = vmatpush2.msra.mxu0 0.0
    %3762 = vmatprep.mubr.f32.mxu0 0.0
    %3763 = vmatmul.mubr.f32.gmra.mxu0 %v3696
    %v3764 = vpop.f32.mrf.mxu0
    %v3765 = vadd.f32 0.0, %v3764
    %v3766 = vpop.f32.mrf.mxu0
    %3767 = vdwg.mxu0
    %v3768 = vadd.f32 %v2076, %v3765
    %v3769 = vsub.f32 0.0, %v3692
    %v3770 = vmul.f32 %v3769, 1.442695
    %v3771 = vpow.pop %v3770
    %v3772 = vadd.f32 %v3771, 1.0
    %v3773 = vrcp.pop %v3772
    %v3774 = vmul.f32 1.0, %v3773
    %v3775 = vtanh.pop %v3692
    %v3777 = vrot.slane %v3570, 6
    %v3779 = vmul.f32 %v3774, %v3777
    %3781 = vrot.lane.b32.xlu0 %v3775, 64
    %v3782 = vpop.permute.xlu0 %3781
    %v3784 = vmul.f32 %v3774, %v3782
    %3786 = vrot.lane.b32.xlu0 %v3784, 32
    %v3787 = vpop.permute.xlu0 %3786
    %v3789 = vadd.f32 %v3779, %v3787
    %v3790 = vtanh.pop %v3789
    %3792 = vrot.lane.b32.xlu0 %v3790, 64
    %v3793 = vpop.permute.xlu0 %3792
    %v3795 = vmul.f32 %v3774, %v3793
    %v3796 = vsub.f32 0.0, %v3768
    %v3797 = vmul.f32 %v3796, 1.442695
    %v3798 = vpow.pop %v3797
    %v3799 = vadd.f32 %v3798, 1.0
    %v3800 = vrcp.pop %v3799
    %v3801 = vmul.f32 1.0, %v3800
    %v3802 = vtanh.pop %v3768
    %v3804 = vrot.slane %v3597, 2
    %v3806 = vmul.f32 %v3801, %v3804
    %3808 = vrot.lane.b32.xlu0 %v3802, 64
    %v3809 = vpop.permute.xlu0 %3808
    %v3811 = vmul.f32 %v3801, %v3809
    %3813 = vrot.lane.b32.xlu0 %v3811, 32
    %v3814 = vpop.permute.xlu0 %3813
    %v3816 = vadd.f32 %v3806, %v3814
    %v3817 = vtanh.pop %v3816
    %3819 = vrot.lane.b32.xlu0 %v3817, 64
    %v3820 = vpop.permute.xlu0 %3819
    %v3822 = vmul.f32 %v3801, %v3820
    %3824 = vrot.lane.b32.xlu0 %v3795, 32
    %v3825 = vpop.permute.xlu0 %3824
    %3827 = vst.msk [vmem:[#allocation2 + $0x8] sm:$0xc0] %vm1084, %v3825
    %3829 = vrot.lane.b32.xlu0 %v3822, 64
    %v3830 = vpop.permute.xlu0 %3829
    %3832 = vst.msk [vmem:[#allocation2] sm:$0x3] %vm1090, %v3830
    %v3833 = vld [vmem:[#allocation2] sm:$0xff]
    %v3834 = vld [vmem:[#allocation2 + $0x8] sm:$0xff]
    %v3835 = vld [vmem:[%s9] sm:$0xff]
    %v3836 = vld [vmem:[%s9 + $0x8] sm:$0xff]
    %v3837 = vld [vmem:[%s9 + $0x10] sm:$0xff]
    %v3838 = vld [vmem:[%s9 + $0x18] sm:$0xff]
    %v3839 = vld [vmem:[%s9 + $0x20] sm:$0xff]
    %v3840 = vld [vmem:[%s9 + $0x28] sm:$0xff]
    %v3841 = vld [vmem:[%s9 + $0x30] sm:$0xff]
    %v3842 = vld [vmem:[%s9 + $0x38] sm:$0xff]
    %v3843 = vld [vmem:[%s10] sm:$0x1]
    %v3845 = vlaneseq
    %v3846 = vshrl.u32 %v3845, 7
    %v3847 = vsub.s32 0, %v3846
    %v3848 = vrot.slane %v3843, %v3847
    %v3851 = vsel %vm2000, %v3833, 0
    %v3854 = vsel %vm2000, %v3834, 0
    %3856 = vmatprep.subr.mxu0 0.0
    %3857 = vmatpush1.msra.mxu0 0.0
    %3858 = vmatprep.subr.mxu0 0.0
    %3859 = vmatpush1.msra.mxu0 0.0
    %3860 = vmatprep.subr.mxu0 0.0
    %3861 = vmatpush1.msra.mxu0 0.0
    %3862 = vmatprep.subr.mxu0 0.0
    %3863 = vmatpush1.msra.mxu0 0.0
    %3864 = vmatprep.subr.mxu0 0.0
    %3865 = vmatpush1.msra.mxu0 0.0
    %3866 = vmatprep.subr.mxu0 0.0
    %3867 = vmatpush1.msra.mxu0 0.0
    %3868 = vmatprep.subr.mxu0 0.0
    %3869 = vmatpush1.msra.mxu0 0.0
    %3870 = vmatprep.subr.mxu0 0.0
    %3871 = vmatpush1.msra.mxu0 0.0
    %3872 = vmatprep.subr.mxu0 0.0
    %3873 = vmatpush1.msra.mxu0 %v3842
    %3874 = vmatprep.subr.mxu0 0.0
    %3875 = vmatpush1.msra.mxu0 %v3841
    %3876 = vmatprep.subr.mxu0 0.0
    %3877 = vmatpush1.msra.mxu0 %v3840
    %3878 = vmatprep.subr.mxu0 0.0
    %3879 = vmatpush1.msra.mxu0 %v3839
    %3880 = vmatprep.subr.mxu0 0.0
    %3881 = vmatpush1.msra.mxu0 %v3838
    %3882 = vmatprep.subr.mxu0 0.0
    %3883 = vmatpush1.msra.mxu0 %v3837
    %3884 = vmatprep.subr.mxu0 0.0
    %3885 = vmatpush1.msra.mxu0 %v3836
    %3886 = vmatprep.subr.mxu0 0.0
    %3887 = vmatpush1.msra.mxu0 %v3835
    %3888 = vmatprep.subr.mxu0 0.0
    %3889 = vmatpush2.msra.mxu0 0.0
    %3890 = vmatprep.subr.mxu0 0.0
    %3891 = vmatpush2.msra.mxu0 0.0
    %3892 = vmatprep.subr.mxu0 0.0
    %3893 = vmatpush2.msra.mxu0 0.0
    %3894 = vmatprep.subr.mxu0 0.0
    %3895 = vmatpush2.msra.mxu0 0.0
    %3896 = vmatprep.subr.mxu0 0.0
    %3897 = vmatpush2.msra.mxu0 0.0
    %3898 = vmatprep.subr.mxu0 0.0
    %3899 = vmatpush2.msra.mxu0 0.0
    %3900 = vmatprep.subr.mxu0 0.0
    %3901 = vmatpush2.msra.mxu0 0.0
    %3902 = vmatprep.subr.mxu0 0.0
    %3903 = vmatpush2.msra.mxu0 0.0
    %3904 = vmatprep.subr.mxu0 0.0
    %3905 = vmatpush2.msra.mxu0 0.0
    %3906 = vmatprep.subr.mxu0 0.0
    %3907 = vmatpush2.msra.mxu0 0.0
    %3908 = vmatprep.subr.mxu0 0.0
    %3909 = vmatpush2.msra.mxu0 0.0
    %3910 = vmatprep.subr.mxu0 0.0
    %3911 = vmatpush2.msra.mxu0 0.0
    %3912 = vmatprep.subr.mxu0 0.0
    %3913 = vmatpush2.msra.mxu0 0.0
    %3914 = vmatprep.subr.mxu0 0.0
    %3915 = vmatpush2.msra.mxu0 0.0
    %3916 = vmatprep.subr.mxu0 0.0
    %3917 = vmatpush2.msra.mxu0 0.0
    %3918 = vmatprep.subr.mxu0 0.0
    %3919 = vmatpush2.msra.mxu0 0.0
    %3920 = vmatprep.mubr.f32.mxu0 0.0
    %3921 = vmatmul.mubr.f32.gmra.mxu0 %v3851
    %v3922 = vpop.f32.mrf.mxu0
    %v3923 = vadd.f32 %v3848, %v3922
    %v3924 = vpop.f32.mrf.mxu0
    %3925 = vmatprep.mubr.f32.mxu0 0.0
    %3926 = vmatmul.mubr.f32.gmra.mxu0 %v3854
    %v3927 = vpop.f32.mrf.mxu0
    %v3928 = vadd.f32 %v3848, %v3927
    %v3929 = vpop.f32.mrf.mxu0
    %3930 = vdwg.mxu0
    %v3931 = vsub.f32 0.0, %v3923
    %v3932 = vsub.f32 0.0, %v3928
    %v3933 = vmul.f32 %v3931, 1.442695
    %v3934 = vpow.pop %v3933
    %v3935 = vmul.f32 %v3932, 1.442695
    %v3936 = vpow.pop %v3935
    %v3937 = vadd.f32 %v3934, 1.0
    %v3938 = vadd.f32 %v3936, 1.0
    %v3939 = vrcp.pop %v3937
    %v3940 = vmul.f32 1.0, %v3939
    %v3941 = vrcp.pop %v3938
    %v3942 = vmul.f32 1.0, %v3941
    %vm3943 = vcmask 64512
    %3944 = vst.msk [vmem:[#allocation12] sm:$0xff] %vm3943, %v3940
    %3945 = vst.msk [vmem:[#allocation12 + $0x8] sm:$0xff] %vm3943, %v3942
    // Predicated region
    $region66: #{discriminator_forward.1} parent=1 // pred_check
      _
    $region67: #{discriminator_forward.1} parent=1 // pred_check_branch
      %3947 = sbr.rel (0) target = $region69
    $region68: #{discriminator_forward.1} parent=1 // pred_region
      %s3949 = ssub.s32 256, 256
      %3950 = vsyncadd [#allocation5], %s3949
      %s3951 = sshll.u32 [#allocation12], 4
      %s3952 = int_to_ptr.vmem [resolvable:$true] %s3951
      %3957 = dma.vmem_to_hbm [thread:$0]  %s3952, 256, %s11, [#allocation5], 128, 128, 8
    $region69: #{discriminator_forward.1} parent=1 // pred_fallthru
      _
    // Predicated region
    $region70: #{discriminator_forward.1} parent=1 // pred_check
      _
    $region71: #{discriminator_forward.1} parent=1 // pred_check_branch
      %3959 = sbr.rel (0) target = $region73
    $region72: #{discriminator_forward.1} parent=1 // pred_region
      %3960 = dma.done [#allocation5], 256
    $region73: #{discriminator_forward.1} parent=1 // pred_fallthru
      _
    %3961 = vsyncpa [#allocation4], 1
    %3962 = vsyncpa [#allocation7], 1
    %3963 = vsyncpa [#allocation10], 1
    %3964 = vsyncpa [#allocation5], 1

</llo_original>
